<compile_context>
chip_gen: v6e
topology: v6e:2x2x1
jax: 0.10.0
libtpu: 0.0.40
codegen_flags: <defaults>
</compile_context>

<pallas_src>
import functools

import jax
import jax.numpy as jnp
import numpy as np
from jax.experimental import pallas as pl
from jax.experimental.pallas import tpu as pltpu


def _sigmoid(z):
    # Numerically stable: exp(-|z|) never overflows; exp -> EUP,
    # approximate reciprocal -> EUP, keeping VALU slots free.
    e = jnp.exp(-jnp.abs(z))
    s = pl.reciprocal(1.0 + e, approx=True)
    return jnp.where(z >= 0, s, 1.0 - s)


def cbam_kernel(x_ref, w1t_ref, w2t_ref, wsa_ref, mask_ref, o_ref,
                *, H, W, KS, HWP):
    Bb, C, _ = x_ref.shape
    HW = H * W
    R = KS // 2

    xf = x_ref[...].astype(jnp.float32)              # (Bb, C, HWP)

    # ---------------- Channel attention (fused avg/max MLP) ----------------
    avg = jnp.sum(xf, axis=2) * (1.0 / HW)           # (Bb, C)  (pad lanes are 0)
    if HWP != HW:
        lane = jax.lax.broadcasted_iota(jnp.int32, (1, 1, HWP), 2)
        mx_src = jnp.where(lane < HW, xf, -jnp.inf)  # exclude pad lanes from max
    else:
        mx_src = xf
    mx = jnp.max(mx_src, axis=2)                     # (Bb, C)

    p = jnp.concatenate([avg, mx], axis=0)           # (2*Bb, C)
    h = jnp.maximum(
        jnp.dot(p, w1t_ref[...], preferred_element_type=jnp.float32), 0.0)
    y = jnp.dot(h, w2t_ref[...], preferred_element_type=jnp.float32)
    ca = _sigmoid(y[:Bb] + y[Bb:])                   # (Bb, C)

    # ---------------- Spatial attention: shift-based 7x7 conv --------------
    # xc is consumed immediately by the two reductions; it is NOT kept live
    # across the tap loop (the final store recomputes x*ca instead).
    xc = xf * ca[:, :, None]                         # (Bb, C, HWP)
    avg_map = jnp.sum(xc, axis=1) * (1.0 / C)        # (Bb, HWP)
    max_map = jnp.max(xc, axis=1)                    # (Bb, HWP)

    acc = jnp.zeros((Bb, HWP), jnp.float32)
    for a in range(KS):                              # tap row offset di = a - R
        di = a - R
        for b in range(KS):                          # tap col offset dj = b - R
            dj = b - R
            t = a * KS + b
            wa = wsa_ref[t]                          # SMEM scalar (avg-map tap)
            wm = wsa_ref[KS * KS + t]                # SMEM scalar (max-map tap)
            # Combine BEFORE rolling: one XLU roll per tap instead of two.
            combined = avg_map * wa + max_map * wm
            off = di * W + dj
            shift = (-off) % HWP                     # result[p] = src[p + off]
            if shift != 0:
                combined = pltpu.roll(combined, shift=shift, axis=1)
            # Precomputed (1, HWP) zero-pad mask; multiplies broadcast over Bb.
            acc = acc + mask_ref[t:t + 1, :] * combined

    sa = _sigmoid(acc)                               # (Bb, HWP)

    # Re-read the (resident) input tile and recompute x*ca for the store.
    o_ref[...] = ((x_ref[...].astype(jnp.float32) * ca[:, :, None])
                  * sa[:, None, :]).astype(o_ref.dtype)


def _tpu_budget():
    """(vmem_capacity, target x-block bytes, tensorcores per chip)."""
    vmem_cap = 64 << 20
    try:
        vmem_cap = int(pltpu.get_tpu_info().vmem_capacity_bytes)
    except Exception:
        pass
    num_tc = 1
    try:
        kind = jax.devices()[0].device_kind.lower()
        if "v7" in kind:
            num_tc = 2
    except Exception:
        pass
    # v7x: 64 MiB physical -> ~6 MiB blocks; v5e/v6e: 128 MiB -> ~12 MiB blocks.
    block_target = (6 << 20) if vmem_cap <= (64 << 20) else (12 << 20)
    return vmem_cap, block_target, num_tc


def _pick_block_b(B, per_batch_bytes, target_bytes, min_steps):
    """Largest divisor of B whose x block stays <= target.  Only force >=
    `min_steps` grid steps when the chip has multiple TensorCores (v7x)."""
    divisors = [d for d in range(1, B + 1) if B % d == 0]
    fits = [d for d in divisors if d * per_batch_bytes <= target_bytes] or [1]
    bb = max(fits)
    if min_steps > 1 and B >= min_steps and B // bb < min_steps:
        smaller = [d for d in fits if B // d >= min_steps]
        if smaller:
            bb = max(smaller)
    return bb


def cbam_pallas(x, w1, w2, w_sa):
    B, C, H, W = x.shape
    Cr = w1.shape[0]
    KS = w_sa.shape[-1]
    R = KS // 2
    HW = H * W
    HWP = ((HW + 127) // 128) * 128                  # lane-dense spatial axis

    x2 = jnp.reshape(x, (B, C, HW))
    if HWP != HW:
        x2 = jnp.pad(x2, ((0, 0), (0, 0), (0, HWP - HW)))
    w1t = jnp.transpose(w1).astype(jnp.float32)                 # (C, Cr)
    w2t = jnp.transpose(w2).astype(jnp.float32)                 # (Cr, C)
    wsa_flat = jnp.reshape(w_sa, (-1,)).astype(jnp.float32)     # (2*KS*KS,)

    # Precompute the KS*KS zero-pad edge masks host-side (data-independent).
    rows = np.arange(HW) // W
    cols = np.arange(HW) % W
    masks = np.zeros((KS * KS, HWP), np.float32)
    for a in range(KS):
        di = a - R
        for b in range(KS):
            dj = b - R
            ok = ((rows + di >= 0) & (rows + di < H) &
                  (cols + dj >= 0) & (cols + dj < W))
            masks[a * KS + b, :HW] = ok.astype(np.float32)
    masks = jnp.asarray(masks)

    vmem_cap, block_target, num_tc = _tpu_budget()
    dtype_bytes = jnp.dtype(x.dtype).itemsize
    per_batch_bytes = C * HWP * dtype_bytes
    Bb = _pick_block_b(B, per_batch_bytes, block_target, num_tc)
    block_bytes = Bb * per_batch_bytes
    # Budget ~6 block-sized live buffers (double-buffered in/out + temps).
    vmem_limit = int(min(int(vmem_cap * 0.75),
                         max(32 << 20, 6 * block_bytes + (4 << 20))))

    grid = (B // Bb,)
    kernel = functools.partial(cbam_kernel, H=H, W=W, KS=KS, HWP=HWP)

    flops = int(6 * B * C * HWP + 5 * B * HWP * KS * KS + 8 * B * C * Cr)
    transcendentals = int(B * (C + HWP))
    bytes_accessed = int(2 * B * C * HWP * dtype_bytes)

    out2 = pl.pallas_call(
        kernel,
        out_shape=jax.ShapeDtypeStruct((B, C, HWP), x.dtype),
        grid=grid,
        in_specs=[
            pl.BlockSpec((Bb, C, HWP), lambda b: (b, 0, 0)),
            pl.BlockSpec((C, Cr), lambda b: (0, 0)),
            pl.BlockSpec((Cr, C), lambda b: (0, 0)),
            pl.BlockSpec(memory_space=pltpu.MemorySpace.SMEM),   # 7x7 taps
            pl.BlockSpec((KS * KS, HWP), lambda b: (0, 0)),      # edge masks
        ],
        out_specs=pl.BlockSpec((Bb, C, HWP), lambda b: (b, 0, 0)),
        compiler_params=pltpu.CompilerParams(
            dimension_semantics=("parallel",),
            vmem_limit_bytes=vmem_limit),
        cost_estimate=pl.CostEstimate(
            flops=flops, transcendentals=transcendentals,
            bytes_accessed=bytes_accessed),
    )(x2, w1t, w2t, wsa_flat, masks)

    if HWP != HW:
        out2 = out2[:, :, :HW]
    return out2.reshape(B, C, H, W)


def cbam_reference(x, w1, w2, w_sa):
    """Pure-JAX reference mirroring the PyTorch module (NCHW)."""
    avg = jnp.mean(x, axis=(2, 3), keepdims=True)          # (B, C, 1, 1)
    mx = jnp.max(x, axis=(2, 3), keepdims=True)

    def mlp(p):
        h = jnp.einsum('rc,bcij->brij', w1, p)
        h = jnp.maximum(h, 0.0)
        return jnp.einsum('cr,brij->bcij', w2, h)

    ca = jax.nn.sigmoid(mlp(avg) + mlp(mx))
    out = x * ca

    avg_map = jnp.mean(out, axis=1, keepdims=True)
    max_map = jnp.max(out, axis=1, keepdims=True)
    cat = jnp.concatenate([avg_map, max_map], axis=1)       # (B, 2, H, W)
    conv = jax.lax.conv_general_dilated(
        cat, w_sa[None], window_strides=(1, 1),
        padding=((3, 3), (3, 3)),
        dimension_numbers=('NCHW', 'OIHW', 'NCHW'))
    sa = jax.nn.sigmoid(conv)
    return out * sa


if __name__ == "__main__":
    B, C, H, W = 2, 32, 16, 16
    ratio, ksize = 16, 7
    Cr = C // ratio

    key = jax.random.PRNGKey(0)
    kx, k1, k2, k3 = jax.random.split(key, 4)
    x = jax.random.normal(kx, (B, C, H, W), dtype=jnp.float32)
    # Deterministic synthetic parameters (module __init__ shapes, bias=False):
    w1 = jax.random.normal(k1, (Cr, C), dtype=jnp.float32) * 0.2   # fc1: Conv2d(C, C//ratio, 1)
    w2 = jax.random.normal(k2, (C, Cr), dtype=jnp.float32) * 0.2   # fc2: Conv2d(C//ratio, C, 1)
    w_sa = jax.random.normal(k3, (2, ksize, ksize), dtype=jnp.float32) * 0.2  # SA: Conv2d(2, 1, 7, pad=3)

    res = cbam_pallas(x, w1, w2, w_sa)
    jax.block_until_ready(res)

    ref = cbam_reference(x, w1, w2, w_sa)
    # Tolerance leaves headroom for the EUP approximate-reciprocal sigmoid.
    np.testing.assert_allclose(np.asarray(res), np.asarray(ref),
                               rtol=5e-3, atol=5e-3)
    print("KERNEL_OK")
</pallas_src>

<mosaic_0001>
module attributes {stable_mosaic.version = 11 : i64} {
  func.func @cbam_kernel(%arg0: i32, %arg1: memref<2x32x256xf32, #tpu.memory_space<vmem>>, %arg2: memref<32x2xf32, #tpu.memory_space<vmem>>, %arg3: memref<2x32xf32, #tpu.memory_space<vmem>>, %arg4: memref<98xf32, #tpu.memory_space<smem>>, %arg5: memref<49x256xf32, #tpu.memory_space<vmem>>, %arg6: memref<2x32x256xf32, #tpu.memory_space<vmem>>) attributes {dimension_semantics = [#tpu.dimension_semantics<parallel>], iteration_bounds = array<i64: 1>, scalar_prefetch = 0 : i64, scratch_operands = 0 : i64, tpu.core_type = #tpu.core_type<tc>, window_params = [{transform_indices = @transform_0, window_bounds = array<i64: 2, 32, 256>}, {pipeline_mode = #tpu.pipeline_mode<synchronous>, transform_indices = @transform_1, window_bounds = array<i64: 32, 2>}, {pipeline_mode = #tpu.pipeline_mode<synchronous>, transform_indices = @transform_2, window_bounds = array<i64: 2, 32>}, {transform_indices = @transform_3, window_bounds = array<i64: 98>}, {pipeline_mode = #tpu.pipeline_mode<synchronous>, transform_indices = @transform_4, window_bounds = array<i64: 49, 256>}, {transform_indices = @transform_5, window_bounds = array<i64: 2, 32, 256>}]} {
    %c0 = arith.constant 0 : index
    %c0_0 = arith.constant 0 : index
    %c0_1 = arith.constant 0 : index
    %0 = vector.load %arg1[%c0, %c0_0, %c0_1] : memref<2x32x256xf32, #tpu.memory_space<vmem>>, vector<2x32x256xf32>
    %cst = arith.constant dense<0.000000e+00> : vector<2x32xf32>
    %1 = vector.multi_reduction <add>, %0, %cst [2] : vector<2x32x256xf32> to vector<2x32xf32>
    %cst_2 = arith.constant 3.906250e-03 : f32
    %2 = vector.broadcast %cst_2 : f32 to vector<2x32xf32>
    %3 = arith.mulf %1, %2 : vector<2x32xf32>
    %cst_3 = arith.constant dense<0xFF800000> : vector<2x32xf32>
    %4 = vector.multi_reduction <maximumf>, %0, %cst_3 [2] : vector<2x32x256xf32> to vector<2x32xf32>
    %5 = tpu.concatenate %3, %4 in 0 : vector<2x32xf32>, vector<2x32xf32> -> vector<4x32xf32>
    %c0_4 = arith.constant 0 : index
    %c0_5 = arith.constant 0 : index
    %6 = vector.load %arg2[%c0_4, %c0_5] : memref<32x2xf32, #tpu.memory_space<vmem>>, vector<32x2xf32>
    %cst_6 = arith.constant dense<0.000000e+00> : vector<4x2xf32>
    %7 = tpu.matmul %5, %6, %cst_6 {dimension_numbers = #tpu.dot_dimension_numbers<[1], [0], [0], [1], [0, 0, 1, 1], [], []>} : vector<4x32xf32>, vector<32x2xf32>, vector<4x2xf32> -> vector<4x2xf32>
    %cst_7 = arith.constant 0.000000e+00 : f32
    %8 = vector.broadcast %cst_7 : f32 to vector<4x2xf32>
    %9 = arith.maximumf %7, %8 : vector<4x2xf32>
    %c0_8 = arith.constant 0 : index
    %c0_9 = arith.constant 0 : index
    %10 = vector.load %arg3[%c0_8, %c0_9] : memref<2x32xf32, #tpu.memory_space<vmem>>, vector<2x32xf32>
    %cst_10 = arith.constant dense<0.000000e+00> : vector<4x32xf32>
    %11 = tpu.matmul %9, %10, %cst_10 {dimension_numbers = #tpu.dot_dimension_numbers<[1], [0], [0], [1], [0, 0, 1, 1], [], []>} : vector<4x2xf32>, vector<2x32xf32>, vector<4x32xf32> -> vector<4x32xf32>
    %12 = vector.extract_strided_slice %11 {offsets = [0, 0], sizes = [2, 32], strides = [1, 1]} : vector<4x32xf32> to vector<2x32xf32>
    %13 = vector.extract_strided_slice %11 {offsets = [2, 0], sizes = [2, 32], strides = [1, 1]} : vector<4x32xf32> to vector<2x32xf32>
    %14 = arith.addf %12, %13 : vector<2x32xf32>
    %15 = math.absf %14 : vector<2x32xf32>
    %cst_11 = arith.constant 0.000000e+00 : f32
    %16 = vector.broadcast %cst_11 : f32 to vector<2x32xf32>
    %17 = arith.subf %16, %15 : vector<2x32xf32>
    %18 = math.exp %17 : vector<2x32xf32>
    %cst_12 = arith.constant 1.000000e+00 : f32
    %19 = vector.broadcast %cst_12 : f32 to vector<2x32xf32>
    %20 = arith.addf %19, %18 : vector<2x32xf32>
    %21 = tpu.reciprocal %20 {approx = true} : vector<2x32xf32> -> vector<2x32xf32>
    %cst_13 = arith.constant 0.000000e+00 : f32
    %22 = vector.broadcast %cst_13 : f32 to vector<2x32xf32>
    %23 = arith.cmpf oge, %14, %22 : vector<2x32xf32>
    %cst_14 = arith.constant 1.000000e+00 : f32
    %24 = vector.broadcast %cst_14 : f32 to vector<2x32xf32>
    %25 = arith.subf %24, %21 : vector<2x32xf32>
    %26 = arith.select %23, %21, %25 : vector<2x32xi1>, vector<2x32xf32>
    %27 = vector.shape_cast %26 : vector<2x32xf32> to vector<2x32x1xf32>
    %28 = vector.broadcast %27 : vector<2x32x1xf32> to vector<2x32x256xf32>
    %29 = arith.mulf %0, %28 : vector<2x32x256xf32>
    %cst_15 = arith.constant dense<0.000000e+00> : vector<2x256xf32>
    %30 = vector.multi_reduction <add>, %29, %cst_15 [1] : vector<2x32x256xf32> to vector<2x256xf32>
    %cst_16 = arith.constant 3.125000e-02 : f32
    %31 = vector.broadcast %cst_16 : f32 to vector<2x256xf32>
    %32 = arith.mulf %30, %31 : vector<2x256xf32>
    %cst_17 = arith.constant dense<0xFF800000> : vector<2x256xf32>
    %33 = vector.multi_reduction <maximumf>, %29, %cst_17 [1] : vector<2x32x256xf32> to vector<2x256xf32>
    %cst_18 = arith.constant 0.000000e+00 : f32
    %34 = vector.broadcast %cst_18 : f32 to vector<2x256xf32>
    %c0_19 = arith.constant 0 : index
    %35 = memref.load %arg4[%c0_19] : memref<98xf32, #tpu.memory_space<smem>>
    %c49 = arith.constant 49 : index
    %36 = memref.load %arg4[%c49] : memref<98xf32, #tpu.memory_space<smem>>
    %37 = vector.broadcast %35 : f32 to vector<2x256xf32>
    %38 = arith.mulf %32, %37 : vector<2x256xf32>
    %39 = vector.broadcast %36 : f32 to vector<2x256xf32>
    %40 = arith.mulf %33, %39 : vector<2x256xf32>
    %41 = arith.addf %38, %40 : vector<2x256xf32>
    %c51_i32 = arith.constant 51 : i32
    %42 = tpu.dynamic_rotate %41 by %c51_i32 dim 1 : vector<2x256xf32>, i32 -> vector<2x256xf32>
    %c0_20 = arith.constant 0 : index
    %c0_21 = arith.constant 0 : index
    %43 = vector.load %arg5[%c0_20, %c0_21] : memref<49x256xf32, #tpu.memory_space<vmem>>, vector<1x256xf32>
    %44 = vector.broadcast %43 : vector<1x256xf32> to vector<2x256xf32>
    %45 = arith.mulf %44, %42 : vector<2x256xf32>
    %46 = arith.addf %34, %45 : vector<2x256xf32>
    %c1 = arith.constant 1 : index
    %47 = memref.load %arg4[%c1] : memref<98xf32, #tpu.memory_space<smem>>
    %c50 = arith.constant 50 : index
    %48 = memref.load %arg4[%c50] : memref<98xf32, #tpu.memory_space<smem>>
    %49 = vector.broadcast %47 : f32 to vector<2x256xf32>
    %50 = arith.mulf %32, %49 : vector<2x256xf32>
    %51 = vector.broadcast %48 : f32 to vector<2x256xf32>
    %52 = arith.mulf %33, %51 : vector<2x256xf32>
    %53 = arith.addf %50, %52 : vector<2x256xf32>
    %c50_i32 = arith.constant 50 : i32
    %54 = tpu.dynamic_rotate %53 by %c50_i32 dim 1 : vector<2x256xf32>, i32 -> vector<2x256xf32>
    %c1_22 = arith.constant 1 : index
    %c0_23 = arith.constant 0 : index
    %55 = vector.load %arg5[%c1_22, %c0_23] : memref<49x256xf32, #tpu.memory_space<vmem>>, vector<1x256xf32>
    %56 = vector.broadcast %55 : vector<1x256xf32> to vector<2x256xf32>
    %57 = arith.mulf %56, %54 : vector<2x256xf32>
    %58 = arith.addf %46, %57 : vector<2x256xf32>
    %c2 = arith.constant 2 : index
    %59 = memref.load %arg4[%c2] : memref<98xf32, #tpu.memory_space<smem>>
    %c51 = arith.constant 51 : index
    %60 = memref.load %arg4[%c51] : memref<98xf32, #tpu.memory_space<smem>>
    %61 = vector.broadcast %59 : f32 to vector<2x256xf32>
    %62 = arith.mulf %32, %61 : vector<2x256xf32>
    %63 = vector.broadcast %60 : f32 to vector<2x256xf32>
    %64 = arith.mulf %33, %63 : vector<2x256xf32>
    %65 = arith.addf %62, %64 : vector<2x256xf32>
    %c49_i32 = arith.constant 49 : i32
    %66 = tpu.dynamic_rotate %65 by %c49_i32 dim 1 : vector<2x256xf32>, i32 -> vector<2x256xf32>
    %c2_24 = arith.constant 2 : index
    %c0_25 = arith.constant 0 : index
    %67 = vector.load %arg5[%c2_24, %c0_25] : memref<49x256xf32, #tpu.memory_space<vmem>>, vector<1x256xf32>
    %68 = vector.broadcast %67 : vector<1x256xf32> to vector<2x256xf32>
    %69 = arith.mulf %68, %66 : vector<2x256xf32>
    %70 = arith.addf %58, %69 : vector<2x256xf32>
    %c3 = arith.constant 3 : index
    %71 = memref.load %arg4[%c3] : memref<98xf32, #tpu.memory_space<smem>>
    %c52 = arith.constant 52 : index
    %72 = memref.load %arg4[%c52] : memref<98xf32, #tpu.memory_space<smem>>
    %73 = vector.broadcast %71 : f32 to vector<2x256xf32>
    %74 = arith.mulf %32, %73 : vector<2x256xf32>
    %75 = vector.broadcast %72 : f32 to vector<2x256xf32>
    %76 = arith.mulf %33, %75 : vector<2x256xf32>
    %77 = arith.addf %74, %76 : vector<2x256xf32>
    %c48_i32 = arith.constant 48 : i32
    %78 = tpu.dynamic_rotate %77 by %c48_i32 dim 1 : vector<2x256xf32>, i32 -> vector<2x256xf32>
    %c3_26 = arith.constant 3 : index
    %c0_27 = arith.constant 0 : index
    %79 = vector.load %arg5[%c3_26, %c0_27] : memref<49x256xf32, #tpu.memory_space<vmem>>, vector<1x256xf32>
    %80 = vector.broadcast %79 : vector<1x256xf32> to vector<2x256xf32>
    %81 = arith.mulf %80, %78 : vector<2x256xf32>
    %82 = arith.addf %70, %81 : vector<2x256xf32>
    %c4 = arith.constant 4 : index
    %83 = memref.load %arg4[%c4] : memref<98xf32, #tpu.memory_space<smem>>
    %c53 = arith.constant 53 : index
    %84 = memref.load %arg4[%c53] : memref<98xf32, #tpu.memory_space<smem>>
    %85 = vector.broadcast %83 : f32 to vector<2x256xf32>
    %86 = arith.mulf %32, %85 : vector<2x256xf32>
    %87 = vector.broadcast %84 : f32 to vector<2x256xf32>
    %88 = arith.mulf %33, %87 : vector<2x256xf32>
    %89 = arith.addf %86, %88 : vector<2x256xf32>
    %c47_i32 = arith.constant 47 : i32
    %90 = tpu.dynamic_rotate %89 by %c47_i32 dim 1 : vector<2x256xf32>, i32 -> vector<2x256xf32>
    %c4_28 = arith.constant 4 : index
    %c0_29 = arith.constant 0 : index
    %91 = vector.load %arg5[%c4_28, %c0_29] : memref<49x256xf32, #tpu.memory_space<vmem>>, vector<1x256xf32>
    %92 = vector.broadcast %91 : vector<1x256xf32> to vector<2x256xf32>
    %93 = arith.mulf %92, %90 : vector<2x256xf32>
    %94 = arith.addf %82, %93 : vector<2x256xf32>
    %c5 = arith.constant 5 : index
    %95 = memref.load %arg4[%c5] : memref<98xf32, #tpu.memory_space<smem>>
    %c54 = arith.constant 54 : index
    %96 = memref.load %arg4[%c54] : memref<98xf32, #tpu.memory_space<smem>>
    %97 = vector.broadcast %95 : f32 to vector<2x256xf32>
    %98 = arith.mulf %32, %97 : vector<2x256xf32>
    %99 = vector.broadcast %96 : f32 to vector<2x256xf32>
    %100 = arith.mulf %33, %99 : vector<2x256xf32>
    %101 = arith.addf %98, %100 : vector<2x256xf32>
    %c46_i32 = arith.constant 46 : i32
    %102 = tpu.dynamic_rotate %101 by %c46_i32 dim 1 : vector<2x256xf32>, i32 -> vector<2x256xf32>
    %c5_30 = arith.constant 5 : index
    %c0_31 = arith.constant 0 : index
    %103 = vector.load %arg5[%c5_30, %c0_31] : memref<49x256xf32, #tpu.memory_space<vmem>>, vector<1x256xf32>
    %104 = vector.broadcast %103 : vector<1x256xf32> to vector<2x256xf32>
    %105 = arith.mulf %104, %102 : vector<2x256xf32>
    %106 = arith.addf %94, %105 : vector<2x256xf32>
    %c6 = arith.constant 6 : index
    %107 = memref.load %arg4[%c6] : memref<98xf32, #tpu.memory_space<smem>>
    %c55 = arith.constant 55 : index
    %108 = memref.load %arg4[%c55] : memref<98xf32, #tpu.memory_space<smem>>
    %109 = vector.broadcast %107 : f32 to vector<2x256xf32>
    %110 = arith.mulf %32, %109 : vector<2x256xf32>
    %111 = vector.broadcast %108 : f32 to vector<2x256xf32>
    %112 = arith.mulf %33, %111 : vector<2x256xf32>
    %113 = arith.addf %110, %112 : vector<2x256xf32>
    %c45_i32 = arith.constant 45 : i32
    %114 = tpu.dynamic_rotate %113 by %c45_i32 dim 1 : vector<2x256xf32>, i32 -> vector<2x256xf32>
    %c6_32 = arith.constant 6 : index
    %c0_33 = arith.constant 0 : index
    %115 = vector.load %arg5[%c6_32, %c0_33] : memref<49x256xf32, #tpu.memory_space<vmem>>, vector<1x256xf32>
    %116 = vector.broadcast %115 : vector<1x256xf32> to vector<2x256xf32>
    %117 = arith.mulf %116, %114 : vector<2x256xf32>
    %118 = arith.addf %106, %117 : vector<2x256xf32>
    %c7 = arith.constant 7 : index
    %119 = memref.load %arg4[%c7] : memref<98xf32, #tpu.memory_space<smem>>
    %c56 = arith.constant 56 : index
    %120 = memref.load %arg4[%c56] : memref<98xf32, #tpu.memory_space<smem>>
    %121 = vector.broadcast %119 : f32 to vector<2x256xf32>
    %122 = arith.mulf %32, %121 : vector<2x256xf32>
    %123 = vector.broadcast %120 : f32 to vector<2x256xf32>
    %124 = arith.mulf %33, %123 : vector<2x256xf32>
    %125 = arith.addf %122, %124 : vector<2x256xf32>
    %c35_i32 = arith.constant 35 : i32
    %126 = tpu.dynamic_rotate %125 by %c35_i32 dim 1 : vector<2x256xf32>, i32 -> vector<2x256xf32>
    %c7_34 = arith.constant 7 : index
    %c0_35 = arith.constant 0 : index
    %127 = vector.load %arg5[%c7_34, %c0_35] : memref<49x256xf32, #tpu.memory_space<vmem>>, vector<1x256xf32>
    %128 = vector.broadcast %127 : vector<1x256xf32> to vector<2x256xf32>
    %129 = arith.mulf %128, %126 : vector<2x256xf32>
    %130 = arith.addf %118, %129 : vector<2x256xf32>
    %c8 = arith.constant 8 : index
    %131 = memref.load %arg4[%c8] : memref<98xf32, #tpu.memory_space<smem>>
    %c57 = arith.constant 57 : index
    %132 = memref.load %arg4[%c57] : memref<98xf32, #tpu.memory_space<smem>>
    %133 = vector.broadcast %131 : f32 to vector<2x256xf32>
    %134 = arith.mulf %32, %133 : vector<2x256xf32>
    %135 = vector.broadcast %132 : f32 to vector<2x256xf32>
    %136 = arith.mulf %33, %135 : vector<2x256xf32>
    %137 = arith.addf %134, %136 : vector<2x256xf32>
    %c34_i32 = arith.constant 34 : i32
    %138 = tpu.dynamic_rotate %137 by %c34_i32 dim 1 : vector<2x256xf32>, i32 -> vector<2x256xf32>
    %c8_36 = arith.constant 8 : index
    %c0_37 = arith.constant 0 : index
    %139 = vector.load %arg5[%c8_36, %c0_37] : memref<49x256xf32, #tpu.memory_space<vmem>>, vector<1x256xf32>
    %140 = vector.broadcast %139 : vector<1x256xf32> to vector<2x256xf32>
    %141 = arith.mulf %140, %138 : vector<2x256xf32>
    %142 = arith.addf %130, %141 : vector<2x256xf32>
    %c9 = arith.constant 9 : index
    %143 = memref.load %arg4[%c9] : memref<98xf32, #tpu.memory_space<smem>>
    %c58 = arith.constant 58 : index
    %144 = memref.load %arg4[%c58] : memref<98xf32, #tpu.memory_space<smem>>
    %145 = vector.broadcast %143 : f32 to vector<2x256xf32>
    %146 = arith.mulf %32, %145 : vector<2x256xf32>
    %147 = vector.broadcast %144 : f32 to vector<2x256xf32>
    %148 = arith.mulf %33, %147 : vector<2x256xf32>
    %149 = arith.addf %146, %148 : vector<2x256xf32>
    %c33_i32 = arith.constant 33 : i32
    %150 = tpu.dynamic_rotate %149 by %c33_i32 dim 1 : vector<2x256xf32>, i32 -> vector<2x256xf32>
    %c9_38 = arith.constant 9 : index
    %c0_39 = arith.constant 0 : index
    %151 = vector.load %arg5[%c9_38, %c0_39] : memref<49x256xf32, #tpu.memory_space<vmem>>, vector<1x256xf32>
    %152 = vector.broadcast %151 : vector<1x256xf32> to vector<2x256xf32>
    %153 = arith.mulf %152, %150 : vector<2x256xf32>
    %154 = arith.addf %142, %153 : vector<2x256xf32>
    %c10 = arith.constant 10 : index
    %155 = memref.load %arg4[%c10] : memref<98xf32, #tpu.memory_space<smem>>
    %c59 = arith.constant 59 : index
    %156 = memref.load %arg4[%c59] : memref<98xf32, #tpu.memory_space<smem>>
    %157 = vector.broadcast %155 : f32 to vector<2x256xf32>
    %158 = arith.mulf %32, %157 : vector<2x256xf32>
    %159 = vector.broadcast %156 : f32 to vector<2x256xf32>
    %160 = arith.mulf %33, %159 : vector<2x256xf32>
    %161 = arith.addf %158, %160 : vector<2x256xf32>
    %c32_i32 = arith.constant 32 : i32
    %162 = tpu.dynamic_rotate %161 by %c32_i32 dim 1 : vector<2x256xf32>, i32 -> vector<2x256xf32>
    %c10_40 = arith.constant 10 : index
    %c0_41 = arith.constant 0 : index
    %163 = vector.load %arg5[%c10_40, %c0_41] : memref<49x256xf32, #tpu.memory_space<vmem>>, vector<1x256xf32>
    %164 = vector.broadcast %163 : vector<1x256xf32> to vector<2x256xf32>
    %165 = arith.mulf %164, %162 : vector<2x256xf32>
    %166 = arith.addf %154, %165 : vector<2x256xf32>
    %c11 = arith.constant 11 : index
    %167 = memref.load %arg4[%c11] : memref<98xf32, #tpu.memory_space<smem>>
    %c60 = arith.constant 60 : index
    %168 = memref.load %arg4[%c60] : memref<98xf32, #tpu.memory_space<smem>>
    %169 = vector.broadcast %167 : f32 to vector<2x256xf32>
    %170 = arith.mulf %32, %169 : vector<2x256xf32>
    %171 = vector.broadcast %168 : f32 to vector<2x256xf32>
    %172 = arith.mulf %33, %171 : vector<2x256xf32>
    %173 = arith.addf %170, %172 : vector<2x256xf32>
    %c31_i32 = arith.constant 31 : i32
    %174 = tpu.dynamic_rotate %173 by %c31_i32 dim 1 : vector<2x256xf32>, i32 -> vector<2x256xf32>
    %c11_42 = arith.constant 11 : index
    %c0_43 = arith.constant 0 : index
    %175 = vector.load %arg5[%c11_42, %c0_43] : memref<49x256xf32, #tpu.memory_space<vmem>>, vector<1x256xf32>
    %176 = vector.broadcast %175 : vector<1x256xf32> to vector<2x256xf32>
    %177 = arith.mulf %176, %174 : vector<2x256xf32>
    %178 = arith.addf %166, %177 : vector<2x256xf32>
    %c12 = arith.constant 12 : index
    %179 = memref.load %arg4[%c12] : memref<98xf32, #tpu.memory_space<smem>>
    %c61 = arith.constant 61 : index
    %180 = memref.load %arg4[%c61] : memref<98xf32, #tpu.memory_space<smem>>
    %181 = vector.broadcast %179 : f32 to vector<2x256xf32>
    %182 = arith.mulf %32, %181 : vector<2x256xf32>
    %183 = vector.broadcast %180 : f32 to vector<2x256xf32>
    %184 = arith.mulf %33, %183 : vector<2x256xf32>
    %185 = arith.addf %182, %184 : vector<2x256xf32>
    %c30_i32 = arith.constant 30 : i32
    %186 = tpu.dynamic_rotate %185 by %c30_i32 dim 1 : vector<2x256xf32>, i32 -> vector<2x256xf32>
    %c12_44 = arith.constant 12 : index
    %c0_45 = arith.constant 0 : index
    %187 = vector.load %arg5[%c12_44, %c0_45] : memref<49x256xf32, #tpu.memory_space<vmem>>, vector<1x256xf32>
    %188 = vector.broadcast %187 : vector<1x256xf32> to vector<2x256xf32>
    %189 = arith.mulf %188, %186 : vector<2x256xf32>
    %190 = arith.addf %178, %189 : vector<2x256xf32>
    %c13 = arith.constant 13 : index
    %191 = memref.load %arg4[%c13] : memref<98xf32, #tpu.memory_space<smem>>
    %c62 = arith.constant 62 : index
    %192 = memref.load %arg4[%c62] : memref<98xf32, #tpu.memory_space<smem>>
    %193 = vector.broadcast %191 : f32 to vector<2x256xf32>
    %194 = arith.mulf %32, %193 : vector<2x256xf32>
    %195 = vector.broadcast %192 : f32 to vector<2x256xf32>
    %196 = arith.mulf %33, %195 : vector<2x256xf32>
    %197 = arith.addf %194, %196 : vector<2x256xf32>
    %c29_i32 = arith.constant 29 : i32
    %198 = tpu.dynamic_rotate %197 by %c29_i32 dim 1 : vector<2x256xf32>, i32 -> vector<2x256xf32>
    %c13_46 = arith.constant 13 : index
    %c0_47 = arith.constant 0 : index
    %199 = vector.load %arg5[%c13_46, %c0_47] : memref<49x256xf32, #tpu.memory_space<vmem>>, vector<1x256xf32>
    %200 = vector.broadcast %199 : vector<1x256xf32> to vector<2x256xf32>
    %201 = arith.mulf %200, %198 : vector<2x256xf32>
    %202 = arith.addf %190, %201 : vector<2x256xf32>
    %c14 = arith.constant 14 : index
    %203 = memref.load %arg4[%c14] : memref<98xf32, #tpu.memory_space<smem>>
    %c63 = arith.constant 63 : index
    %204 = memref.load %arg4[%c63] : memref<98xf32, #tpu.memory_space<smem>>
    %205 = vector.broadcast %203 : f32 to vector<2x256xf32>
    %206 = arith.mulf %32, %205 : vector<2x256xf32>
    %207 = vector.broadcast %204 : f32 to vector<2x256xf32>
    %208 = arith.mulf %33, %207 : vector<2x256xf32>
    %209 = arith.addf %206, %208 : vector<2x256xf32>
    %c19_i32 = arith.constant 19 : i32
    %210 = tpu.dynamic_rotate %209 by %c19_i32 dim 1 : vector<2x256xf32>, i32 -> vector<2x256xf32>
    %c14_48 = arith.constant 14 : index
    %c0_49 = arith.constant 0 : index
    %211 = vector.load %arg5[%c14_48, %c0_49] : memref<49x256xf32, #tpu.memory_space<vmem>>, vector<1x256xf32>
    %212 = vector.broadcast %211 : vector<1x256xf32> to vector<2x256xf32>
    %213 = arith.mulf %212, %210 : vector<2x256xf32>
    %214 = arith.addf %202, %213 : vector<2x256xf32>
    %c15 = arith.constant 15 : index
    %215 = memref.load %arg4[%c15] : memref<98xf32, #tpu.memory_space<smem>>
    %c64 = arith.constant 64 : index
    %216 = memref.load %arg4[%c64] : memref<98xf32, #tpu.memory_space<smem>>
    %217 = vector.broadcast %215 : f32 to vector<2x256xf32>
    %218 = arith.mulf %32, %217 : vector<2x256xf32>
    %219 = vector.broadcast %216 : f32 to vector<2x256xf32>
    %220 = arith.mulf %33, %219 : vector<2x256xf32>
    %221 = arith.addf %218, %220 : vector<2x256xf32>
    %c18_i32 = arith.constant 18 : i32
    %222 = tpu.dynamic_rotate %221 by %c18_i32 dim 1 : vector<2x256xf32>, i32 -> vector<2x256xf32>
    %c15_50 = arith.constant 15 : index
    %c0_51 = arith.constant 0 : index
    %223 = vector.load %arg5[%c15_50, %c0_51] : memref<49x256xf32, #tpu.memory_space<vmem>>, vector<1x256xf32>
    %224 = vector.broadcast %223 : vector<1x256xf32> to vector<2x256xf32>
    %225 = arith.mulf %224, %222 : vector<2x256xf32>
    %226 = arith.addf %214, %225 : vector<2x256xf32>
    %c16 = arith.constant 16 : index
    %227 = memref.load %arg4[%c16] : memref<98xf32, #tpu.memory_space<smem>>
    %c65 = arith.constant 65 : index
    %228 = memref.load %arg4[%c65] : memref<98xf32, #tpu.memory_space<smem>>
    %229 = vector.broadcast %227 : f32 to vector<2x256xf32>
    %230 = arith.mulf %32, %229 : vector<2x256xf32>
    %231 = vector.broadcast %228 : f32 to vector<2x256xf32>
    %232 = arith.mulf %33, %231 : vector<2x256xf32>
    %233 = arith.addf %230, %232 : vector<2x256xf32>
    %c17_i32 = arith.constant 17 : i32
    %234 = tpu.dynamic_rotate %233 by %c17_i32 dim 1 : vector<2x256xf32>, i32 -> vector<2x256xf32>
    %c16_52 = arith.constant 16 : index
    %c0_53 = arith.constant 0 : index
    %235 = vector.load %arg5[%c16_52, %c0_53] : memref<49x256xf32, #tpu.memory_space<vmem>>, vector<1x256xf32>
    %236 = vector.broadcast %235 : vector<1x256xf32> to vector<2x256xf32>
    %237 = arith.mulf %236, %234 : vector<2x256xf32>
    %238 = arith.addf %226, %237 : vector<2x256xf32>
    %c17 = arith.constant 17 : index
    %239 = memref.load %arg4[%c17] : memref<98xf32, #tpu.memory_space<smem>>
    %c66 = arith.constant 66 : index
    %240 = memref.load %arg4[%c66] : memref<98xf32, #tpu.memory_space<smem>>
    %241 = vector.broadcast %239 : f32 to vector<2x256xf32>
    %242 = arith.mulf %32, %241 : vector<2x256xf32>
    %243 = vector.broadcast %240 : f32 to vector<2x256xf32>
    %244 = arith.mulf %33, %243 : vector<2x256xf32>
    %245 = arith.addf %242, %244 : vector<2x256xf32>
    %c16_i32 = arith.constant 16 : i32
    %246 = tpu.dynamic_rotate %245 by %c16_i32 dim 1 : vector<2x256xf32>, i32 -> vector<2x256xf32>
    %c17_54 = arith.constant 17 : index
    %c0_55 = arith.constant 0 : index
    %247 = vector.load %arg5[%c17_54, %c0_55] : memref<49x256xf32, #tpu.memory_space<vmem>>, vector<1x256xf32>
    %248 = vector.broadcast %247 : vector<1x256xf32> to vector<2x256xf32>
    %249 = arith.mulf %248, %246 : vector<2x256xf32>
    %250 = arith.addf %238, %249 : vector<2x256xf32>
    %c18 = arith.constant 18 : index
    %251 = memref.load %arg4[%c18] : memref<98xf32, #tpu.memory_space<smem>>
    %c67 = arith.constant 67 : index
    %252 = memref.load %arg4[%c67] : memref<98xf32, #tpu.memory_space<smem>>
    %253 = vector.broadcast %251 : f32 to vector<2x256xf32>
    %254 = arith.mulf %32, %253 : vector<2x256xf32>
    %255 = vector.broadcast %252 : f32 to vector<2x256xf32>
    %256 = arith.mulf %33, %255 : vector<2x256xf32>
    %257 = arith.addf %254, %256 : vector<2x256xf32>
    %c15_i32 = arith.constant 15 : i32
    %258 = tpu.dynamic_rotate %257 by %c15_i32 dim 1 : vector<2x256xf32>, i32 -> vector<2x256xf32>
    %c18_56 = arith.constant 18 : index
    %c0_57 = arith.constant 0 : index
    %259 = vector.load %arg5[%c18_56, %c0_57] : memref<49x256xf32, #tpu.memory_space<vmem>>, vector<1x256xf32>
    %260 = vector.broadcast %259 : vector<1x256xf32> to vector<2x256xf32>
    %261 = arith.mulf %260, %258 : vector<2x256xf32>
    %262 = arith.addf %250, %261 : vector<2x256xf32>
    %c19 = arith.constant 19 : index
    %263 = memref.load %arg4[%c19] : memref<98xf32, #tpu.memory_space<smem>>
    %c68 = arith.constant 68 : index
    %264 = memref.load %arg4[%c68] : memref<98xf32, #tpu.memory_space<smem>>
    %265 = vector.broadcast %263 : f32 to vector<2x256xf32>
    %266 = arith.mulf %32, %265 : vector<2x256xf32>
    %267 = vector.broadcast %264 : f32 to vector<2x256xf32>
    %268 = arith.mulf %33, %267 : vector<2x256xf32>
    %269 = arith.addf %266, %268 : vector<2x256xf32>
    %c14_i32 = arith.constant 14 : i32
    %270 = tpu.dynamic_rotate %269 by %c14_i32 dim 1 : vector<2x256xf32>, i32 -> vector<2x256xf32>
    %c19_58 = arith.constant 19 : index
    %c0_59 = arith.constant 0 : index
    %271 = vector.load %arg5[%c19_58, %c0_59] : memref<49x256xf32, #tpu.memory_space<vmem>>, vector<1x256xf32>
    %272 = vector.broadcast %271 : vector<1x256xf32> to vector<2x256xf32>
    %273 = arith.mulf %272, %270 : vector<2x256xf32>
    %274 = arith.addf %262, %273 : vector<2x256xf32>
    %c20 = arith.constant 20 : index
    %275 = memref.load %arg4[%c20] : memref<98xf32, #tpu.memory_space<smem>>
    %c69 = arith.constant 69 : index
    %276 = memref.load %arg4[%c69] : memref<98xf32, #tpu.memory_space<smem>>
    %277 = vector.broadcast %275 : f32 to vector<2x256xf32>
    %278 = arith.mulf %32, %277 : vector<2x256xf32>
    %279 = vector.broadcast %276 : f32 to vector<2x256xf32>
    %280 = arith.mulf %33, %279 : vector<2x256xf32>
    %281 = arith.addf %278, %280 : vector<2x256xf32>
    %c13_i32 = arith.constant 13 : i32
    %282 = tpu.dynamic_rotate %281 by %c13_i32 dim 1 : vector<2x256xf32>, i32 -> vector<2x256xf32>
    %c20_60 = arith.constant 20 : index
    %c0_61 = arith.constant 0 : index
    %283 = vector.load %arg5[%c20_60, %c0_61] : memref<49x256xf32, #tpu.memory_space<vmem>>, vector<1x256xf32>
    %284 = vector.broadcast %283 : vector<1x256xf32> to vector<2x256xf32>
    %285 = arith.mulf %284, %282 : vector<2x256xf32>
    %286 = arith.addf %274, %285 : vector<2x256xf32>
    %c21 = arith.constant 21 : index
    %287 = memref.load %arg4[%c21] : memref<98xf32, #tpu.memory_space<smem>>
    %c70 = arith.constant 70 : index
    %288 = memref.load %arg4[%c70] : memref<98xf32, #tpu.memory_space<smem>>
    %289 = vector.broadcast %287 : f32 to vector<2x256xf32>
    %290 = arith.mulf %32, %289 : vector<2x256xf32>
    %291 = vector.broadcast %288 : f32 to vector<2x256xf32>
    %292 = arith.mulf %33, %291 : vector<2x256xf32>
    %293 = arith.addf %290, %292 : vector<2x256xf32>
    %c3_i32 = arith.constant 3 : i32
    %294 = tpu.dynamic_rotate %293 by %c3_i32 dim 1 : vector<2x256xf32>, i32 -> vector<2x256xf32>
    %c21_62 = arith.constant 21 : index
    %c0_63 = arith.constant 0 : index
    %295 = vector.load %arg5[%c21_62, %c0_63] : memref<49x256xf32, #tpu.memory_space<vmem>>, vector<1x256xf32>
    %296 = vector.broadcast %295 : vector<1x256xf32> to vector<2x256xf32>
    %297 = arith.mulf %296, %294 : vector<2x256xf32>
    %298 = arith.addf %286, %297 : vector<2x256xf32>
    %c22 = arith.constant 22 : index
    %299 = memref.load %arg4[%c22] : memref<98xf32, #tpu.memory_space<smem>>
    %c71 = arith.constant 71 : index
    %300 = memref.load %arg4[%c71] : memref<98xf32, #tpu.memory_space<smem>>
    %301 = vector.broadcast %299 : f32 to vector<2x256xf32>
    %302 = arith.mulf %32, %301 : vector<2x256xf32>
    %303 = vector.broadcast %300 : f32 to vector<2x256xf32>
    %304 = arith.mulf %33, %303 : vector<2x256xf32>
    %305 = arith.addf %302, %304 : vector<2x256xf32>
    %c2_i32 = arith.constant 2 : i32
    %306 = tpu.dynamic_rotate %305 by %c2_i32 dim 1 : vector<2x256xf32>, i32 -> vector<2x256xf32>
    %c22_64 = arith.constant 22 : index
    %c0_65 = arith.constant 0 : index
    %307 = vector.load %arg5[%c22_64, %c0_65] : memref<49x256xf32, #tpu.memory_space<vmem>>, vector<1x256xf32>
    %308 = vector.broadcast %307 : vector<1x256xf32> to vector<2x256xf32>
    %309 = arith.mulf %308, %306 : vector<2x256xf32>
    %310 = arith.addf %298, %309 : vector<2x256xf32>
    %c23 = arith.constant 23 : index
    %311 = memref.load %arg4[%c23] : memref<98xf32, #tpu.memory_space<smem>>
    %c72 = arith.constant 72 : index
    %312 = memref.load %arg4[%c72] : memref<98xf32, #tpu.memory_space<smem>>
    %313 = vector.broadcast %311 : f32 to vector<2x256xf32>
    %314 = arith.mulf %32, %313 : vector<2x256xf32>
    %315 = vector.broadcast %312 : f32 to vector<2x256xf32>
    %316 = arith.mulf %33, %315 : vector<2x256xf32>
    %317 = arith.addf %314, %316 : vector<2x256xf32>
    %c1_i32 = arith.constant 1 : i32
    %318 = tpu.dynamic_rotate %317 by %c1_i32 dim 1 : vector<2x256xf32>, i32 -> vector<2x256xf32>
    %c23_66 = arith.constant 23 : index
    %c0_67 = arith.constant 0 : index
    %319 = vector.load %arg5[%c23_66, %c0_67] : memref<49x256xf32, #tpu.memory_space<vmem>>, vector<1x256xf32>
    %320 = vector.broadcast %319 : vector<1x256xf32> to vector<2x256xf32>
    %321 = arith.mulf %320, %318 : vector<2x256xf32>
    %322 = arith.addf %310, %321 : vector<2x256xf32>
    %c24 = arith.constant 24 : index
    %323 = memref.load %arg4[%c24] : memref<98xf32, #tpu.memory_space<smem>>
    %c73 = arith.constant 73 : index
    %324 = memref.load %arg4[%c73] : memref<98xf32, #tpu.memory_space<smem>>
    %325 = vector.broadcast %323 : f32 to vector<2x256xf32>
    %326 = arith.mulf %32, %325 : vector<2x256xf32>
    %327 = vector.broadcast %324 : f32 to vector<2x256xf32>
    %328 = arith.mulf %33, %327 : vector<2x256xf32>
    %329 = arith.addf %326, %328 : vector<2x256xf32>
    %c24_68 = arith.constant 24 : index
    %c0_69 = arith.constant 0 : index
    %330 = vector.load %arg5[%c24_68, %c0_69] : memref<49x256xf32, #tpu.memory_space<vmem>>, vector<1x256xf32>
    %331 = vector.broadcast %330 : vector<1x256xf32> to vector<2x256xf32>
    %332 = arith.mulf %331, %329 : vector<2x256xf32>
    %333 = arith.addf %322, %332 : vector<2x256xf32>
    %c25 = arith.constant 25 : index
    %334 = memref.load %arg4[%c25] : memref<98xf32, #tpu.memory_space<smem>>
    %c74 = arith.constant 74 : index
    %335 = memref.load %arg4[%c74] : memref<98xf32, #tpu.memory_space<smem>>
    %336 = vector.broadcast %334 : f32 to vector<2x256xf32>
    %337 = arith.mulf %32, %336 : vector<2x256xf32>
    %338 = vector.broadcast %335 : f32 to vector<2x256xf32>
    %339 = arith.mulf %33, %338 : vector<2x256xf32>
    %340 = arith.addf %337, %339 : vector<2x256xf32>
    %c255_i32 = arith.constant 255 : i32
    %341 = tpu.dynamic_rotate %340 by %c255_i32 dim 1 : vector<2x256xf32>, i32 -> vector<2x256xf32>
    %c25_70 = arith.constant 25 : index
    %c0_71 = arith.constant 0 : index
    %342 = vector.load %arg5[%c25_70, %c0_71] : memref<49x256xf32, #tpu.memory_space<vmem>>, vector<1x256xf32>
    %343 = vector.broadcast %342 : vector<1x256xf32> to vector<2x256xf32>
    %344 = arith.mulf %343, %341 : vector<2x256xf32>
    %345 = arith.addf %333, %344 : vector<2x256xf32>
    %c26 = arith.constant 26 : index
    %346 = memref.load %arg4[%c26] : memref<98xf32, #tpu.memory_space<smem>>
    %c75 = arith.constant 75 : index
    %347 = memref.load %arg4[%c75] : memref<98xf32, #tpu.memory_space<smem>>
    %348 = vector.broadcast %346 : f32 to vector<2x256xf32>
    %349 = arith.mulf %32, %348 : vector<2x256xf32>
    %350 = vector.broadcast %347 : f32 to vector<2x256xf32>
    %351 = arith.mulf %33, %350 : vector<2x256xf32>
    %352 = arith.addf %349, %351 : vector<2x256xf32>
    %c254_i32 = arith.constant 254 : i32
    %353 = tpu.dynamic_rotate %352 by %c254_i32 dim 1 : vector<2x256xf32>, i32 -> vector<2x256xf32>
    %c26_72 = arith.constant 26 : index
    %c0_73 = arith.constant 0 : index
    %354 = vector.load %arg5[%c26_72, %c0_73] : memref<49x256xf32, #tpu.memory_space<vmem>>, vector<1x256xf32>
    %355 = vector.broadcast %354 : vector<1x256xf32> to vector<2x256xf32>
    %356 = arith.mulf %355, %353 : vector<2x256xf32>
    %357 = arith.addf %345, %356 : vector<2x256xf32>
    %c27 = arith.constant 27 : index
    %358 = memref.load %arg4[%c27] : memref<98xf32, #tpu.memory_space<smem>>
    %c76 = arith.constant 76 : index
    %359 = memref.load %arg4[%c76] : memref<98xf32, #tpu.memory_space<smem>>
    %360 = vector.broadcast %358 : f32 to vector<2x256xf32>
    %361 = arith.mulf %32, %360 : vector<2x256xf32>
    %362 = vector.broadcast %359 : f32 to vector<2x256xf32>
    %363 = arith.mulf %33, %362 : vector<2x256xf32>
    %364 = arith.addf %361, %363 : vector<2x256xf32>
    %c253_i32 = arith.constant 253 : i32
    %365 = tpu.dynamic_rotate %364 by %c253_i32 dim 1 : vector<2x256xf32>, i32 -> vector<2x256xf32>
    %c27_74 = arith.constant 27 : index
    %c0_75 = arith.constant 0 : index
    %366 = vector.load %arg5[%c27_74, %c0_75] : memref<49x256xf32, #tpu.memory_space<vmem>>, vector<1x256xf32>
    %367 = vector.broadcast %366 : vector<1x256xf32> to vector<2x256xf32>
    %368 = arith.mulf %367, %365 : vector<2x256xf32>
    %369 = arith.addf %357, %368 : vector<2x256xf32>
    %c28 = arith.constant 28 : index
    %370 = memref.load %arg4[%c28] : memref<98xf32, #tpu.memory_space<smem>>
    %c77 = arith.constant 77 : index
    %371 = memref.load %arg4[%c77] : memref<98xf32, #tpu.memory_space<smem>>
    %372 = vector.broadcast %370 : f32 to vector<2x256xf32>
    %373 = arith.mulf %32, %372 : vector<2x256xf32>
    %374 = vector.broadcast %371 : f32 to vector<2x256xf32>
    %375 = arith.mulf %33, %374 : vector<2x256xf32>
    %376 = arith.addf %373, %375 : vector<2x256xf32>
    %c243_i32 = arith.constant 243 : i32
    %377 = tpu.dynamic_rotate %376 by %c243_i32 dim 1 : vector<2x256xf32>, i32 -> vector<2x256xf32>
    %c28_76 = arith.constant 28 : index
    %c0_77 = arith.constant 0 : index
    %378 = vector.load %arg5[%c28_76, %c0_77] : memref<49x256xf32, #tpu.memory_space<vmem>>, vector<1x256xf32>
    %379 = vector.broadcast %378 : vector<1x256xf32> to vector<2x256xf32>
    %380 = arith.mulf %379, %377 : vector<2x256xf32>
    %381 = arith.addf %369, %380 : vector<2x256xf32>
    %c29 = arith.constant 29 : index
    %382 = memref.load %arg4[%c29] : memref<98xf32, #tpu.memory_space<smem>>
    %c78 = arith.constant 78 : index
    %383 = memref.load %arg4[%c78] : memref<98xf32, #tpu.memory_space<smem>>
    %384 = vector.broadcast %382 : f32 to vector<2x256xf32>
    %385 = arith.mulf %32, %384 : vector<2x256xf32>
    %386 = vector.broadcast %383 : f32 to vector<2x256xf32>
    %387 = arith.mulf %33, %386 : vector<2x256xf32>
    %388 = arith.addf %385, %387 : vector<2x256xf32>
    %c242_i32 = arith.constant 242 : i32
    %389 = tpu.dynamic_rotate %388 by %c242_i32 dim 1 : vector<2x256xf32>, i32 -> vector<2x256xf32>
    %c29_78 = arith.constant 29 : index
    %c0_79 = arith.constant 0 : index
    %390 = vector.load %arg5[%c29_78, %c0_79] : memref<49x256xf32, #tpu.memory_space<vmem>>, vector<1x256xf32>
    %391 = vector.broadcast %390 : vector<1x256xf32> to vector<2x256xf32>
    %392 = arith.mulf %391, %389 : vector<2x256xf32>
    %393 = arith.addf %381, %392 : vector<2x256xf32>
    %c30 = arith.constant 30 : index
    %394 = memref.load %arg4[%c30] : memref<98xf32, #tpu.memory_space<smem>>
    %c79 = arith.constant 79 : index
    %395 = memref.load %arg4[%c79] : memref<98xf32, #tpu.memory_space<smem>>
    %396 = vector.broadcast %394 : f32 to vector<2x256xf32>
    %397 = arith.mulf %32, %396 : vector<2x256xf32>
    %398 = vector.broadcast %395 : f32 to vector<2x256xf32>
    %399 = arith.mulf %33, %398 : vector<2x256xf32>
    %400 = arith.addf %397, %399 : vector<2x256xf32>
    %c241_i32 = arith.constant 241 : i32
    %401 = tpu.dynamic_rotate %400 by %c241_i32 dim 1 : vector<2x256xf32>, i32 -> vector<2x256xf32>
    %c30_80 = arith.constant 30 : index
    %c0_81 = arith.constant 0 : index
    %402 = vector.load %arg5[%c30_80, %c0_81] : memref<49x256xf32, #tpu.memory_space<vmem>>, vector<1x256xf32>
    %403 = vector.broadcast %402 : vector<1x256xf32> to vector<2x256xf32>
    %404 = arith.mulf %403, %401 : vector<2x256xf32>
    %405 = arith.addf %393, %404 : vector<2x256xf32>
    %c31 = arith.constant 31 : index
    %406 = memref.load %arg4[%c31] : memref<98xf32, #tpu.memory_space<smem>>
    %c80 = arith.constant 80 : index
    %407 = memref.load %arg4[%c80] : memref<98xf32, #tpu.memory_space<smem>>
    %408 = vector.broadcast %406 : f32 to vector<2x256xf32>
    %409 = arith.mulf %32, %408 : vector<2x256xf32>
    %410 = vector.broadcast %407 : f32 to vector<2x256xf32>
    %411 = arith.mulf %33, %410 : vector<2x256xf32>
    %412 = arith.addf %409, %411 : vector<2x256xf32>
    %c240_i32 = arith.constant 240 : i32
    %413 = tpu.dynamic_rotate %412 by %c240_i32 dim 1 : vector<2x256xf32>, i32 -> vector<2x256xf32>
    %c31_82 = arith.constant 31 : index
    %c0_83 = arith.constant 0 : index
    %414 = vector.load %arg5[%c31_82, %c0_83] : memref<49x256xf32, #tpu.memory_space<vmem>>, vector<1x256xf32>
    %415 = vector.broadcast %414 : vector<1x256xf32> to vector<2x256xf32>
    %416 = arith.mulf %415, %413 : vector<2x256xf32>
    %417 = arith.addf %405, %416 : vector<2x256xf32>
    %c32 = arith.constant 32 : index
    %418 = memref.load %arg4[%c32] : memref<98xf32, #tpu.memory_space<smem>>
    %c81 = arith.constant 81 : index
    %419 = memref.load %arg4[%c81] : memref<98xf32, #tpu.memory_space<smem>>
    %420 = vector.broadcast %418 : f32 to vector<2x256xf32>
    %421 = arith.mulf %32, %420 : vector<2x256xf32>
    %422 = vector.broadcast %419 : f32 to vector<2x256xf32>
    %423 = arith.mulf %33, %422 : vector<2x256xf32>
    %424 = arith.addf %421, %423 : vector<2x256xf32>
    %c239_i32 = arith.constant 239 : i32
    %425 = tpu.dynamic_rotate %424 by %c239_i32 dim 1 : vector<2x256xf32>, i32 -> vector<2x256xf32>
    %c32_84 = arith.constant 32 : index
    %c0_85 = arith.constant 0 : index
    %426 = vector.load %arg5[%c32_84, %c0_85] : memref<49x256xf32, #tpu.memory_space<vmem>>, vector<1x256xf32>
    %427 = vector.broadcast %426 : vector<1x256xf32> to vector<2x256xf32>
    %428 = arith.mulf %427, %425 : vector<2x256xf32>
    %429 = arith.addf %417, %428 : vector<2x256xf32>
    %c33 = arith.constant 33 : index
    %430 = memref.load %arg4[%c33] : memref<98xf32, #tpu.memory_space<smem>>
    %c82 = arith.constant 82 : index
    %431 = memref.load %arg4[%c82] : memref<98xf32, #tpu.memory_space<smem>>
    %432 = vector.broadcast %430 : f32 to vector<2x256xf32>
    %433 = arith.mulf %32, %432 : vector<2x256xf32>
    %434 = vector.broadcast %431 : f32 to vector<2x256xf32>
    %435 = arith.mulf %33, %434 : vector<2x256xf32>
    %436 = arith.addf %433, %435 : vector<2x256xf32>
    %c238_i32 = arith.constant 238 : i32
    %437 = tpu.dynamic_rotate %436 by %c238_i32 dim 1 : vector<2x256xf32>, i32 -> vector<2x256xf32>
    %c33_86 = arith.constant 33 : index
    %c0_87 = arith.constant 0 : index
    %438 = vector.load %arg5[%c33_86, %c0_87] : memref<49x256xf32, #tpu.memory_space<vmem>>, vector<1x256xf32>
    %439 = vector.broadcast %438 : vector<1x256xf32> to vector<2x256xf32>
    %440 = arith.mulf %439, %437 : vector<2x256xf32>
    %441 = arith.addf %429, %440 : vector<2x256xf32>
    %c34 = arith.constant 34 : index
    %442 = memref.load %arg4[%c34] : memref<98xf32, #tpu.memory_space<smem>>
    %c83 = arith.constant 83 : index
    %443 = memref.load %arg4[%c83] : memref<98xf32, #tpu.memory_space<smem>>
    %444 = vector.broadcast %442 : f32 to vector<2x256xf32>
    %445 = arith.mulf %32, %444 : vector<2x256xf32>
    %446 = vector.broadcast %443 : f32 to vector<2x256xf32>
    %447 = arith.mulf %33, %446 : vector<2x256xf32>
    %448 = arith.addf %445, %447 : vector<2x256xf32>
    %c237_i32 = arith.constant 237 : i32
    %449 = tpu.dynamic_rotate %448 by %c237_i32 dim 1 : vector<2x256xf32>, i32 -> vector<2x256xf32>
    %c34_88 = arith.constant 34 : index
    %c0_89 = arith.constant 0 : index
    %450 = vector.load %arg5[%c34_88, %c0_89] : memref<49x256xf32, #tpu.memory_space<vmem>>, vector<1x256xf32>
    %451 = vector.broadcast %450 : vector<1x256xf32> to vector<2x256xf32>
    %452 = arith.mulf %451, %449 : vector<2x256xf32>
    %453 = arith.addf %441, %452 : vector<2x256xf32>
    %c35 = arith.constant 35 : index
    %454 = memref.load %arg4[%c35] : memref<98xf32, #tpu.memory_space<smem>>
    %c84 = arith.constant 84 : index
    %455 = memref.load %arg4[%c84] : memref<98xf32, #tpu.memory_space<smem>>
    %456 = vector.broadcast %454 : f32 to vector<2x256xf32>
    %457 = arith.mulf %32, %456 : vector<2x256xf32>
    %458 = vector.broadcast %455 : f32 to vector<2x256xf32>
    %459 = arith.mulf %33, %458 : vector<2x256xf32>
    %460 = arith.addf %457, %459 : vector<2x256xf32>
    %c227_i32 = arith.constant 227 : i32
    %461 = tpu.dynamic_rotate %460 by %c227_i32 dim 1 : vector<2x256xf32>, i32 -> vector<2x256xf32>
    %c35_90 = arith.constant 35 : index
    %c0_91 = arith.constant 0 : index
    %462 = vector.load %arg5[%c35_90, %c0_91] : memref<49x256xf32, #tpu.memory_space<vmem>>, vector<1x256xf32>
    %463 = vector.broadcast %462 : vector<1x256xf32> to vector<2x256xf32>
    %464 = arith.mulf %463, %461 : vector<2x256xf32>
    %465 = arith.addf %453, %464 : vector<2x256xf32>
    %c36 = arith.constant 36 : index
    %466 = memref.load %arg4[%c36] : memref<98xf32, #tpu.memory_space<smem>>
    %c85 = arith.constant 85 : index
    %467 = memref.load %arg4[%c85] : memref<98xf32, #tpu.memory_space<smem>>
    %468 = vector.broadcast %466 : f32 to vector<2x256xf32>
    %469 = arith.mulf %32, %468 : vector<2x256xf32>
    %470 = vector.broadcast %467 : f32 to vector<2x256xf32>
    %471 = arith.mulf %33, %470 : vector<2x256xf32>
    %472 = arith.addf %469, %471 : vector<2x256xf32>
    %c226_i32 = arith.constant 226 : i32
    %473 = tpu.dynamic_rotate %472 by %c226_i32 dim 1 : vector<2x256xf32>, i32 -> vector<2x256xf32>
    %c36_92 = arith.constant 36 : index
    %c0_93 = arith.constant 0 : index
    %474 = vector.load %arg5[%c36_92, %c0_93] : memref<49x256xf32, #tpu.memory_space<vmem>>, vector<1x256xf32>
    %475 = vector.broadcast %474 : vector<1x256xf32> to vector<2x256xf32>
    %476 = arith.mulf %475, %473 : vector<2x256xf32>
    %477 = arith.addf %465, %476 : vector<2x256xf32>
    %c37 = arith.constant 37 : index
    %478 = memref.load %arg4[%c37] : memref<98xf32, #tpu.memory_space<smem>>
    %c86 = arith.constant 86 : index
    %479 = memref.load %arg4[%c86] : memref<98xf32, #tpu.memory_space<smem>>
    %480 = vector.broadcast %478 : f32 to vector<2x256xf32>
    %481 = arith.mulf %32, %480 : vector<2x256xf32>
    %482 = vector.broadcast %479 : f32 to vector<2x256xf32>
    %483 = arith.mulf %33, %482 : vector<2x256xf32>
    %484 = arith.addf %481, %483 : vector<2x256xf32>
    %c225_i32 = arith.constant 225 : i32
    %485 = tpu.dynamic_rotate %484 by %c225_i32 dim 1 : vector<2x256xf32>, i32 -> vector<2x256xf32>
    %c37_94 = arith.constant 37 : index
    %c0_95 = arith.constant 0 : index
    %486 = vector.load %arg5[%c37_94, %c0_95] : memref<49x256xf32, #tpu.memory_space<vmem>>, vector<1x256xf32>
    %487 = vector.broadcast %486 : vector<1x256xf32> to vector<2x256xf32>
    %488 = arith.mulf %487, %485 : vector<2x256xf32>
    %489 = arith.addf %477, %488 : vector<2x256xf32>
    %c38 = arith.constant 38 : index
    %490 = memref.load %arg4[%c38] : memref<98xf32, #tpu.memory_space<smem>>
    %c87 = arith.constant 87 : index
    %491 = memref.load %arg4[%c87] : memref<98xf32, #tpu.memory_space<smem>>
    %492 = vector.broadcast %490 : f32 to vector<2x256xf32>
    %493 = arith.mulf %32, %492 : vector<2x256xf32>
    %494 = vector.broadcast %491 : f32 to vector<2x256xf32>
    %495 = arith.mulf %33, %494 : vector<2x256xf32>
    %496 = arith.addf %493, %495 : vector<2x256xf32>
    %c224_i32 = arith.constant 224 : i32
    %497 = tpu.dynamic_rotate %496 by %c224_i32 dim 1 : vector<2x256xf32>, i32 -> vector<2x256xf32>
    %c38_96 = arith.constant 38 : index
    %c0_97 = arith.constant 0 : index
    %498 = vector.load %arg5[%c38_96, %c0_97] : memref<49x256xf32, #tpu.memory_space<vmem>>, vector<1x256xf32>
    %499 = vector.broadcast %498 : vector<1x256xf32> to vector<2x256xf32>
    %500 = arith.mulf %499, %497 : vector<2x256xf32>
    %501 = arith.addf %489, %500 : vector<2x256xf32>
    %c39 = arith.constant 39 : index
    %502 = memref.load %arg4[%c39] : memref<98xf32, #tpu.memory_space<smem>>
    %c88 = arith.constant 88 : index
    %503 = memref.load %arg4[%c88] : memref<98xf32, #tpu.memory_space<smem>>
    %504 = vector.broadcast %502 : f32 to vector<2x256xf32>
    %505 = arith.mulf %32, %504 : vector<2x256xf32>
    %506 = vector.broadcast %503 : f32 to vector<2x256xf32>
    %507 = arith.mulf %33, %506 : vector<2x256xf32>
    %508 = arith.addf %505, %507 : vector<2x256xf32>
    %c223_i32 = arith.constant 223 : i32
    %509 = tpu.dynamic_rotate %508 by %c223_i32 dim 1 : vector<2x256xf32>, i32 -> vector<2x256xf32>
    %c39_98 = arith.constant 39 : index
    %c0_99 = arith.constant 0 : index
    %510 = vector.load %arg5[%c39_98, %c0_99] : memref<49x256xf32, #tpu.memory_space<vmem>>, vector<1x256xf32>
    %511 = vector.broadcast %510 : vector<1x256xf32> to vector<2x256xf32>
    %512 = arith.mulf %511, %509 : vector<2x256xf32>
    %513 = arith.addf %501, %512 : vector<2x256xf32>
    %c40 = arith.constant 40 : index
    %514 = memref.load %arg4[%c40] : memref<98xf32, #tpu.memory_space<smem>>
    %c89 = arith.constant 89 : index
    %515 = memref.load %arg4[%c89] : memref<98xf32, #tpu.memory_space<smem>>
    %516 = vector.broadcast %514 : f32 to vector<2x256xf32>
    %517 = arith.mulf %32, %516 : vector<2x256xf32>
    %518 = vector.broadcast %515 : f32 to vector<2x256xf32>
    %519 = arith.mulf %33, %518 : vector<2x256xf32>
    %520 = arith.addf %517, %519 : vector<2x256xf32>
    %c222_i32 = arith.constant 222 : i32
    %521 = tpu.dynamic_rotate %520 by %c222_i32 dim 1 : vector<2x256xf32>, i32 -> vector<2x256xf32>
    %c40_100 = arith.constant 40 : index
    %c0_101 = arith.constant 0 : index
    %522 = vector.load %arg5[%c40_100, %c0_101] : memref<49x256xf32, #tpu.memory_space<vmem>>, vector<1x256xf32>
    %523 = vector.broadcast %522 : vector<1x256xf32> to vector<2x256xf32>
    %524 = arith.mulf %523, %521 : vector<2x256xf32>
    %525 = arith.addf %513, %524 : vector<2x256xf32>
    %c41 = arith.constant 41 : index
    %526 = memref.load %arg4[%c41] : memref<98xf32, #tpu.memory_space<smem>>
    %c90 = arith.constant 90 : index
    %527 = memref.load %arg4[%c90] : memref<98xf32, #tpu.memory_space<smem>>
    %528 = vector.broadcast %526 : f32 to vector<2x256xf32>
    %529 = arith.mulf %32, %528 : vector<2x256xf32>
    %530 = vector.broadcast %527 : f32 to vector<2x256xf32>
    %531 = arith.mulf %33, %530 : vector<2x256xf32>
    %532 = arith.addf %529, %531 : vector<2x256xf32>
    %c221_i32 = arith.constant 221 : i32
    %533 = tpu.dynamic_rotate %532 by %c221_i32 dim 1 : vector<2x256xf32>, i32 -> vector<2x256xf32>
    %c41_102 = arith.constant 41 : index
    %c0_103 = arith.constant 0 : index
    %534 = vector.load %arg5[%c41_102, %c0_103] : memref<49x256xf32, #tpu.memory_space<vmem>>, vector<1x256xf32>
    %535 = vector.broadcast %534 : vector<1x256xf32> to vector<2x256xf32>
    %536 = arith.mulf %535, %533 : vector<2x256xf32>
    %537 = arith.addf %525, %536 : vector<2x256xf32>
    %c42 = arith.constant 42 : index
    %538 = memref.load %arg4[%c42] : memref<98xf32, #tpu.memory_space<smem>>
    %c91 = arith.constant 91 : index
    %539 = memref.load %arg4[%c91] : memref<98xf32, #tpu.memory_space<smem>>
    %540 = vector.broadcast %538 : f32 to vector<2x256xf32>
    %541 = arith.mulf %32, %540 : vector<2x256xf32>
    %542 = vector.broadcast %539 : f32 to vector<2x256xf32>
    %543 = arith.mulf %33, %542 : vector<2x256xf32>
    %544 = arith.addf %541, %543 : vector<2x256xf32>
    %c211_i32 = arith.constant 211 : i32
    %545 = tpu.dynamic_rotate %544 by %c211_i32 dim 1 : vector<2x256xf32>, i32 -> vector<2x256xf32>
    %c42_104 = arith.constant 42 : index
    %c0_105 = arith.constant 0 : index
    %546 = vector.load %arg5[%c42_104, %c0_105] : memref<49x256xf32, #tpu.memory_space<vmem>>, vector<1x256xf32>
    %547 = vector.broadcast %546 : vector<1x256xf32> to vector<2x256xf32>
    %548 = arith.mulf %547, %545 : vector<2x256xf32>
    %549 = arith.addf %537, %548 : vector<2x256xf32>
    %c43 = arith.constant 43 : index
    %550 = memref.load %arg4[%c43] : memref<98xf32, #tpu.memory_space<smem>>
    %c92 = arith.constant 92 : index
    %551 = memref.load %arg4[%c92] : memref<98xf32, #tpu.memory_space<smem>>
    %552 = vector.broadcast %550 : f32 to vector<2x256xf32>
    %553 = arith.mulf %32, %552 : vector<2x256xf32>
    %554 = vector.broadcast %551 : f32 to vector<2x256xf32>
    %555 = arith.mulf %33, %554 : vector<2x256xf32>
    %556 = arith.addf %553, %555 : vector<2x256xf32>
    %c210_i32 = arith.constant 210 : i32
    %557 = tpu.dynamic_rotate %556 by %c210_i32 dim 1 : vector<2x256xf32>, i32 -> vector<2x256xf32>
    %c43_106 = arith.constant 43 : index
    %c0_107 = arith.constant 0 : index
    %558 = vector.load %arg5[%c43_106, %c0_107] : memref<49x256xf32, #tpu.memory_space<vmem>>, vector<1x256xf32>
    %559 = vector.broadcast %558 : vector<1x256xf32> to vector<2x256xf32>
    %560 = arith.mulf %559, %557 : vector<2x256xf32>
    %561 = arith.addf %549, %560 : vector<2x256xf32>
    %c44 = arith.constant 44 : index
    %562 = memref.load %arg4[%c44] : memref<98xf32, #tpu.memory_space<smem>>
    %c93 = arith.constant 93 : index
    %563 = memref.load %arg4[%c93] : memref<98xf32, #tpu.memory_space<smem>>
    %564 = vector.broadcast %562 : f32 to vector<2x256xf32>
    %565 = arith.mulf %32, %564 : vector<2x256xf32>
    %566 = vector.broadcast %563 : f32 to vector<2x256xf32>
    %567 = arith.mulf %33, %566 : vector<2x256xf32>
    %568 = arith.addf %565, %567 : vector<2x256xf32>
    %c209_i32 = arith.constant 209 : i32
    %569 = tpu.dynamic_rotate %568 by %c209_i32 dim 1 : vector<2x256xf32>, i32 -> vector<2x256xf32>
    %c44_108 = arith.constant 44 : index
    %c0_109 = arith.constant 0 : index
    %570 = vector.load %arg5[%c44_108, %c0_109] : memref<49x256xf32, #tpu.memory_space<vmem>>, vector<1x256xf32>
    %571 = vector.broadcast %570 : vector<1x256xf32> to vector<2x256xf32>
    %572 = arith.mulf %571, %569 : vector<2x256xf32>
    %573 = arith.addf %561, %572 : vector<2x256xf32>
    %c45 = arith.constant 45 : index
    %574 = memref.load %arg4[%c45] : memref<98xf32, #tpu.memory_space<smem>>
    %c94 = arith.constant 94 : index
    %575 = memref.load %arg4[%c94] : memref<98xf32, #tpu.memory_space<smem>>
    %576 = vector.broadcast %574 : f32 to vector<2x256xf32>
    %577 = arith.mulf %32, %576 : vector<2x256xf32>
    %578 = vector.broadcast %575 : f32 to vector<2x256xf32>
    %579 = arith.mulf %33, %578 : vector<2x256xf32>
    %580 = arith.addf %577, %579 : vector<2x256xf32>
    %c208_i32 = arith.constant 208 : i32
    %581 = tpu.dynamic_rotate %580 by %c208_i32 dim 1 : vector<2x256xf32>, i32 -> vector<2x256xf32>
    %c45_110 = arith.constant 45 : index
    %c0_111 = arith.constant 0 : index
    %582 = vector.load %arg5[%c45_110, %c0_111] : memref<49x256xf32, #tpu.memory_space<vmem>>, vector<1x256xf32>
    %583 = vector.broadcast %582 : vector<1x256xf32> to vector<2x256xf32>
    %584 = arith.mulf %583, %581 : vector<2x256xf32>
    %585 = arith.addf %573, %584 : vector<2x256xf32>
    %c46 = arith.constant 46 : index
    %586 = memref.load %arg4[%c46] : memref<98xf32, #tpu.memory_space<smem>>
    %c95 = arith.constant 95 : index
    %587 = memref.load %arg4[%c95] : memref<98xf32, #tpu.memory_space<smem>>
    %588 = vector.broadcast %586 : f32 to vector<2x256xf32>
    %589 = arith.mulf %32, %588 : vector<2x256xf32>
    %590 = vector.broadcast %587 : f32 to vector<2x256xf32>
    %591 = arith.mulf %33, %590 : vector<2x256xf32>
    %592 = arith.addf %589, %591 : vector<2x256xf32>
    %c207_i32 = arith.constant 207 : i32
    %593 = tpu.dynamic_rotate %592 by %c207_i32 dim 1 : vector<2x256xf32>, i32 -> vector<2x256xf32>
    %c46_112 = arith.constant 46 : index
    %c0_113 = arith.constant 0 : index
    %594 = vector.load %arg5[%c46_112, %c0_113] : memref<49x256xf32, #tpu.memory_space<vmem>>, vector<1x256xf32>
    %595 = vector.broadcast %594 : vector<1x256xf32> to vector<2x256xf32>
    %596 = arith.mulf %595, %593 : vector<2x256xf32>
    %597 = arith.addf %585, %596 : vector<2x256xf32>
    %c47 = arith.constant 47 : index
    %598 = memref.load %arg4[%c47] : memref<98xf32, #tpu.memory_space<smem>>
    %c96 = arith.constant 96 : index
    %599 = memref.load %arg4[%c96] : memref<98xf32, #tpu.memory_space<smem>>
    %600 = vector.broadcast %598 : f32 to vector<2x256xf32>
    %601 = arith.mulf %32, %600 : vector<2x256xf32>
    %602 = vector.broadcast %599 : f32 to vector<2x256xf32>
    %603 = arith.mulf %33, %602 : vector<2x256xf32>
    %604 = arith.addf %601, %603 : vector<2x256xf32>
    %c206_i32 = arith.constant 206 : i32
    %605 = tpu.dynamic_rotate %604 by %c206_i32 dim 1 : vector<2x256xf32>, i32 -> vector<2x256xf32>
    %c47_114 = arith.constant 47 : index
    %c0_115 = arith.constant 0 : index
    %606 = vector.load %arg5[%c47_114, %c0_115] : memref<49x256xf32, #tpu.memory_space<vmem>>, vector<1x256xf32>
    %607 = vector.broadcast %606 : vector<1x256xf32> to vector<2x256xf32>
    %608 = arith.mulf %607, %605 : vector<2x256xf32>
    %609 = arith.addf %597, %608 : vector<2x256xf32>
    %c48 = arith.constant 48 : index
    %610 = memref.load %arg4[%c48] : memref<98xf32, #tpu.memory_space<smem>>
    %c97 = arith.constant 97 : index
    %611 = memref.load %arg4[%c97] : memref<98xf32, #tpu.memory_space<smem>>
    %612 = vector.broadcast %610 : f32 to vector<2x256xf32>
    %613 = arith.mulf %32, %612 : vector<2x256xf32>
    %614 = vector.broadcast %611 : f32 to vector<2x256xf32>
    %615 = arith.mulf %33, %614 : vector<2x256xf32>
    %616 = arith.addf %613, %615 : vector<2x256xf32>
    %c205_i32 = arith.constant 205 : i32
    %617 = tpu.dynamic_rotate %616 by %c205_i32 dim 1 : vector<2x256xf32>, i32 -> vector<2x256xf32>
    %c48_116 = arith.constant 48 : index
    %c0_117 = arith.constant 0 : index
    %618 = vector.load %arg5[%c48_116, %c0_117] : memref<49x256xf32, #tpu.memory_space<vmem>>, vector<1x256xf32>
    %619 = vector.broadcast %618 : vector<1x256xf32> to vector<2x256xf32>
    %620 = arith.mulf %619, %617 : vector<2x256xf32>
    %621 = arith.addf %609, %620 : vector<2x256xf32>
    %622 = math.absf %621 : vector<2x256xf32>
    %cst_118 = arith.constant 0.000000e+00 : f32
    %623 = vector.broadcast %cst_118 : f32 to vector<2x256xf32>
    %624 = arith.subf %623, %622 : vector<2x256xf32>
    %625 = math.exp %624 : vector<2x256xf32>
    %cst_119 = arith.constant 1.000000e+00 : f32
    %626 = vector.broadcast %cst_119 : f32 to vector<2x256xf32>
    %627 = arith.addf %626, %625 : vector<2x256xf32>
    %628 = tpu.reciprocal %627 {approx = true} : vector<2x256xf32> -> vector<2x256xf32>
    %cst_120 = arith.constant 0.000000e+00 : f32
    %629 = vector.broadcast %cst_120 : f32 to vector<2x256xf32>
    %630 = arith.cmpf oge, %621, %629 : vector<2x256xf32>
    %cst_121 = arith.constant 1.000000e+00 : f32
    %631 = vector.broadcast %cst_121 : f32 to vector<2x256xf32>
    %632 = arith.subf %631, %628 : vector<2x256xf32>
    %633 = arith.select %630, %628, %632 : vector<2x256xi1>, vector<2x256xf32>
    %c0_122 = arith.constant 0 : index
    %c0_123 = arith.constant 0 : index
    %c0_124 = arith.constant 0 : index
    %634 = vector.load %arg1[%c0_122, %c0_123, %c0_124] : memref<2x32x256xf32, #tpu.memory_space<vmem>>, vector<2x32x256xf32>
    %635 = vector.shape_cast %26 : vector<2x32xf32> to vector<2x32x1xf32>
    %636 = vector.broadcast %635 : vector<2x32x1xf32> to vector<2x32x256xf32>
    %637 = arith.mulf %634, %636 : vector<2x32x256xf32>
    %638 = vector.shape_cast %633 : vector<2x256xf32> to vector<2x1x256xf32>
    %639 = vector.broadcast %638 : vector<2x1x256xf32> to vector<2x32x256xf32>
    %640 = arith.mulf %637, %639 : vector<2x32x256xf32>
    %c0_125 = arith.constant 0 : index
    %c0_126 = arith.constant 0 : index
    %c0_127 = arith.constant 0 : index
    %641 = vector.load %arg6[%c0_125, %c0_126, %c0_127] : memref<2x32x256xf32, #tpu.memory_space<vmem>>, vector<2x32x256xf32>
    tpu.vector_store %arg6[%c0_125, %c0_126, %c0_127], %640 {strides = array<i32>} : memref<2x32x256xf32, #tpu.memory_space<vmem>>, vector<2x32x256xf32>,
    return
  }
  func.func @transform_0(%arg0: i32) -> (i32, i32, i32) {
    %c0_i32 = arith.constant 0 : i32
    %c0_i32_0 = arith.constant 0 : i32
    %c0_i32_1 = arith.constant 0 : i32
    return %arg0, %c0_i32, %c0_i32_0 : i32, i32, i32
  }
  func.func @transform_1(%arg0: i32) -> (i32, i32) {
    %c0_i32 = arith.constant 0 : i32
    %c0_i32_0 = arith.constant 0 : i32
    %c0_i32_1 = arith.constant 0 : i32
    return %c0_i32, %c0_i32_0 : i32, i32
  }
  func.func @transform_2(%arg0: i32) -> (i32, i32) {
    %c0_i32 = arith.constant 0 : i32
    %c0_i32_0 = arith.constant 0 : i32
    %c0_i32_1 = arith.constant 0 : i32
    return %c0_i32, %c0_i32_0 : i32, i32
  }
  func.func @transform_3(%arg0: i32) -> i32 {
    %c0_i32 = arith.constant 0 : i32
    %c0_i32_0 = arith.constant 0 : i32
    return %c0_i32 : i32
  }
  func.func @transform_4(%arg0: i32) -> (i32, i32) {
    %c0_i32 = arith.constant 0 : i32
    %c0_i32_0 = arith.constant 0 : i32
    %c0_i32_1 = arith.constant 0 : i32
    return %c0_i32, %c0_i32_0 : i32, i32
  }
  func.func @transform_5(%arg0: i32) -> (i32, i32, i32) {
    %c0_i32 = arith.constant 0 : i32
    %c0_i32_0 = arith.constant 0 : i32
    %c0_i32_1 = arith.constant 0 : i32
    return %arg0, %c0_i32, %c0_i32_0 : i32, i32, i32
  }
}

</mosaic_0001>

<llo_original>
// kernel: tpu_custom_call.1
$region0: #{tpu_custom_call.1}
  #allocation0 [shape = 'u32[]', space=smem, size = 0x4, offset = 0x4, fixed_abs, tag = 'smem constant byte address 0x4 - core index']
  #allocation1 [shape = 'u32[144,128]{1,0:T(1,128)}', space=vmem, size = 0x12000, scoped, tag = 'internal scratch']
  %s0 = inlined_call_operand.hbm [shape: f32[2,32,256], index: 0, kind: input, shape index: {}]
  %s1 = inlined_call_operand.vmem [shape: f32[32,2], index: 1, kind: input, shape index: {}]
  %s2 = inlined_call_operand.vmem [shape: f32[2,32], index: 2, kind: input, shape index: {}]
  %s3 = inlined_call_operand.vmem [shape: f32[98], index: 3, kind: input, shape index: {}]
  %s4 = inlined_call_operand.hbm [shape: f32[49,256], index: 4, kind: input, shape index: {}]
  %s5 = inlined_call_operand.hbm [shape: f32[2,32,256], index: 5, kind: output, shape index: {}]
  %s6 = sld [smem:[#allocation0]]
  $region42: #{tpu_custom_call.1} parent=0
    _
  %s8 = ssub.s32 1, %s6
  %s9 = scalar_select 0, %s8, %s6
  $region1: #{tpu_custom_call.1} parent=0
    #allocation2 [shape = 'u8[65536]{0}', space=vmem, size = 0x10000, scoped, tag = 'input window, operand 0, single buffered']
    #allocation3 [shape = 's32[1]{0}', space=sflag, size = 0x4, scoped, tag = 'scoped memory for tpu_custom_call.1']
    #allocation4 [shape = 's32[1]{0}', space=sflag, size = 0x4, scoped, tag = 'scoped memory for tpu_custom_call.1']
    #allocation5 [shape = 's32[1]{0}', space=sflag, size = 0x4, scoped, tag = 'scoped memory for tpu_custom_call.1']
    #allocation6 [shape = 'u8[512]{0}', space=smem, size = 0x200, scoped, tag = 'input window, operand 3, single buffered']
    #allocation7 [shape = 'u8[57344]{0}', space=vmem, size = 0xe000, scoped, tag = 'input window, operand 4, single buffered']
    #allocation8 [shape = 's32[1]{0}', space=sflag, size = 0x4, scoped, tag = 'scoped memory for tpu_custom_call.1']
    #allocation9 [shape = 'u8[65536]{0}', space=vmem, size = 0x10000, scoped, tag = 'output window, operand 0, single buffered']
    %10 = vsyncpa [#allocation3], 0
    %11 = vsyncpa [#allocation5], 0
    %12 = vsyncpa [#allocation8], 0
    %13 = vsyncpa [#allocation4], 0
    // Predicated region
    $region2: #{tpu_custom_call.1} parent=1 // pred_check
      _
    $region3: #{tpu_custom_call.1} parent=1 // pred_check_branch
      %15 = sbr.rel (0) target = $region5
    $region4: #{tpu_custom_call.1} parent=1 // pred_region
      %s17 = ssub.s32 2048, 2048
      %18 = vsyncadd [#allocation3], %s17
      %s19 = sshll.u32 [#allocation2], 4
      %s20 = int_to_ptr.vmem [resolvable:$true] %s19
      %25 = dma.hbm_to_vmem [thread:$0]  %s0, 2048, %s20, [#allocation3], 256, 256, 16
    $region5: #{tpu_custom_call.1} parent=1 // pred_fallthru
      _
    // Predicated region
    $region6: #{tpu_custom_call.1} parent=1 // pred_check
      _
    $region7: #{tpu_custom_call.1} parent=1 // pred_check_branch
      %27 = sbr.rel (0) target = $region9
    $region8: #{tpu_custom_call.1} parent=1 // pred_region
      _
    $region9: #{tpu_custom_call.1} parent=1 // pred_fallthru
      _
    // Predicated region
    $region10: #{tpu_custom_call.1} parent=1 // pred_check
      _
    $region11: #{tpu_custom_call.1} parent=1 // pred_check_branch
      %29 = sbr.rel (0) target = $region13
    $region12: #{tpu_custom_call.1} parent=1 // pred_region
      _
    $region13: #{tpu_custom_call.1} parent=1 // pred_fallthru
      _
    // Predicated region
    $region14: #{tpu_custom_call.1} parent=1 // pred_check
      _
    $region15: #{tpu_custom_call.1} parent=1 // pred_check_branch
      %31 = sbr.rel (0) target = $region17
    $region16: #{tpu_custom_call.1} parent=1 // pred_region
      %s33 = ssub.s32 16, 16
      %34 = vsyncadd [#allocation5], %s33
      %s36 = sshll.u32 %s3, 4
      %s37 = int_to_ptr.vmem [resolvable:$true] %s36
      %39 = dma.vmem_to_smem %s37, 16, [#allocation6], [#allocation5]
    $region17: #{tpu_custom_call.1} parent=1 // pred_fallthru
      _
    // Predicated region
    $region18: #{tpu_custom_call.1} parent=1 // pred_check
      _
    $region19: #{tpu_custom_call.1} parent=1 // pred_check_branch
      %41 = sbr.rel (0) target = $region21
    $region20: #{tpu_custom_call.1} parent=1 // pred_region
      %s43 = ssub.s32 1792, 1792
      %44 = vsyncadd [#allocation8], %s43
      %s45 = sshll.u32 [#allocation7], 4
      %s46 = int_to_ptr.vmem [resolvable:$true] %s45
      %51 = dma.hbm_to_vmem [thread:$0]  %s4, 1792, %s46, [#allocation8], 256, 256, 16
    $region21: #{tpu_custom_call.1} parent=1 // pred_fallthru
      _
    // Predicated region
    $region22: #{tpu_custom_call.1} parent=1 // pred_check
      _
    $region23: #{tpu_custom_call.1} parent=1 // pred_check_branch
      %53 = sbr.rel (0) target = $region25
    $region24: #{tpu_custom_call.1} parent=1 // pred_region
      %54 = dma.done [#allocation3], 2048
    $region25: #{tpu_custom_call.1} parent=1 // pred_fallthru
      _
    // Predicated region
    $region26: #{tpu_custom_call.1} parent=1 // pred_check
      _
    $region27: #{tpu_custom_call.1} parent=1 // pred_check_branch
      %56 = sbr.rel (0) target = $region29
    $region28: #{tpu_custom_call.1} parent=1 // pred_region
      %57 = dma.done [#allocation5], 16
    $region29: #{tpu_custom_call.1} parent=1 // pred_fallthru
      _
    // Predicated region
    $region30: #{tpu_custom_call.1} parent=1 // pred_check
      _
    $region31: #{tpu_custom_call.1} parent=1 // pred_check_branch
      %59 = sbr.rel (0) target = $region33
    $region32: #{tpu_custom_call.1} parent=1 // pred_region
      %60 = dma.done [#allocation8], 1792
    $region33: #{tpu_custom_call.1} parent=1 // pred_fallthru
      _
    %61 = sfence
    %v62 = vld [vmem:[#allocation2] sm:$0xff]
    %v63 = vld [vmem:[#allocation2 + $0x8] sm:$0xff]
    %v64 = vld [vmem:[#allocation2 + $0x10] sm:$0xff]
    %v65 = vld [vmem:[#allocation2 + $0x18] sm:$0xff]
    %v66 = vld [vmem:[#allocation2 + $0x20] sm:$0xff]
    %v67 = vld [vmem:[#allocation2 + $0x28] sm:$0xff]
    %v68 = vld [vmem:[#allocation2 + $0x30] sm:$0xff]
    %v69 = vld [vmem:[#allocation2 + $0x38] sm:$0xff]
    %v70 = vld [vmem:[#allocation2 + $0x40] sm:$0xff]
    %v71 = vld [vmem:[#allocation2 + $0x48] sm:$0xff]
    %v72 = vld [vmem:[#allocation2 + $0x50] sm:$0xff]
    %v73 = vld [vmem:[#allocation2 + $0x58] sm:$0xff]
    %v74 = vld [vmem:[#allocation2 + $0x60] sm:$0xff]
    %v75 = vld [vmem:[#allocation2 + $0x68] sm:$0xff]
    %v76 = vld [vmem:[#allocation2 + $0x70] sm:$0xff]
    %v77 = vld [vmem:[#allocation2 + $0x78] sm:$0xff]
    %v78 = vadd.f32 %v62, %v63
    %79 = vadd.xlane.f32.xlu0 %v78
    %v80 = vpop.xlane.xlu0 %79
    %v81 = vadd.f32 %v64, %v65
    %82 = vadd.xlane.f32.xlu0 %v81
    %v83 = vpop.xlane.xlu0 %82
    %v84 = vadd.f32 %v66, %v67
    %85 = vadd.xlane.f32.xlu0 %v84
    %v86 = vpop.xlane.xlu0 %85
    %v87 = vadd.f32 %v68, %v69
    %88 = vadd.xlane.f32.xlu0 %v87
    %v89 = vpop.xlane.xlu0 %88
    %v90 = vadd.f32 %v70, %v71
    %91 = vadd.xlane.f32.xlu0 %v90
    %v92 = vpop.xlane.xlu0 %91
    %v93 = vadd.f32 %v72, %v73
    %94 = vadd.xlane.f32.xlu0 %v93
    %v95 = vpop.xlane.xlu0 %94
    %v96 = vadd.f32 %v74, %v75
    %97 = vadd.xlane.f32.xlu0 %v96
    %v98 = vpop.xlane.xlu0 %97
    %v99 = vadd.f32 %v76, %v77
    %100 = vadd.xlane.f32.xlu0 %v99
    %v101 = vpop.xlane.xlu0 %100
    %v102 = vmul.f32 %v80, 0.00390625
    %v103 = vmul.f32 %v83, 0.00390625
    %v104 = vmul.f32 %v86, 0.00390625
    %v105 = vmul.f32 %v89, 0.00390625
    %v106 = vmul.f32 %v92, 0.00390625
    %v107 = vmul.f32 %v95, 0.00390625
    %v108 = vmul.f32 %v98, 0.00390625
    %v109 = vmul.f32 %v101, 0.00390625
    %v110 = vmax.f32 %v62, %v63
    %111 = vmax.xlane.f32.xlu0 %v110
    %v112 = vpop.xlane.xlu0 %111
    %v113 = vmax.f32 %v64, %v65
    %114 = vmax.xlane.f32.xlu0 %v113
    %v115 = vpop.xlane.xlu0 %114
    %v116 = vmax.f32 %v66, %v67
    %117 = vmax.xlane.f32.xlu0 %v116
    %v118 = vpop.xlane.xlu0 %117
    %v119 = vmax.f32 %v68, %v69
    %120 = vmax.xlane.f32.xlu0 %v119
    %v121 = vpop.xlane.xlu0 %120
    %v122 = vmax.f32 %v70, %v71
    %123 = vmax.xlane.f32.xlu0 %v122
    %v124 = vpop.xlane.xlu0 %123
    %v125 = vmax.f32 %v72, %v73
    %126 = vmax.xlane.f32.xlu0 %v125
    %v127 = vpop.xlane.xlu0 %126
    %v128 = vmax.f32 %v74, %v75
    %129 = vmax.xlane.f32.xlu0 %v128
    %v130 = vpop.xlane.xlu0 %129
    %v131 = vmax.f32 %v76, %v77
    %132 = vmax.xlane.f32.xlu0 %v131
    %v133 = vpop.xlane.xlu0 %132
    %v142 = vlaneseq
    %v143 = vand.u32 %v142, 127
    %v144 = vlaneseq
    %v145 = vshrl.u32 %v144, 7
    %v146 = vsub.s32 %v143, %v145
    %v147 = vrot.slane %v102, %v146
    %v148 = vadd.s32 %v143, 4294967288
    %v149 = vlaneseq
    %v150 = vshrl.u32 %v149, 7
    %v151 = vsub.s32 %v148, %v150
    %v152 = vrot.slane %v103, %v151
    %vm153 = vcmask 130112
    %v154 = vsel %vm153, %v152, %v147
    %v155 = vadd.s32 %v143, 4294967280
    %v156 = vlaneseq
    %v157 = vshrl.u32 %v156, 7
    %v158 = vsub.s32 %v155, %v157
    %v159 = vrot.slane %v104, %v158
    %vm160 = vcmask 195712
    %v161 = vsel %vm160, %v159, %v154
    %v162 = vadd.s32 %v143, 4294967272
    %v163 = vlaneseq
    %v164 = vshrl.u32 %v163, 7
    %v165 = vsub.s32 %v162, %v164
    %v166 = vrot.slane %v105, %v165
    %vm167 = vcmask 261312
    %v168 = vsel %vm167, %v166, %v161
    %v169 = vlaneseq
    %v170 = vshrl.u32 %v169, 7
    %v171 = vsub.s32 %v143, %v170
    %v172 = vrot.slane %v106, %v171
    %v173 = vlaneseq
    %v174 = vshrl.u32 %v173, 7
    %v175 = vsub.s32 %v148, %v174
    %v176 = vrot.slane %v107, %v175
    %v177 = vsel %vm153, %v176, %v172
    %v178 = vlaneseq
    %v179 = vshrl.u32 %v178, 7
    %v180 = vsub.s32 %v155, %v179
    %v181 = vrot.slane %v108, %v180
    %v182 = vsel %vm160, %v181, %v177
    %v183 = vlaneseq
    %v184 = vshrl.u32 %v183, 7
    %v185 = vsub.s32 %v162, %v184
    %v186 = vrot.slane %v109, %v185
    %v187 = vsel %vm167, %v186, %v182
    %vm188 = vcmask 1041409
    %v189 = vsel %vm188, %v187, %v168
    %v199 = vlaneseq
    %v200 = vshrl.u32 %v199, 7
    %v201 = vsub.s32 %v143, %v200
    %v202 = vrot.slane %v112, %v201
    %v203 = vlaneseq
    %v204 = vshrl.u32 %v203, 7
    %v205 = vsub.s32 %v148, %v204
    %v206 = vrot.slane %v115, %v205
    %v207 = vsel %vm153, %v206, %v202
    %v208 = vlaneseq
    %v209 = vshrl.u32 %v208, 7
    %v210 = vsub.s32 %v155, %v209
    %v211 = vrot.slane %v118, %v210
    %v212 = vsel %vm160, %v211, %v207
    %v213 = vlaneseq
    %v214 = vshrl.u32 %v213, 7
    %v215 = vsub.s32 %v162, %v214
    %v216 = vrot.slane %v121, %v215
    %v217 = vsel %vm167, %v216, %v212
    %v218 = vlaneseq
    %v219 = vshrl.u32 %v218, 7
    %v220 = vsub.s32 %v143, %v219
    %v221 = vrot.slane %v124, %v220
    %v222 = vlaneseq
    %v223 = vshrl.u32 %v222, 7
    %v224 = vsub.s32 %v148, %v223
    %v225 = vrot.slane %v127, %v224
    %v226 = vsel %vm153, %v225, %v221
    %v227 = vlaneseq
    %v228 = vshrl.u32 %v227, 7
    %v229 = vsub.s32 %v155, %v228
    %v230 = vrot.slane %v130, %v229
    %v231 = vsel %vm160, %v230, %v226
    %v232 = vlaneseq
    %v233 = vshrl.u32 %v232, 7
    %v234 = vsub.s32 %v162, %v233
    %v235 = vrot.slane %v133, %v234
    %v236 = vsel %vm167, %v235, %v231
    %vm237 = vcmask 1043459
    %v238 = vsel %vm237, %v236, %v217
    %vm240 = vcmask 1041408
    %v241 = vsel %vm240, %v189, %v238
    %v242 = vld [vmem:[%s1] sm:$0xff]
    %v243 = vld [vmem:[%s1 + $0x8] sm:$0xff]
    %v244 = vld [vmem:[%s1 + $0x10] sm:$0xff]
    %v245 = vld [vmem:[%s1 + $0x18] sm:$0xff]
    %vm246 = vcmask 261120
    %v248 = vsel %vm246, %v241, 0
    %250 = vmatprep.subr.mxu0 0.0
    %251 = vmatpush1.msra.mxu0 0.0
    %252 = vmatprep.subr.mxu0 0.0
    %253 = vmatpush1.msra.mxu0 0.0
    %254 = vmatprep.subr.mxu0 0.0
    %255 = vmatpush1.msra.mxu0 0.0
    %256 = vmatprep.subr.mxu0 0.0
    %257 = vmatpush1.msra.mxu0 0.0
    %258 = vmatprep.subr.mxu0 0.0
    %259 = vmatpush1.msra.mxu0 0.0
    %260 = vmatprep.subr.mxu0 0.0
    %261 = vmatpush1.msra.mxu0 0.0
    %262 = vmatprep.subr.mxu0 0.0
    %263 = vmatpush1.msra.mxu0 0.0
    %264 = vmatprep.subr.mxu0 0.0
    %265 = vmatpush1.msra.mxu0 0.0
    %266 = vmatprep.subr.mxu0 0.0
    %267 = vmatpush1.msra.mxu0 0.0
    %268 = vmatprep.subr.mxu0 0.0
    %269 = vmatpush1.msra.mxu0 0.0
    %270 = vmatprep.subr.mxu0 0.0
    %271 = vmatpush1.msra.mxu0 0.0
    %272 = vmatprep.subr.mxu0 0.0
    %273 = vmatpush1.msra.mxu0 0.0
    %274 = vmatprep.subr.mxu0 0.0
    %275 = vmatpush1.msra.mxu0 %v245
    %276 = vmatprep.subr.mxu0 0.0
    %277 = vmatpush1.msra.mxu0 %v244
    %278 = vmatprep.subr.mxu0 0.0
    %279 = vmatpush1.msra.mxu0 %v243
    %280 = vmatprep.subr.mxu0 0.0
    %281 = vmatpush1.msra.mxu0 %v242
    %282 = vmatprep.subr.mxu0 0.0
    %283 = vmatpush2.msra.mxu0 0.0
    %284 = vmatprep.subr.mxu0 0.0
    %285 = vmatpush2.msra.mxu0 0.0
    %286 = vmatprep.subr.mxu0 0.0
    %287 = vmatpush2.msra.mxu0 0.0
    %288 = vmatprep.subr.mxu0 0.0
    %289 = vmatpush2.msra.mxu0 0.0
    %290 = vmatprep.subr.mxu0 0.0
    %291 = vmatpush2.msra.mxu0 0.0
    %292 = vmatprep.subr.mxu0 0.0
    %293 = vmatpush2.msra.mxu0 0.0
    %294 = vmatprep.subr.mxu0 0.0
    %295 = vmatpush2.msra.mxu0 0.0
    %296 = vmatprep.subr.mxu0 0.0
    %297 = vmatpush2.msra.mxu0 0.0
    %298 = vmatprep.subr.mxu0 0.0
    %299 = vmatpush2.msra.mxu0 0.0
    %300 = vmatprep.subr.mxu0 0.0
    %301 = vmatpush2.msra.mxu0 0.0
    %302 = vmatprep.subr.mxu0 0.0
    %303 = vmatpush2.msra.mxu0 0.0
    %304 = vmatprep.subr.mxu0 0.0
    %305 = vmatpush2.msra.mxu0 0.0
    %306 = vmatprep.subr.mxu0 0.0
    %307 = vmatpush2.msra.mxu0 0.0
    %308 = vmatprep.subr.mxu0 0.0
    %309 = vmatpush2.msra.mxu0 0.0
    %310 = vmatprep.subr.mxu0 0.0
    %311 = vmatpush2.msra.mxu0 0.0
    %312 = vmatprep.subr.mxu0 0.0
    %313 = vmatpush2.msra.mxu0 0.0
    %314 = vmatprep.mubr.f32.mxu0 0.0
    %315 = vmatmul.mubr.f32.gmra.mxu0 %v248
    %v316 = vpop.f32.mrf.mxu0
    %v317 = vadd.f32 0.0, %v316
    %v318 = vpop.f32.mrf.mxu0
    %319 = vdwg.mxu0
    %v320 = vmax.f32 %v317, 0.0
    %v321 = vld [vmem:[%s2] sm:$0x3]
    %vm322 = vcmask 15360
    %v324 = vsel %vm322, %v320, 0
    %v327 = vsel %vm240, %v321, 0
    %329 = vmatprep.subr.mxu0 0.0
    %330 = vmatpush1.msra.mxu0 0.0
    %331 = vmatprep.subr.mxu0 0.0
    %332 = vmatpush1.msra.mxu0 0.0
    %333 = vmatprep.subr.mxu0 0.0
    %334 = vmatpush1.msra.mxu0 0.0
    %335 = vmatprep.subr.mxu0 0.0
    %336 = vmatpush1.msra.mxu0 0.0
    %337 = vmatprep.subr.mxu0 0.0
    %338 = vmatpush1.msra.mxu0 0.0
    %339 = vmatprep.subr.mxu0 0.0
    %340 = vmatpush1.msra.mxu0 0.0
    %341 = vmatprep.subr.mxu0 0.0
    %342 = vmatpush1.msra.mxu0 0.0
    %343 = vmatprep.subr.mxu0 0.0
    %344 = vmatpush1.msra.mxu0 0.0
    %345 = vmatprep.subr.mxu0 0.0
    %346 = vmatpush1.msra.mxu0 0.0
    %347 = vmatprep.subr.mxu0 0.0
    %348 = vmatpush1.msra.mxu0 0.0
    %349 = vmatprep.subr.mxu0 0.0
    %350 = vmatpush1.msra.mxu0 0.0
    %351 = vmatprep.subr.mxu0 0.0
    %352 = vmatpush1.msra.mxu0 0.0
    %353 = vmatprep.subr.mxu0 0.0
    %354 = vmatpush1.msra.mxu0 0.0
    %355 = vmatprep.subr.mxu0 0.0
    %356 = vmatpush1.msra.mxu0 0.0
    %357 = vmatprep.subr.mxu0 0.0
    %358 = vmatpush1.msra.mxu0 0.0
    %359 = vmatprep.subr.mxu0 0.0
    %360 = vmatpush1.msra.mxu0 %v327
    %361 = vmatprep.subr.mxu0 0.0
    %362 = vmatpush2.msra.mxu0 0.0
    %363 = vmatprep.subr.mxu0 0.0
    %364 = vmatpush2.msra.mxu0 0.0
    %365 = vmatprep.subr.mxu0 0.0
    %366 = vmatpush2.msra.mxu0 0.0
    %367 = vmatprep.subr.mxu0 0.0
    %368 = vmatpush2.msra.mxu0 0.0
    %369 = vmatprep.subr.mxu0 0.0
    %370 = vmatpush2.msra.mxu0 0.0
    %371 = vmatprep.subr.mxu0 0.0
    %372 = vmatpush2.msra.mxu0 0.0
    %373 = vmatprep.subr.mxu0 0.0
    %374 = vmatpush2.msra.mxu0 0.0
    %375 = vmatprep.subr.mxu0 0.0
    %376 = vmatpush2.msra.mxu0 0.0
    %377 = vmatprep.subr.mxu0 0.0
    %378 = vmatpush2.msra.mxu0 0.0
    %379 = vmatprep.subr.mxu0 0.0
    %380 = vmatpush2.msra.mxu0 0.0
    %381 = vmatprep.subr.mxu0 0.0
    %382 = vmatpush2.msra.mxu0 0.0
    %383 = vmatprep.subr.mxu0 0.0
    %384 = vmatpush2.msra.mxu0 0.0
    %385 = vmatprep.subr.mxu0 0.0
    %386 = vmatpush2.msra.mxu0 0.0
    %387 = vmatprep.subr.mxu0 0.0
    %388 = vmatpush2.msra.mxu0 0.0
    %389 = vmatprep.subr.mxu0 0.0
    %390 = vmatpush2.msra.mxu0 0.0
    %391 = vmatprep.subr.mxu0 0.0
    %392 = vmatpush2.msra.mxu0 0.0
    %393 = vmatprep.mubr.f32.mxu0 0.0
    %394 = vmatmul.mubr.f32.gmra.mxu0 %v324
    %v395 = vpop.f32.mrf.mxu0
    %v396 = vadd.f32 0.0, %v395
    %v397 = vpop.f32.mrf.mxu0
    %398 = vdwg.mxu0
    %v400 = vrot.slane %v396, 2
    %v402 = vadd.f32 %v396, %v400
    %v403 = vand.u32 2147483647, %v402
    %v404 = vsub.f32 0.0, %v403
    %v405 = vmul.f32 %v404, 1.442695
    %v406 = vpow.pop %v405
    %v407 = vadd.f32 %v406, 1.0
    %v408 = vrcp.pop %v407
    %vm409 = vcmp.ge.f32.partialorder %v402, 0.0
    %v410 = vsub.f32 1.0, %v408
    %v411 = vsel %vm409, %v408, %v410
    %v412 = vlaneseq
    %v413 = vshrl.u32 %v412, 7
    %v414 = vsub.s32 0, %v413
    %v415 = vrot.slane %v411, %v414
    %417 = vbcast.lane.b32.xlu0 %v415, 256
    %v418 = vpop.permute.xlu0 %417
    %s420 = sor.u32 256, 8
    %421 = vbcast.lane.b32.xlu0 %v415, %s420
    %v422 = vpop.permute.xlu0 %421
    %s424 = sor.u32 256, 16
    %425 = vbcast.lane.b32.xlu0 %v415, %s424
    %v426 = vpop.permute.xlu0 %425
    %s428 = sor.u32 256, 24
    %429 = vbcast.lane.b32.xlu0 %v415, %s428
    %v430 = vpop.permute.xlu0 %429
    %v431 = vlaneseq
    %v432 = vshrl.u32 %v431, 7
    %v433 = vsub.s32 1, %v432
    %v434 = vrot.slane %v411, %v433
    %436 = vbcast.lane.b32.xlu0 %v434, 256
    %v437 = vpop.permute.xlu0 %436
    %s439 = sor.u32 256, 8
    %440 = vbcast.lane.b32.xlu0 %v434, %s439
    %v441 = vpop.permute.xlu0 %440
    %s443 = sor.u32 256, 16
    %444 = vbcast.lane.b32.xlu0 %v434, %s443
    %v445 = vpop.permute.xlu0 %444
    %s447 = sor.u32 256, 24
    %448 = vbcast.lane.b32.xlu0 %v434, %s447
    %v449 = vpop.permute.xlu0 %448
    %v450 = vmul.f32 %v62, %v418
    %v451 = vmul.f32 %v63, %v418
    %v452 = vmul.f32 %v64, %v422
    %v453 = vmul.f32 %v65, %v422
    %v454 = vmul.f32 %v66, %v426
    %v455 = vmul.f32 %v67, %v426
    %v456 = vmul.f32 %v68, %v430
    %v457 = vmul.f32 %v69, %v430
    %v458 = vmul.f32 %v70, %v437
    %v459 = vmul.f32 %v71, %v437
    %v460 = vmul.f32 %v72, %v441
    %v461 = vmul.f32 %v73, %v441
    %v462 = vmul.f32 %v74, %v445
    %v463 = vmul.f32 %v75, %v445
    %v464 = vmul.f32 %v76, %v449
    %v465 = vmul.f32 %v77, %v449
    %v466 = vadd.f32 %v450, %v452
    %v467 = vadd.f32 %v466, %v454
    %v468 = vadd.f32 %v467, %v456
    %v469 = vrot.slane %v468, 4
    %v470 = vadd.f32 %v468, %v469
    %v471 = vrot.slane %v470, 2
    %v472 = vadd.f32 %v470, %v471
    %v473 = vrot.slane %v472, 1
    %v474 = vadd.f32 %v472, %v473
    %v475 = vadd.f32 %v451, %v453
    %v476 = vadd.f32 %v475, %v455
    %v477 = vadd.f32 %v476, %v457
    %v478 = vrot.slane %v477, 4
    %v479 = vadd.f32 %v477, %v478
    %v480 = vrot.slane %v479, 2
    %v481 = vadd.f32 %v479, %v480
    %v482 = vrot.slane %v481, 1
    %v483 = vadd.f32 %v481, %v482
    %v484 = vadd.f32 %v458, %v460
    %v485 = vadd.f32 %v484, %v462
    %v486 = vadd.f32 %v485, %v464
    %v487 = vrot.slane %v486, 4
    %v488 = vadd.f32 %v486, %v487
    %v489 = vrot.slane %v488, 2
    %v490 = vadd.f32 %v488, %v489
    %v491 = vrot.slane %v490, 1
    %v492 = vadd.f32 %v490, %v491
    %v493 = vadd.f32 %v459, %v461
    %v494 = vadd.f32 %v493, %v463
    %v495 = vadd.f32 %v494, %v465
    %v496 = vrot.slane %v495, 4
    %v497 = vadd.f32 %v495, %v496
    %v498 = vrot.slane %v497, 2
    %v499 = vadd.f32 %v497, %v498
    %v500 = vrot.slane %v499, 1
    %v501 = vadd.f32 %v499, %v500
    %v502 = vmul.f32 %v474, 0.03125
    %v503 = vmul.f32 %v483, 0.03125
    %v504 = vmul.f32 %v492, 0.03125
    %v505 = vmul.f32 %v501, 0.03125
    %v506 = vmax.f32 %v450, %v452
    %v507 = vmax.f32 %v506, %v454
    %v508 = vmax.f32 %v507, %v456
    %v509 = vrot.slane %v508, 4
    %v510 = vmax.f32 %v508, %v509
    %v511 = vrot.slane %v510, 2
    %v512 = vmax.f32 %v510, %v511
    %v513 = vrot.slane %v512, 1
    %v514 = vmax.f32 %v512, %v513
    %v515 = vmax.f32 %v451, %v453
    %v516 = vmax.f32 %v515, %v455
    %v517 = vmax.f32 %v516, %v457
    %v518 = vrot.slane %v517, 4
    %v519 = vmax.f32 %v517, %v518
    %v520 = vrot.slane %v519, 2
    %v521 = vmax.f32 %v519, %v520
    %v522 = vrot.slane %v521, 1
    %v523 = vmax.f32 %v521, %v522
    %v524 = vmax.f32 %v458, %v460
    %v525 = vmax.f32 %v524, %v462
    %v526 = vmax.f32 %v525, %v464
    %v527 = vrot.slane %v526, 4
    %v528 = vmax.f32 %v526, %v527
    %v529 = vrot.slane %v528, 2
    %v530 = vmax.f32 %v528, %v529
    %v531 = vrot.slane %v530, 1
    %v532 = vmax.f32 %v530, %v531
    %v533 = vmax.f32 %v459, %v461
    %v534 = vmax.f32 %v533, %v463
    %v535 = vmax.f32 %v534, %v465
    %v536 = vrot.slane %v535, 4
    %v537 = vmax.f32 %v535, %v536
    %v538 = vrot.slane %v537, 2
    %v539 = vmax.f32 %v537, %v538
    %v540 = vrot.slane %v539, 1
    %v541 = vmax.f32 %v539, %v540
    %s542 = sld [smem:[#allocation6]]
    %s543 = sld [smem:[#allocation6 + $0x31]]
    %v544 = vstv %s542
    %v545 = vmul.f32 %v502, %v544
    %v546 = vmul.f32 %v503, %v544
    %v547 = vmul.f32 %v504, %v544
    %v548 = vmul.f32 %v505, %v544
    %v549 = vstv %s543
    %v550 = vmul.f32 %v514, %v549
    %v551 = vmul.f32 %v523, %v549
    %v552 = vmul.f32 %v532, %v549
    %v553 = vmul.f32 %v541, %v549
    %v554 = vadd.f32 %v545, %v550
    %v555 = vadd.f32 %v546, %v551
    %v556 = vadd.f32 %v547, %v552
    %v557 = vadd.f32 %v548, %v553
    %v562 = vsel %vm188, %v556, %v554
    %v563 = vsel %vm188, %v557, %v555
    %566 = vrot.lane.b32.xlu0 %v562, 51
    %v567 = vpop.permute.xlu0 %566
    %568 = vrot.lane.b32.xlu0 %v563, 51
    %v569 = vpop.permute.xlu0 %568
    %vm570 = vcmp.lt.s32.totalorder %v143, 51
    %v571 = vsel %vm570, %v567, %v569
    %v572 = vsel %vm570, %v569, %v567
    %v573 = vld [vmem:[#allocation7] ss:$8 sm:$0x3]
    %v575 = vlaneseq
    %v576 = vshrl.u32 %v575, 7
    %v577 = vsub.s32 0, %v576
    %v578 = vrot.slane %v573, %v577
    %v579 = vlaneseq
    %v580 = vshrl.u32 %v579, 7
    %v581 = vsub.s32 1, %v580
    %v582 = vrot.slane %v573, %v581
    %v585 = vmul.f32 %v578, %v572
    %v586 = vmul.f32 %v582, %v571
    %v587 = vadd.f32 %v585, 0.0
    %v588 = vadd.f32 %v586, 0.0
    %s589 = sld [smem:[#allocation6 + $0x1]]
    %s590 = sld [smem:[#allocation6 + $0x32]]
    %v591 = vstv %s589
    %v592 = vmul.f32 %v502, %v591
    %v593 = vmul.f32 %v503, %v591
    %v594 = vmul.f32 %v504, %v591
    %v595 = vmul.f32 %v505, %v591
    %v596 = vstv %s590
    %v597 = vmul.f32 %v514, %v596
    %v598 = vmul.f32 %v523, %v596
    %v599 = vmul.f32 %v532, %v596
    %v600 = vmul.f32 %v541, %v596
    %v601 = vadd.f32 %v592, %v597
    %v602 = vadd.f32 %v593, %v598
    %v603 = vadd.f32 %v594, %v599
    %v604 = vadd.f32 %v595, %v600
    %v609 = vsel %vm188, %v603, %v601
    %v610 = vsel %vm188, %v604, %v602
    %613 = vrot.lane.b32.xlu0 %v609, 50
    %v614 = vpop.permute.xlu0 %613
    %615 = vrot.lane.b32.xlu0 %v610, 50
    %v616 = vpop.permute.xlu0 %615
    %vm617 = vcmp.lt.s32.totalorder %v143, 50
    %v618 = vsel %vm617, %v614, %v616
    %v619 = vsel %vm617, %v616, %v614
    %s620 = scalar_lea.vmem [#allocation7], 1
    %v621 = vld [vmem:[%s620] ss:$8 sm:$0x3]
    %v623 = vlaneseq
    %v624 = vshrl.u32 %v623, 7
    %v625 = vsub.s32 0, %v624
    %v626 = vrot.slane %v621, %v625
    %v627 = vlaneseq
    %v628 = vshrl.u32 %v627, 7
    %v629 = vsub.s32 1, %v628
    %v630 = vrot.slane %v621, %v629
    %v633 = vmul.f32 %v626, %v619
    %v634 = vmul.f32 %v630, %v618
    %v635 = vadd.f32 %v587, %v633
    %v636 = vadd.f32 %v588, %v634
    %s637 = sld [smem:[#allocation6 + $0x2]]
    %s638 = sld [smem:[#allocation6 + $0x33]]
    %v639 = vstv %s637
    %v640 = vmul.f32 %v502, %v639
    %v641 = vmul.f32 %v503, %v639
    %v642 = vmul.f32 %v504, %v639
    %v643 = vmul.f32 %v505, %v639
    %v644 = vstv %s638
    %v645 = vmul.f32 %v514, %v644
    %v646 = vmul.f32 %v523, %v644
    %v647 = vmul.f32 %v532, %v644
    %v648 = vmul.f32 %v541, %v644
    %v649 = vadd.f32 %v640, %v645
    %v650 = vadd.f32 %v641, %v646
    %v651 = vadd.f32 %v642, %v647
    %v652 = vadd.f32 %v643, %v648
    %v657 = vsel %vm188, %v651, %v649
    %v658 = vsel %vm188, %v652, %v650
    %661 = vrot.lane.b32.xlu0 %v657, 49
    %v662 = vpop.permute.xlu0 %661
    %663 = vrot.lane.b32.xlu0 %v658, 49
    %v664 = vpop.permute.xlu0 %663
    %vm665 = vcmp.lt.s32.totalorder %v143, 49
    %v666 = vsel %vm665, %v662, %v664
    %v667 = vsel %vm665, %v664, %v662
    %s668 = scalar_lea.vmem [#allocation7], 2
    %v669 = vld [vmem:[%s668] ss:$8 sm:$0x3]
    %v671 = vlaneseq
    %v672 = vshrl.u32 %v671, 7
    %v673 = vsub.s32 0, %v672
    %v674 = vrot.slane %v669, %v673
    %v675 = vlaneseq
    %v676 = vshrl.u32 %v675, 7
    %v677 = vsub.s32 1, %v676
    %v678 = vrot.slane %v669, %v677
    %v681 = vmul.f32 %v674, %v667
    %v682 = vmul.f32 %v678, %v666
    %v683 = vadd.f32 %v635, %v681
    %v684 = vadd.f32 %v636, %v682
    %s685 = sld [smem:[#allocation6 + $0x3]]
    %s686 = sld [smem:[#allocation6 + $0x34]]
    %v687 = vstv %s685
    %v688 = vmul.f32 %v502, %v687
    %v689 = vmul.f32 %v503, %v687
    %v690 = vmul.f32 %v504, %v687
    %v691 = vmul.f32 %v505, %v687
    %v692 = vstv %s686
    %v693 = vmul.f32 %v514, %v692
    %v694 = vmul.f32 %v523, %v692
    %v695 = vmul.f32 %v532, %v692
    %v696 = vmul.f32 %v541, %v692
    %v697 = vadd.f32 %v688, %v693
    %v698 = vadd.f32 %v689, %v694
    %v699 = vadd.f32 %v690, %v695
    %v700 = vadd.f32 %v691, %v696
    %v705 = vsel %vm188, %v699, %v697
    %v706 = vsel %vm188, %v700, %v698
    %709 = vrot.lane.b32.xlu0 %v705, 48
    %v710 = vpop.permute.xlu0 %709
    %711 = vrot.lane.b32.xlu0 %v706, 48
    %v712 = vpop.permute.xlu0 %711
    %vm713 = vcmp.lt.s32.totalorder %v143, 48
    %v714 = vsel %vm713, %v710, %v712
    %v715 = vsel %vm713, %v712, %v710
    %s716 = scalar_lea.vmem [#allocation7], 3
    %v717 = vld [vmem:[%s716] ss:$8 sm:$0x3]
    %v719 = vlaneseq
    %v720 = vshrl.u32 %v719, 7
    %v721 = vsub.s32 0, %v720
    %v722 = vrot.slane %v717, %v721
    %v723 = vlaneseq
    %v724 = vshrl.u32 %v723, 7
    %v725 = vsub.s32 1, %v724
    %v726 = vrot.slane %v717, %v725
    %v729 = vmul.f32 %v722, %v715
    %v730 = vmul.f32 %v726, %v714
    %v731 = vadd.f32 %v683, %v729
    %v732 = vadd.f32 %v684, %v730
    %s733 = sld [smem:[#allocation6 + $0x4]]
    %s734 = sld [smem:[#allocation6 + $0x35]]
    %v735 = vstv %s733
    %v736 = vmul.f32 %v502, %v735
    %v737 = vmul.f32 %v503, %v735
    %v738 = vmul.f32 %v504, %v735
    %v739 = vmul.f32 %v505, %v735
    %v740 = vstv %s734
    %v741 = vmul.f32 %v514, %v740
    %v742 = vmul.f32 %v523, %v740
    %v743 = vmul.f32 %v532, %v740
    %v744 = vmul.f32 %v541, %v740
    %v745 = vadd.f32 %v736, %v741
    %v746 = vadd.f32 %v737, %v742
    %v747 = vadd.f32 %v738, %v743
    %v748 = vadd.f32 %v739, %v744
    %v753 = vsel %vm188, %v747, %v745
    %v754 = vsel %vm188, %v748, %v746
    %757 = vrot.lane.b32.xlu0 %v753, 47
    %v758 = vpop.permute.xlu0 %757
    %759 = vrot.lane.b32.xlu0 %v754, 47
    %v760 = vpop.permute.xlu0 %759
    %vm761 = vcmp.lt.s32.totalorder %v143, 47
    %v762 = vsel %vm761, %v758, %v760
    %v763 = vsel %vm761, %v760, %v758
    %s764 = scalar_lea.vmem [#allocation7], 4
    %v765 = vld [vmem:[%s764] ss:$8 sm:$0x3]
    %v767 = vlaneseq
    %v768 = vshrl.u32 %v767, 7
    %v769 = vsub.s32 0, %v768
    %v770 = vrot.slane %v765, %v769
    %v771 = vlaneseq
    %v772 = vshrl.u32 %v771, 7
    %v773 = vsub.s32 1, %v772
    %v774 = vrot.slane %v765, %v773
    %v777 = vmul.f32 %v770, %v763
    %v778 = vmul.f32 %v774, %v762
    %v779 = vadd.f32 %v731, %v777
    %v780 = vadd.f32 %v732, %v778
    %s781 = sld [smem:[#allocation6 + $0x5]]
    %s782 = sld [smem:[#allocation6 + $0x36]]
    %v783 = vstv %s781
    %v784 = vmul.f32 %v502, %v783
    %v785 = vmul.f32 %v503, %v783
    %v786 = vmul.f32 %v504, %v783
    %v787 = vmul.f32 %v505, %v783
    %v788 = vstv %s782
    %v789 = vmul.f32 %v514, %v788
    %v790 = vmul.f32 %v523, %v788
    %v791 = vmul.f32 %v532, %v788
    %v792 = vmul.f32 %v541, %v788
    %v793 = vadd.f32 %v784, %v789
    %v794 = vadd.f32 %v785, %v790
    %v795 = vadd.f32 %v786, %v791
    %v796 = vadd.f32 %v787, %v792
    %v801 = vsel %vm188, %v795, %v793
    %v802 = vsel %vm188, %v796, %v794
    %805 = vrot.lane.b32.xlu0 %v801, 46
    %v806 = vpop.permute.xlu0 %805
    %807 = vrot.lane.b32.xlu0 %v802, 46
    %v808 = vpop.permute.xlu0 %807
    %vm809 = vcmp.lt.s32.totalorder %v143, 46
    %v810 = vsel %vm809, %v806, %v808
    %v811 = vsel %vm809, %v808, %v806
    %s812 = scalar_lea.vmem [#allocation7], 5
    %v813 = vld [vmem:[%s812] ss:$8 sm:$0x3]
    %v815 = vlaneseq
    %v816 = vshrl.u32 %v815, 7
    %v817 = vsub.s32 0, %v816
    %v818 = vrot.slane %v813, %v817
    %v819 = vlaneseq
    %v820 = vshrl.u32 %v819, 7
    %v821 = vsub.s32 1, %v820
    %v822 = vrot.slane %v813, %v821
    %v825 = vmul.f32 %v818, %v811
    %v826 = vmul.f32 %v822, %v810
    %v827 = vadd.f32 %v779, %v825
    %v828 = vadd.f32 %v780, %v826
    %s829 = sld [smem:[#allocation6 + $0x6]]
    %s830 = sld [smem:[#allocation6 + $0x37]]
    %v831 = vstv %s829
    %v832 = vmul.f32 %v502, %v831
    %v833 = vmul.f32 %v503, %v831
    %v834 = vmul.f32 %v504, %v831
    %v835 = vmul.f32 %v505, %v831
    %v836 = vstv %s830
    %v837 = vmul.f32 %v514, %v836
    %v838 = vmul.f32 %v523, %v836
    %v839 = vmul.f32 %v532, %v836
    %v840 = vmul.f32 %v541, %v836
    %v841 = vadd.f32 %v832, %v837
    %v842 = vadd.f32 %v833, %v838
    %v843 = vadd.f32 %v834, %v839
    %v844 = vadd.f32 %v835, %v840
    %v849 = vsel %vm188, %v843, %v841
    %v850 = vsel %vm188, %v844, %v842
    %853 = vrot.lane.b32.xlu0 %v849, 45
    %v854 = vpop.permute.xlu0 %853
    %855 = vrot.lane.b32.xlu0 %v850, 45
    %v856 = vpop.permute.xlu0 %855
    %vm857 = vcmp.lt.s32.totalorder %v143, 45
    %v858 = vsel %vm857, %v854, %v856
    %v859 = vsel %vm857, %v856, %v854
    %s860 = scalar_lea.vmem [#allocation7], 6
    %v861 = vld [vmem:[%s860] ss:$8 sm:$0x3]
    %v863 = vlaneseq
    %v864 = vshrl.u32 %v863, 7
    %v865 = vsub.s32 0, %v864
    %v866 = vrot.slane %v861, %v865
    %v867 = vlaneseq
    %v868 = vshrl.u32 %v867, 7
    %v869 = vsub.s32 1, %v868
    %v870 = vrot.slane %v861, %v869
    %v873 = vmul.f32 %v866, %v859
    %v874 = vmul.f32 %v870, %v858
    %v875 = vadd.f32 %v827, %v873
    %v876 = vadd.f32 %v828, %v874
    %s877 = sld [smem:[#allocation6 + $0x7]]
    %s878 = sld [smem:[#allocation6 + $0x38]]
    %v879 = vstv %s877
    %v880 = vmul.f32 %v502, %v879
    %v881 = vmul.f32 %v503, %v879
    %v882 = vmul.f32 %v504, %v879
    %v883 = vmul.f32 %v505, %v879
    %v884 = vstv %s878
    %v885 = vmul.f32 %v514, %v884
    %v886 = vmul.f32 %v523, %v884
    %v887 = vmul.f32 %v532, %v884
    %v888 = vmul.f32 %v541, %v884
    %v889 = vadd.f32 %v880, %v885
    %v890 = vadd.f32 %v881, %v886
    %v891 = vadd.f32 %v882, %v887
    %v892 = vadd.f32 %v883, %v888
    %v897 = vsel %vm188, %v891, %v889
    %v898 = vsel %vm188, %v892, %v890
    %901 = vrot.lane.b32.xlu0 %v897, 35
    %v902 = vpop.permute.xlu0 %901
    %903 = vrot.lane.b32.xlu0 %v898, 35
    %v904 = vpop.permute.xlu0 %903
    %vm905 = vcmp.lt.s32.totalorder %v143, 35
    %v906 = vsel %vm905, %v902, %v904
    %v907 = vsel %vm905, %v904, %v902
    %s908 = scalar_lea.vmem [#allocation7], 7
    %v909 = vld [vmem:[%s908] ss:$8 sm:$0x3]
    %v911 = vlaneseq
    %v912 = vshrl.u32 %v911, 7
    %v913 = vsub.s32 0, %v912
    %v914 = vrot.slane %v909, %v913
    %v915 = vlaneseq
    %v916 = vshrl.u32 %v915, 7
    %v917 = vsub.s32 1, %v916
    %v918 = vrot.slane %v909, %v917
    %v921 = vmul.f32 %v914, %v907
    %v922 = vmul.f32 %v918, %v906
    %v923 = vadd.f32 %v875, %v921
    %v924 = vadd.f32 %v876, %v922
    %s925 = sld [smem:[#allocation6 + $0x8]]
    %s926 = sld [smem:[#allocation6 + $0x39]]
    %v927 = vstv %s925
    %v928 = vmul.f32 %v502, %v927
    %v929 = vmul.f32 %v503, %v927
    %v930 = vmul.f32 %v504, %v927
    %v931 = vmul.f32 %v505, %v927
    %v932 = vstv %s926
    %v933 = vmul.f32 %v514, %v932
    %v934 = vmul.f32 %v523, %v932
    %v935 = vmul.f32 %v532, %v932
    %v936 = vmul.f32 %v541, %v932
    %v937 = vadd.f32 %v928, %v933
    %v938 = vadd.f32 %v929, %v934
    %v939 = vadd.f32 %v930, %v935
    %v940 = vadd.f32 %v931, %v936
    %v945 = vsel %vm188, %v939, %v937
    %v946 = vsel %vm188, %v940, %v938
    %949 = vrot.lane.b32.xlu0 %v945, 34
    %v950 = vpop.permute.xlu0 %949
    %951 = vrot.lane.b32.xlu0 %v946, 34
    %v952 = vpop.permute.xlu0 %951
    %vm953 = vcmp.lt.s32.totalorder %v143, 34
    %v954 = vsel %vm953, %v950, %v952
    %v955 = vsel %vm953, %v952, %v950
    %s956 = scalar_lea.vmem [#allocation7], 16
    %v957 = vld [vmem:[%s956] ss:$8 sm:$0x3]
    %v959 = vlaneseq
    %v960 = vshrl.u32 %v959, 7
    %v961 = vsub.s32 0, %v960
    %v962 = vrot.slane %v957, %v961
    %v963 = vlaneseq
    %v964 = vshrl.u32 %v963, 7
    %v965 = vsub.s32 1, %v964
    %v966 = vrot.slane %v957, %v965
    %v969 = vmul.f32 %v962, %v955
    %v970 = vmul.f32 %v966, %v954
    %v971 = vadd.f32 %v923, %v969
    %v972 = vadd.f32 %v924, %v970
    %s973 = sld [smem:[#allocation6 + $0x9]]
    %s974 = sld [smem:[#allocation6 + $0x3a]]
    %v975 = vstv %s973
    %v976 = vmul.f32 %v502, %v975
    %v977 = vmul.f32 %v503, %v975
    %v978 = vmul.f32 %v504, %v975
    %v979 = vmul.f32 %v505, %v975
    %v980 = vstv %s974
    %v981 = vmul.f32 %v514, %v980
    %v982 = vmul.f32 %v523, %v980
    %v983 = vmul.f32 %v532, %v980
    %v984 = vmul.f32 %v541, %v980
    %v985 = vadd.f32 %v976, %v981
    %v986 = vadd.f32 %v977, %v982
    %v987 = vadd.f32 %v978, %v983
    %v988 = vadd.f32 %v979, %v984
    %v993 = vsel %vm188, %v987, %v985
    %v994 = vsel %vm188, %v988, %v986
    %997 = vrot.lane.b32.xlu0 %v993, 33
    %v998 = vpop.permute.xlu0 %997
    %999 = vrot.lane.b32.xlu0 %v994, 33
    %v1000 = vpop.permute.xlu0 %999
    %vm1001 = vcmp.lt.s32.totalorder %v143, 33
    %v1002 = vsel %vm1001, %v998, %v1000
    %v1003 = vsel %vm1001, %v1000, %v998
    %s1004 = scalar_lea.vmem [#allocation7], 17
    %v1005 = vld [vmem:[%s1004] ss:$8 sm:$0x3]
    %v1007 = vlaneseq
    %v1008 = vshrl.u32 %v1007, 7
    %v1009 = vsub.s32 0, %v1008
    %v1010 = vrot.slane %v1005, %v1009
    %v1011 = vlaneseq
    %v1012 = vshrl.u32 %v1011, 7
    %v1013 = vsub.s32 1, %v1012
    %v1014 = vrot.slane %v1005, %v1013
    %v1017 = vmul.f32 %v1010, %v1003
    %v1018 = vmul.f32 %v1014, %v1002
    %v1019 = vadd.f32 %v971, %v1017
    %v1020 = vadd.f32 %v972, %v1018
    %s1021 = sld [smem:[#allocation6 + $0xa]]
    %s1022 = sld [smem:[#allocation6 + $0x3b]]
    %v1023 = vstv %s1021
    %v1024 = vmul.f32 %v502, %v1023
    %v1025 = vmul.f32 %v503, %v1023
    %v1026 = vmul.f32 %v504, %v1023
    %v1027 = vmul.f32 %v505, %v1023
    %v1028 = vstv %s1022
    %v1029 = vmul.f32 %v514, %v1028
    %v1030 = vmul.f32 %v523, %v1028
    %v1031 = vmul.f32 %v532, %v1028
    %v1032 = vmul.f32 %v541, %v1028
    %v1033 = vadd.f32 %v1024, %v1029
    %v1034 = vadd.f32 %v1025, %v1030
    %v1035 = vadd.f32 %v1026, %v1031
    %v1036 = vadd.f32 %v1027, %v1032
    %v1041 = vsel %vm188, %v1035, %v1033
    %v1042 = vsel %vm188, %v1036, %v1034
    %1045 = vrot.lane.b32.xlu0 %v1041, 32
    %v1046 = vpop.permute.xlu0 %1045
    %1047 = vrot.lane.b32.xlu0 %v1042, 32
    %v1048 = vpop.permute.xlu0 %1047
    %vm1049 = vcmp.lt.s32.totalorder %v143, 32
    %v1050 = vsel %vm1049, %v1046, %v1048
    %v1051 = vsel %vm1049, %v1048, %v1046
    %s1052 = scalar_lea.vmem [#allocation7], 18
    %v1053 = vld [vmem:[%s1052] ss:$8 sm:$0x3]
    %v1055 = vlaneseq
    %v1056 = vshrl.u32 %v1055, 7
    %v1057 = vsub.s32 0, %v1056
    %v1058 = vrot.slane %v1053, %v1057
    %v1059 = vlaneseq
    %v1060 = vshrl.u32 %v1059, 7
    %v1061 = vsub.s32 1, %v1060
    %v1062 = vrot.slane %v1053, %v1061
    %v1065 = vmul.f32 %v1058, %v1051
    %v1066 = vmul.f32 %v1062, %v1050
    %v1067 = vadd.f32 %v1019, %v1065
    %v1068 = vadd.f32 %v1020, %v1066
    %s1069 = sld [smem:[#allocation6 + $0xb]]
    %s1070 = sld [smem:[#allocation6 + $0x3c]]
    %v1071 = vstv %s1069
    %v1072 = vmul.f32 %v502, %v1071
    %v1073 = vmul.f32 %v503, %v1071
    %v1074 = vmul.f32 %v504, %v1071
    %v1075 = vmul.f32 %v505, %v1071
    %v1076 = vstv %s1070
    %v1077 = vmul.f32 %v514, %v1076
    %v1078 = vmul.f32 %v523, %v1076
    %v1079 = vmul.f32 %v532, %v1076
    %v1080 = vmul.f32 %v541, %v1076
    %v1081 = vadd.f32 %v1072, %v1077
    %v1082 = vadd.f32 %v1073, %v1078
    %v1083 = vadd.f32 %v1074, %v1079
    %v1084 = vadd.f32 %v1075, %v1080
    %v1089 = vsel %vm188, %v1083, %v1081
    %v1090 = vsel %vm188, %v1084, %v1082
    %1093 = vrot.lane.b32.xlu0 %v1089, 31
    %v1094 = vpop.permute.xlu0 %1093
    %1095 = vrot.lane.b32.xlu0 %v1090, 31
    %v1096 = vpop.permute.xlu0 %1095
    %vm1097 = vcmp.lt.s32.totalorder %v143, 31
    %v1098 = vsel %vm1097, %v1094, %v1096
    %v1099 = vsel %vm1097, %v1096, %v1094
    %s1100 = scalar_lea.vmem [#allocation7], 19
    %v1101 = vld [vmem:[%s1100] ss:$8 sm:$0x3]
    %v1103 = vlaneseq
    %v1104 = vshrl.u32 %v1103, 7
    %v1105 = vsub.s32 0, %v1104
    %v1106 = vrot.slane %v1101, %v1105
    %v1107 = vlaneseq
    %v1108 = vshrl.u32 %v1107, 7
    %v1109 = vsub.s32 1, %v1108
    %v1110 = vrot.slane %v1101, %v1109
    %v1113 = vmul.f32 %v1106, %v1099
    %v1114 = vmul.f32 %v1110, %v1098
    %v1115 = vadd.f32 %v1067, %v1113
    %v1116 = vadd.f32 %v1068, %v1114
    %s1117 = sld [smem:[#allocation6 + $0xc]]
    %s1118 = sld [smem:[#allocation6 + $0x3d]]
    %v1119 = vstv %s1117
    %v1120 = vmul.f32 %v502, %v1119
    %v1121 = vmul.f32 %v503, %v1119
    %v1122 = vmul.f32 %v504, %v1119
    %v1123 = vmul.f32 %v505, %v1119
    %v1124 = vstv %s1118
    %v1125 = vmul.f32 %v514, %v1124
    %v1126 = vmul.f32 %v523, %v1124
    %v1127 = vmul.f32 %v532, %v1124
    %v1128 = vmul.f32 %v541, %v1124
    %v1129 = vadd.f32 %v1120, %v1125
    %v1130 = vadd.f32 %v1121, %v1126
    %v1131 = vadd.f32 %v1122, %v1127
    %v1132 = vadd.f32 %v1123, %v1128
    %v1137 = vsel %vm188, %v1131, %v1129
    %v1138 = vsel %vm188, %v1132, %v1130
    %1141 = vrot.lane.b32.xlu0 %v1137, 30
    %v1142 = vpop.permute.xlu0 %1141
    %1143 = vrot.lane.b32.xlu0 %v1138, 30
    %v1144 = vpop.permute.xlu0 %1143
    %vm1145 = vcmp.lt.s32.totalorder %v143, 30
    %v1146 = vsel %vm1145, %v1142, %v1144
    %v1147 = vsel %vm1145, %v1144, %v1142
    %s1148 = scalar_lea.vmem [#allocation7], 20
    %v1149 = vld [vmem:[%s1148] ss:$8 sm:$0x3]
    %v1151 = vlaneseq
    %v1152 = vshrl.u32 %v1151, 7
    %v1153 = vsub.s32 0, %v1152
    %v1154 = vrot.slane %v1149, %v1153
    %v1155 = vlaneseq
    %v1156 = vshrl.u32 %v1155, 7
    %v1157 = vsub.s32 1, %v1156
    %v1158 = vrot.slane %v1149, %v1157
    %v1161 = vmul.f32 %v1154, %v1147
    %v1162 = vmul.f32 %v1158, %v1146
    %v1163 = vadd.f32 %v1115, %v1161
    %v1164 = vadd.f32 %v1116, %v1162
    %s1165 = sld [smem:[#allocation6 + $0xd]]
    %s1166 = sld [smem:[#allocation6 + $0x3e]]
    %v1167 = vstv %s1165
    %v1168 = vmul.f32 %v502, %v1167
    %v1169 = vmul.f32 %v503, %v1167
    %v1170 = vmul.f32 %v504, %v1167
    %v1171 = vmul.f32 %v505, %v1167
    %v1172 = vstv %s1166
    %v1173 = vmul.f32 %v514, %v1172
    %v1174 = vmul.f32 %v523, %v1172
    %v1175 = vmul.f32 %v532, %v1172
    %v1176 = vmul.f32 %v541, %v1172
    %v1177 = vadd.f32 %v1168, %v1173
    %v1178 = vadd.f32 %v1169, %v1174
    %v1179 = vadd.f32 %v1170, %v1175
    %v1180 = vadd.f32 %v1171, %v1176
    %v1185 = vsel %vm188, %v1179, %v1177
    %v1186 = vsel %vm188, %v1180, %v1178
    %1189 = vrot.lane.b32.xlu0 %v1185, 29
    %v1190 = vpop.permute.xlu0 %1189
    %1191 = vrot.lane.b32.xlu0 %v1186, 29
    %v1192 = vpop.permute.xlu0 %1191
    %vm1193 = vcmp.lt.s32.totalorder %v143, 29
    %v1194 = vsel %vm1193, %v1190, %v1192
    %v1195 = vsel %vm1193, %v1192, %v1190
    %s1196 = scalar_lea.vmem [#allocation7], 21
    %v1197 = vld [vmem:[%s1196] ss:$8 sm:$0x3]
    %v1199 = vlaneseq
    %v1200 = vshrl.u32 %v1199, 7
    %v1201 = vsub.s32 0, %v1200
    %v1202 = vrot.slane %v1197, %v1201
    %v1203 = vlaneseq
    %v1204 = vshrl.u32 %v1203, 7
    %v1205 = vsub.s32 1, %v1204
    %v1206 = vrot.slane %v1197, %v1205
    %v1209 = vmul.f32 %v1202, %v1195
    %v1210 = vmul.f32 %v1206, %v1194
    %v1211 = vadd.f32 %v1163, %v1209
    %v1212 = vadd.f32 %v1164, %v1210
    %s1213 = sld [smem:[#allocation6 + $0xe]]
    %s1214 = sld [smem:[#allocation6 + $0x3f]]
    %v1215 = vstv %s1213
    %v1216 = vmul.f32 %v502, %v1215
    %v1217 = vmul.f32 %v503, %v1215
    %v1218 = vmul.f32 %v504, %v1215
    %v1219 = vmul.f32 %v505, %v1215
    %v1220 = vstv %s1214
    %v1221 = vmul.f32 %v514, %v1220
    %v1222 = vmul.f32 %v523, %v1220
    %v1223 = vmul.f32 %v532, %v1220
    %v1224 = vmul.f32 %v541, %v1220
    %v1225 = vadd.f32 %v1216, %v1221
    %v1226 = vadd.f32 %v1217, %v1222
    %v1227 = vadd.f32 %v1218, %v1223
    %v1228 = vadd.f32 %v1219, %v1224
    %v1233 = vsel %vm188, %v1227, %v1225
    %v1234 = vsel %vm188, %v1228, %v1226
    %1237 = vrot.lane.b32.xlu0 %v1233, 19
    %v1238 = vpop.permute.xlu0 %1237
    %1239 = vrot.lane.b32.xlu0 %v1234, 19
    %v1240 = vpop.permute.xlu0 %1239
    %vm1241 = vcmp.lt.s32.totalorder %v143, 19
    %v1242 = vsel %vm1241, %v1238, %v1240
    %v1243 = vsel %vm1241, %v1240, %v1238
    %s1244 = scalar_lea.vmem [#allocation7], 22
    %v1245 = vld [vmem:[%s1244] ss:$8 sm:$0x3]
    %v1247 = vlaneseq
    %v1248 = vshrl.u32 %v1247, 7
    %v1249 = vsub.s32 0, %v1248
    %v1250 = vrot.slane %v1245, %v1249
    %v1251 = vlaneseq
    %v1252 = vshrl.u32 %v1251, 7
    %v1253 = vsub.s32 1, %v1252
    %v1254 = vrot.slane %v1245, %v1253
    %v1257 = vmul.f32 %v1250, %v1243
    %v1258 = vmul.f32 %v1254, %v1242
    %v1259 = vadd.f32 %v1211, %v1257
    %v1260 = vadd.f32 %v1212, %v1258
    %s1261 = sld [smem:[#allocation6 + $0xf]]
    %s1262 = sld [smem:[#allocation6 + $0x40]]
    %v1263 = vstv %s1261
    %v1264 = vmul.f32 %v502, %v1263
    %v1265 = vmul.f32 %v503, %v1263
    %v1266 = vmul.f32 %v504, %v1263
    %v1267 = vmul.f32 %v505, %v1263
    %v1268 = vstv %s1262
    %v1269 = vmul.f32 %v514, %v1268
    %v1270 = vmul.f32 %v523, %v1268
    %v1271 = vmul.f32 %v532, %v1268
    %v1272 = vmul.f32 %v541, %v1268
    %v1273 = vadd.f32 %v1264, %v1269
    %v1274 = vadd.f32 %v1265, %v1270
    %v1275 = vadd.f32 %v1266, %v1271
    %v1276 = vadd.f32 %v1267, %v1272
    %v1281 = vsel %vm188, %v1275, %v1273
    %v1282 = vsel %vm188, %v1276, %v1274
    %1285 = vrot.lane.b32.xlu0 %v1281, 18
    %v1286 = vpop.permute.xlu0 %1285
    %1287 = vrot.lane.b32.xlu0 %v1282, 18
    %v1288 = vpop.permute.xlu0 %1287
    %vm1289 = vcmp.lt.s32.totalorder %v143, 18
    %v1290 = vsel %vm1289, %v1286, %v1288
    %v1291 = vsel %vm1289, %v1288, %v1286
    %s1292 = scalar_lea.vmem [#allocation7], 23
    %v1293 = vld [vmem:[%s1292] ss:$8 sm:$0x3]
    %v1295 = vlaneseq
    %v1296 = vshrl.u32 %v1295, 7
    %v1297 = vsub.s32 0, %v1296
    %v1298 = vrot.slane %v1293, %v1297
    %v1299 = vlaneseq
    %v1300 = vshrl.u32 %v1299, 7
    %v1301 = vsub.s32 1, %v1300
    %v1302 = vrot.slane %v1293, %v1301
    %v1305 = vmul.f32 %v1298, %v1291
    %v1306 = vmul.f32 %v1302, %v1290
    %v1307 = vadd.f32 %v1259, %v1305
    %v1308 = vadd.f32 %v1260, %v1306
    %s1309 = sld [smem:[#allocation6 + $0x10]]
    %s1310 = sld [smem:[#allocation6 + $0x41]]
    %v1311 = vstv %s1309
    %v1312 = vmul.f32 %v502, %v1311
    %v1313 = vmul.f32 %v503, %v1311
    %v1314 = vmul.f32 %v504, %v1311
    %v1315 = vmul.f32 %v505, %v1311
    %v1316 = vstv %s1310
    %v1317 = vmul.f32 %v514, %v1316
    %v1318 = vmul.f32 %v523, %v1316
    %v1319 = vmul.f32 %v532, %v1316
    %v1320 = vmul.f32 %v541, %v1316
    %v1321 = vadd.f32 %v1312, %v1317
    %v1322 = vadd.f32 %v1313, %v1318
    %v1323 = vadd.f32 %v1314, %v1319
    %v1324 = vadd.f32 %v1315, %v1320
    %v1329 = vsel %vm188, %v1323, %v1321
    %v1330 = vsel %vm188, %v1324, %v1322
    %1333 = vrot.lane.b32.xlu0 %v1329, 17
    %v1334 = vpop.permute.xlu0 %1333
    %1335 = vrot.lane.b32.xlu0 %v1330, 17
    %v1336 = vpop.permute.xlu0 %1335
    %vm1337 = vcmp.lt.s32.totalorder %v143, 17
    %v1338 = vsel %vm1337, %v1334, %v1336
    %v1339 = vsel %vm1337, %v1336, %v1334
    %s1340 = scalar_lea.vmem [#allocation7], 32
    %v1341 = vld [vmem:[%s1340] ss:$8 sm:$0x3]
    %v1343 = vlaneseq
    %v1344 = vshrl.u32 %v1343, 7
    %v1345 = vsub.s32 0, %v1344
    %v1346 = vrot.slane %v1341, %v1345
    %v1347 = vlaneseq
    %v1348 = vshrl.u32 %v1347, 7
    %v1349 = vsub.s32 1, %v1348
    %v1350 = vrot.slane %v1341, %v1349
    %v1353 = vmul.f32 %v1346, %v1339
    %v1354 = vmul.f32 %v1350, %v1338
    %v1355 = vadd.f32 %v1307, %v1353
    %v1356 = vadd.f32 %v1308, %v1354
    %s1357 = sld [smem:[#allocation6 + $0x11]]
    %s1358 = sld [smem:[#allocation6 + $0x42]]
    %v1359 = vstv %s1357
    %v1360 = vmul.f32 %v502, %v1359
    %v1361 = vmul.f32 %v503, %v1359
    %v1362 = vmul.f32 %v504, %v1359
    %v1363 = vmul.f32 %v505, %v1359
    %v1364 = vstv %s1358
    %v1365 = vmul.f32 %v514, %v1364
    %v1366 = vmul.f32 %v523, %v1364
    %v1367 = vmul.f32 %v532, %v1364
    %v1368 = vmul.f32 %v541, %v1364
    %v1369 = vadd.f32 %v1360, %v1365
    %v1370 = vadd.f32 %v1361, %v1366
    %v1371 = vadd.f32 %v1362, %v1367
    %v1372 = vadd.f32 %v1363, %v1368
    %v1377 = vsel %vm188, %v1371, %v1369
    %v1378 = vsel %vm188, %v1372, %v1370
    %1381 = vrot.lane.b32.xlu0 %v1377, 16
    %v1382 = vpop.permute.xlu0 %1381
    %1383 = vrot.lane.b32.xlu0 %v1378, 16
    %v1384 = vpop.permute.xlu0 %1383
    %vm1385 = vcmp.lt.s32.totalorder %v143, 16
    %v1386 = vsel %vm1385, %v1382, %v1384
    %v1387 = vsel %vm1385, %v1384, %v1382
    %s1388 = scalar_lea.vmem [#allocation7], 33
    %v1389 = vld [vmem:[%s1388] ss:$8 sm:$0x3]
    %v1391 = vlaneseq
    %v1392 = vshrl.u32 %v1391, 7
    %v1393 = vsub.s32 0, %v1392
    %v1394 = vrot.slane %v1389, %v1393
    %v1395 = vlaneseq
    %v1396 = vshrl.u32 %v1395, 7
    %v1397 = vsub.s32 1, %v1396
    %v1398 = vrot.slane %v1389, %v1397
    %v1401 = vmul.f32 %v1394, %v1387
    %v1402 = vmul.f32 %v1398, %v1386
    %v1403 = vadd.f32 %v1355, %v1401
    %v1404 = vadd.f32 %v1356, %v1402
    %s1405 = sld [smem:[#allocation6 + $0x12]]
    %s1406 = sld [smem:[#allocation6 + $0x43]]
    %v1407 = vstv %s1405
    %v1408 = vmul.f32 %v502, %v1407
    %v1409 = vmul.f32 %v503, %v1407
    %v1410 = vmul.f32 %v504, %v1407
    %v1411 = vmul.f32 %v505, %v1407
    %v1412 = vstv %s1406
    %v1413 = vmul.f32 %v514, %v1412
    %v1414 = vmul.f32 %v523, %v1412
    %v1415 = vmul.f32 %v532, %v1412
    %v1416 = vmul.f32 %v541, %v1412
    %v1417 = vadd.f32 %v1408, %v1413
    %v1418 = vadd.f32 %v1409, %v1414
    %v1419 = vadd.f32 %v1410, %v1415
    %v1420 = vadd.f32 %v1411, %v1416
    %v1425 = vsel %vm188, %v1419, %v1417
    %v1426 = vsel %vm188, %v1420, %v1418
    %1429 = vrot.lane.b32.xlu0 %v1425, 15
    %v1430 = vpop.permute.xlu0 %1429
    %1431 = vrot.lane.b32.xlu0 %v1426, 15
    %v1432 = vpop.permute.xlu0 %1431
    %vm1433 = vcmp.lt.s32.totalorder %v143, 15
    %v1434 = vsel %vm1433, %v1430, %v1432
    %v1435 = vsel %vm1433, %v1432, %v1430
    %s1436 = scalar_lea.vmem [#allocation7], 34
    %v1437 = vld [vmem:[%s1436] ss:$8 sm:$0x3]
    %v1439 = vlaneseq
    %v1440 = vshrl.u32 %v1439, 7
    %v1441 = vsub.s32 0, %v1440
    %v1442 = vrot.slane %v1437, %v1441
    %v1443 = vlaneseq
    %v1444 = vshrl.u32 %v1443, 7
    %v1445 = vsub.s32 1, %v1444
    %v1446 = vrot.slane %v1437, %v1445
    %v1449 = vmul.f32 %v1442, %v1435
    %v1450 = vmul.f32 %v1446, %v1434
    %v1451 = vadd.f32 %v1403, %v1449
    %v1452 = vadd.f32 %v1404, %v1450
    %s1453 = sld [smem:[#allocation6 + $0x13]]
    %s1454 = sld [smem:[#allocation6 + $0x44]]
    %v1455 = vstv %s1453
    %v1456 = vmul.f32 %v502, %v1455
    %v1457 = vmul.f32 %v503, %v1455
    %v1458 = vmul.f32 %v504, %v1455
    %v1459 = vmul.f32 %v505, %v1455
    %v1460 = vstv %s1454
    %v1461 = vmul.f32 %v514, %v1460
    %v1462 = vmul.f32 %v523, %v1460
    %v1463 = vmul.f32 %v532, %v1460
    %v1464 = vmul.f32 %v541, %v1460
    %v1465 = vadd.f32 %v1456, %v1461
    %v1466 = vadd.f32 %v1457, %v1462
    %v1467 = vadd.f32 %v1458, %v1463
    %v1468 = vadd.f32 %v1459, %v1464
    %v1473 = vsel %vm188, %v1467, %v1465
    %v1474 = vsel %vm188, %v1468, %v1466
    %1477 = vrot.lane.b32.xlu0 %v1473, 14
    %v1478 = vpop.permute.xlu0 %1477
    %1479 = vrot.lane.b32.xlu0 %v1474, 14
    %v1480 = vpop.permute.xlu0 %1479
    %vm1481 = vcmp.lt.s32.totalorder %v143, 14
    %v1482 = vsel %vm1481, %v1478, %v1480
    %v1483 = vsel %vm1481, %v1480, %v1478
    %s1484 = scalar_lea.vmem [#allocation7], 35
    %v1485 = vld [vmem:[%s1484] ss:$8 sm:$0x3]
    %v1487 = vlaneseq
    %v1488 = vshrl.u32 %v1487, 7
    %v1489 = vsub.s32 0, %v1488
    %v1490 = vrot.slane %v1485, %v1489
    %v1491 = vlaneseq
    %v1492 = vshrl.u32 %v1491, 7
    %v1493 = vsub.s32 1, %v1492
    %v1494 = vrot.slane %v1485, %v1493
    %v1497 = vmul.f32 %v1490, %v1483
    %v1498 = vmul.f32 %v1494, %v1482
    %v1499 = vadd.f32 %v1451, %v1497
    %v1500 = vadd.f32 %v1452, %v1498
    %s1501 = sld [smem:[#allocation6 + $0x14]]
    %s1502 = sld [smem:[#allocation6 + $0x45]]
    %v1503 = vstv %s1501
    %v1504 = vmul.f32 %v502, %v1503
    %v1505 = vmul.f32 %v503, %v1503
    %v1506 = vmul.f32 %v504, %v1503
    %v1507 = vmul.f32 %v505, %v1503
    %v1508 = vstv %s1502
    %v1509 = vmul.f32 %v514, %v1508
    %v1510 = vmul.f32 %v523, %v1508
    %v1511 = vmul.f32 %v532, %v1508
    %v1512 = vmul.f32 %v541, %v1508
    %v1513 = vadd.f32 %v1504, %v1509
    %v1514 = vadd.f32 %v1505, %v1510
    %v1515 = vadd.f32 %v1506, %v1511
    %v1516 = vadd.f32 %v1507, %v1512
    %v1521 = vsel %vm188, %v1515, %v1513
    %v1522 = vsel %vm188, %v1516, %v1514
    %1525 = vrot.lane.b32.xlu0 %v1521, 13
    %v1526 = vpop.permute.xlu0 %1525
    %1527 = vrot.lane.b32.xlu0 %v1522, 13
    %v1528 = vpop.permute.xlu0 %1527
    %vm1529 = vcmp.lt.s32.totalorder %v143, 13
    %v1530 = vsel %vm1529, %v1526, %v1528
    %v1531 = vsel %vm1529, %v1528, %v1526
    %s1532 = scalar_lea.vmem [#allocation7], 36
    %v1533 = vld [vmem:[%s1532] ss:$8 sm:$0x3]
    %v1535 = vlaneseq
    %v1536 = vshrl.u32 %v1535, 7
    %v1537 = vsub.s32 0, %v1536
    %v1538 = vrot.slane %v1533, %v1537
    %v1539 = vlaneseq
    %v1540 = vshrl.u32 %v1539, 7
    %v1541 = vsub.s32 1, %v1540
    %v1542 = vrot.slane %v1533, %v1541
    %v1545 = vmul.f32 %v1538, %v1531
    %v1546 = vmul.f32 %v1542, %v1530
    %v1547 = vadd.f32 %v1499, %v1545
    %v1548 = vadd.f32 %v1500, %v1546
    %s1549 = sld [smem:[#allocation6 + $0x15]]
    %s1550 = sld [smem:[#allocation6 + $0x46]]
    %v1551 = vstv %s1549
    %v1552 = vmul.f32 %v502, %v1551
    %v1553 = vmul.f32 %v503, %v1551
    %v1554 = vmul.f32 %v504, %v1551
    %v1555 = vmul.f32 %v505, %v1551
    %v1556 = vstv %s1550
    %v1557 = vmul.f32 %v514, %v1556
    %v1558 = vmul.f32 %v523, %v1556
    %v1559 = vmul.f32 %v532, %v1556
    %v1560 = vmul.f32 %v541, %v1556
    %v1561 = vadd.f32 %v1552, %v1557
    %v1562 = vadd.f32 %v1553, %v1558
    %v1563 = vadd.f32 %v1554, %v1559
    %v1564 = vadd.f32 %v1555, %v1560
    %v1569 = vsel %vm188, %v1563, %v1561
    %v1570 = vsel %vm188, %v1564, %v1562
    %1573 = vrot.lane.b32.xlu0 %v1569, 3
    %v1574 = vpop.permute.xlu0 %1573
    %1575 = vrot.lane.b32.xlu0 %v1570, 3
    %v1576 = vpop.permute.xlu0 %1575
    %vm1577 = vcmp.lt.s32.totalorder %v143, 3
    %v1578 = vsel %vm1577, %v1574, %v1576
    %v1579 = vsel %vm1577, %v1576, %v1574
    %s1580 = scalar_lea.vmem [#allocation7], 37
    %v1581 = vld [vmem:[%s1580] ss:$8 sm:$0x3]
    %v1583 = vlaneseq
    %v1584 = vshrl.u32 %v1583, 7
    %v1585 = vsub.s32 0, %v1584
    %v1586 = vrot.slane %v1581, %v1585
    %v1587 = vlaneseq
    %v1588 = vshrl.u32 %v1587, 7
    %v1589 = vsub.s32 1, %v1588
    %v1590 = vrot.slane %v1581, %v1589
    %v1593 = vmul.f32 %v1586, %v1579
    %v1594 = vmul.f32 %v1590, %v1578
    %v1595 = vadd.f32 %v1547, %v1593
    %v1596 = vadd.f32 %v1548, %v1594
    %s1597 = sld [smem:[#allocation6 + $0x16]]
    %s1598 = sld [smem:[#allocation6 + $0x47]]
    %v1599 = vstv %s1597
    %v1600 = vmul.f32 %v502, %v1599
    %v1601 = vmul.f32 %v503, %v1599
    %v1602 = vmul.f32 %v504, %v1599
    %v1603 = vmul.f32 %v505, %v1599
    %v1604 = vstv %s1598
    %v1605 = vmul.f32 %v514, %v1604
    %v1606 = vmul.f32 %v523, %v1604
    %v1607 = vmul.f32 %v532, %v1604
    %v1608 = vmul.f32 %v541, %v1604
    %v1609 = vadd.f32 %v1600, %v1605
    %v1610 = vadd.f32 %v1601, %v1606
    %v1611 = vadd.f32 %v1602, %v1607
    %v1612 = vadd.f32 %v1603, %v1608
    %v1617 = vsel %vm188, %v1611, %v1609
    %v1618 = vsel %vm188, %v1612, %v1610
    %1621 = vrot.lane.b32.xlu0 %v1617, 2
    %v1622 = vpop.permute.xlu0 %1621
    %1623 = vrot.lane.b32.xlu0 %v1618, 2
    %v1624 = vpop.permute.xlu0 %1623
    %vm1625 = vcmp.lt.s32.totalorder %v143, 2
    %v1626 = vsel %vm1625, %v1622, %v1624
    %v1627 = vsel %vm1625, %v1624, %v1622
    %s1628 = scalar_lea.vmem [#allocation7], 38
    %v1629 = vld [vmem:[%s1628] ss:$8 sm:$0x3]
    %v1631 = vlaneseq
    %v1632 = vshrl.u32 %v1631, 7
    %v1633 = vsub.s32 0, %v1632
    %v1634 = vrot.slane %v1629, %v1633
    %v1635 = vlaneseq
    %v1636 = vshrl.u32 %v1635, 7
    %v1637 = vsub.s32 1, %v1636
    %v1638 = vrot.slane %v1629, %v1637
    %v1641 = vmul.f32 %v1634, %v1627
    %v1642 = vmul.f32 %v1638, %v1626
    %v1643 = vadd.f32 %v1595, %v1641
    %v1644 = vadd.f32 %v1596, %v1642
    %s1645 = sld [smem:[#allocation6 + $0x17]]
    %s1646 = sld [smem:[#allocation6 + $0x48]]
    %v1647 = vstv %s1645
    %v1648 = vmul.f32 %v502, %v1647
    %v1649 = vmul.f32 %v503, %v1647
    %v1650 = vmul.f32 %v504, %v1647
    %v1651 = vmul.f32 %v505, %v1647
    %v1652 = vstv %s1646
    %v1653 = vmul.f32 %v514, %v1652
    %v1654 = vmul.f32 %v523, %v1652
    %v1655 = vmul.f32 %v532, %v1652
    %v1656 = vmul.f32 %v541, %v1652
    %v1657 = vadd.f32 %v1648, %v1653
    %v1658 = vadd.f32 %v1649, %v1654
    %v1659 = vadd.f32 %v1650, %v1655
    %v1660 = vadd.f32 %v1651, %v1656
    %v1665 = vsel %vm188, %v1659, %v1657
    %v1666 = vsel %vm188, %v1660, %v1658
    %1669 = vrot.lane.b32.xlu0 %v1665, 1
    %v1670 = vpop.permute.xlu0 %1669
    %1671 = vrot.lane.b32.xlu0 %v1666, 1
    %v1672 = vpop.permute.xlu0 %1671
    %vm1673 = vcmp.lt.s32.totalorder %v143, 1
    %v1674 = vsel %vm1673, %v1670, %v1672
    %v1675 = vsel %vm1673, %v1672, %v1670
    %s1676 = scalar_lea.vmem [#allocation7], 39
    %v1677 = vld [vmem:[%s1676] ss:$8 sm:$0x3]
    %v1679 = vlaneseq
    %v1680 = vshrl.u32 %v1679, 7
    %v1681 = vsub.s32 0, %v1680
    %v1682 = vrot.slane %v1677, %v1681
    %v1683 = vlaneseq
    %v1684 = vshrl.u32 %v1683, 7
    %v1685 = vsub.s32 1, %v1684
    %v1686 = vrot.slane %v1677, %v1685
    %v1689 = vmul.f32 %v1682, %v1675
    %v1690 = vmul.f32 %v1686, %v1674
    %v1691 = vadd.f32 %v1643, %v1689
    %v1692 = vadd.f32 %v1644, %v1690
    %s1693 = sld [smem:[#allocation6 + $0x18]]
    %s1694 = sld [smem:[#allocation6 + $0x49]]
    %v1695 = vstv %s1693
    %v1696 = vmul.f32 %v502, %v1695
    %v1697 = vmul.f32 %v503, %v1695
    %v1698 = vmul.f32 %v504, %v1695
    %v1699 = vmul.f32 %v505, %v1695
    %v1700 = vstv %s1694
    %v1701 = vmul.f32 %v514, %v1700
    %v1702 = vmul.f32 %v523, %v1700
    %v1703 = vmul.f32 %v532, %v1700
    %v1704 = vmul.f32 %v541, %v1700
    %v1705 = vadd.f32 %v1696, %v1701
    %v1706 = vadd.f32 %v1697, %v1702
    %v1707 = vadd.f32 %v1698, %v1703
    %v1708 = vadd.f32 %v1699, %v1704
    %s1709 = scalar_lea.vmem [#allocation7], 48
    %v1710 = vld [vmem:[%s1709] ss:$8 sm:$0x3]
    %v1712 = vlaneseq
    %v1713 = vshrl.u32 %v1712, 7
    %v1714 = vsub.s32 0, %v1713
    %v1715 = vrot.slane %v1710, %v1714
    %v1716 = vlaneseq
    %v1717 = vshrl.u32 %v1716, 7
    %v1718 = vsub.s32 1, %v1717
    %v1719 = vrot.slane %v1710, %v1718
    %v1726 = vsel %vm188, %v1707, %v1705
    %v1727 = vsel %vm188, %v1708, %v1706
    %v1730 = vmul.f32 %v1715, %v1726
    %v1731 = vmul.f32 %v1719, %v1727
    %v1732 = vadd.f32 %v1691, %v1730
    %v1733 = vadd.f32 %v1692, %v1731
    %s1734 = sld [smem:[#allocation6 + $0x19]]
    %s1735 = sld [smem:[#allocation6 + $0x4a]]
    %v1736 = vstv %s1734
    %v1737 = vmul.f32 %v502, %v1736
    %v1738 = vmul.f32 %v503, %v1736
    %v1739 = vmul.f32 %v504, %v1736
    %v1740 = vmul.f32 %v505, %v1736
    %v1741 = vstv %s1735
    %v1742 = vmul.f32 %v514, %v1741
    %v1743 = vmul.f32 %v523, %v1741
    %v1744 = vmul.f32 %v532, %v1741
    %v1745 = vmul.f32 %v541, %v1741
    %v1746 = vadd.f32 %v1737, %v1742
    %v1747 = vadd.f32 %v1738, %v1743
    %v1748 = vadd.f32 %v1739, %v1744
    %v1749 = vadd.f32 %v1740, %v1745
    %v1754 = vsel %vm188, %v1748, %v1746
    %v1755 = vsel %vm188, %v1749, %v1747
    %1758 = vrot.lane.b32.xlu0 %v1754, 127
    %v1759 = vpop.permute.xlu0 %1758
    %1760 = vrot.lane.b32.xlu0 %v1755, 127
    %v1761 = vpop.permute.xlu0 %1760
    %vm1762 = vcmp.lt.s32.totalorder %v143, 127
    %v1763 = vsel %vm1762, %v1759, %v1761
    %v1764 = vsel %vm1762, %v1761, %v1759
    %s1765 = scalar_lea.vmem [#allocation7], 49
    %v1766 = vld [vmem:[%s1765] ss:$8 sm:$0x3]
    %v1768 = vlaneseq
    %v1769 = vshrl.u32 %v1768, 7
    %v1770 = vsub.s32 0, %v1769
    %v1771 = vrot.slane %v1766, %v1770
    %v1772 = vlaneseq
    %v1773 = vshrl.u32 %v1772, 7
    %v1774 = vsub.s32 1, %v1773
    %v1775 = vrot.slane %v1766, %v1774
    %v1778 = vmul.f32 %v1771, %v1763
    %v1779 = vmul.f32 %v1775, %v1764
    %v1780 = vadd.f32 %v1732, %v1778
    %v1781 = vadd.f32 %v1733, %v1779
    %s1782 = sld [smem:[#allocation6 + $0x1a]]
    %s1783 = sld [smem:[#allocation6 + $0x4b]]
    %v1784 = vstv %s1782
    %v1785 = vmul.f32 %v502, %v1784
    %v1786 = vmul.f32 %v503, %v1784
    %v1787 = vmul.f32 %v504, %v1784
    %v1788 = vmul.f32 %v505, %v1784
    %v1789 = vstv %s1783
    %v1790 = vmul.f32 %v514, %v1789
    %v1791 = vmul.f32 %v523, %v1789
    %v1792 = vmul.f32 %v532, %v1789
    %v1793 = vmul.f32 %v541, %v1789
    %v1794 = vadd.f32 %v1785, %v1790
    %v1795 = vadd.f32 %v1786, %v1791
    %v1796 = vadd.f32 %v1787, %v1792
    %v1797 = vadd.f32 %v1788, %v1793
    %v1802 = vsel %vm188, %v1796, %v1794
    %v1803 = vsel %vm188, %v1797, %v1795
    %1806 = vrot.lane.b32.xlu0 %v1802, 126
    %v1807 = vpop.permute.xlu0 %1806
    %1808 = vrot.lane.b32.xlu0 %v1803, 126
    %v1809 = vpop.permute.xlu0 %1808
    %vm1810 = vcmp.lt.s32.totalorder %v143, 126
    %v1811 = vsel %vm1810, %v1807, %v1809
    %v1812 = vsel %vm1810, %v1809, %v1807
    %s1813 = scalar_lea.vmem [#allocation7], 50
    %v1814 = vld [vmem:[%s1813] ss:$8 sm:$0x3]
    %v1816 = vlaneseq
    %v1817 = vshrl.u32 %v1816, 7
    %v1818 = vsub.s32 0, %v1817
    %v1819 = vrot.slane %v1814, %v1818
    %v1820 = vlaneseq
    %v1821 = vshrl.u32 %v1820, 7
    %v1822 = vsub.s32 1, %v1821
    %v1823 = vrot.slane %v1814, %v1822
    %v1826 = vmul.f32 %v1819, %v1811
    %v1827 = vmul.f32 %v1823, %v1812
    %v1828 = vadd.f32 %v1780, %v1826
    %v1829 = vadd.f32 %v1781, %v1827
    %s1830 = sld [smem:[#allocation6 + $0x1b]]
    %s1831 = sld [smem:[#allocation6 + $0x4c]]
    %v1832 = vstv %s1830
    %v1833 = vmul.f32 %v502, %v1832
    %v1834 = vmul.f32 %v503, %v1832
    %v1835 = vmul.f32 %v504, %v1832
    %v1836 = vmul.f32 %v505, %v1832
    %v1837 = vstv %s1831
    %v1838 = vmul.f32 %v514, %v1837
    %v1839 = vmul.f32 %v523, %v1837
    %v1840 = vmul.f32 %v532, %v1837
    %v1841 = vmul.f32 %v541, %v1837
    %v1842 = vadd.f32 %v1833, %v1838
    %v1843 = vadd.f32 %v1834, %v1839
    %v1844 = vadd.f32 %v1835, %v1840
    %v1845 = vadd.f32 %v1836, %v1841
    %v1850 = vsel %vm188, %v1844, %v1842
    %v1851 = vsel %vm188, %v1845, %v1843
    %1854 = vrot.lane.b32.xlu0 %v1850, 125
    %v1855 = vpop.permute.xlu0 %1854
    %1856 = vrot.lane.b32.xlu0 %v1851, 125
    %v1857 = vpop.permute.xlu0 %1856
    %vm1858 = vcmp.lt.s32.totalorder %v143, 125
    %v1859 = vsel %vm1858, %v1855, %v1857
    %v1860 = vsel %vm1858, %v1857, %v1855
    %s1861 = scalar_lea.vmem [#allocation7], 51
    %v1862 = vld [vmem:[%s1861] ss:$8 sm:$0x3]
    %v1864 = vlaneseq
    %v1865 = vshrl.u32 %v1864, 7
    %v1866 = vsub.s32 0, %v1865
    %v1867 = vrot.slane %v1862, %v1866
    %v1868 = vlaneseq
    %v1869 = vshrl.u32 %v1868, 7
    %v1870 = vsub.s32 1, %v1869
    %v1871 = vrot.slane %v1862, %v1870
    %v1874 = vmul.f32 %v1867, %v1859
    %v1875 = vmul.f32 %v1871, %v1860
    %v1876 = vadd.f32 %v1828, %v1874
    %v1877 = vadd.f32 %v1829, %v1875
    %s1878 = sld [smem:[#allocation6 + $0x1c]]
    %s1879 = sld [smem:[#allocation6 + $0x4d]]
    %v1880 = vstv %s1878
    %v1881 = vmul.f32 %v502, %v1880
    %v1882 = vmul.f32 %v503, %v1880
    %v1883 = vmul.f32 %v504, %v1880
    %v1884 = vmul.f32 %v505, %v1880
    %v1885 = vstv %s1879
    %v1886 = vmul.f32 %v514, %v1885
    %v1887 = vmul.f32 %v523, %v1885
    %v1888 = vmul.f32 %v532, %v1885
    %v1889 = vmul.f32 %v541, %v1885
    %v1890 = vadd.f32 %v1881, %v1886
    %v1891 = vadd.f32 %v1882, %v1887
    %v1892 = vadd.f32 %v1883, %v1888
    %v1893 = vadd.f32 %v1884, %v1889
    %v1898 = vsel %vm188, %v1892, %v1890
    %v1899 = vsel %vm188, %v1893, %v1891
    %1902 = vrot.lane.b32.xlu0 %v1898, 115
    %v1903 = vpop.permute.xlu0 %1902
    %1904 = vrot.lane.b32.xlu0 %v1899, 115
    %v1905 = vpop.permute.xlu0 %1904
    %vm1906 = vcmp.lt.s32.totalorder %v143, 115
    %v1907 = vsel %vm1906, %v1903, %v1905
    %v1908 = vsel %vm1906, %v1905, %v1903
    %s1909 = scalar_lea.vmem [#allocation7], 52
    %v1910 = vld [vmem:[%s1909] ss:$8 sm:$0x3]
    %v1912 = vlaneseq
    %v1913 = vshrl.u32 %v1912, 7
    %v1914 = vsub.s32 0, %v1913
    %v1915 = vrot.slane %v1910, %v1914
    %v1916 = vlaneseq
    %v1917 = vshrl.u32 %v1916, 7
    %v1918 = vsub.s32 1, %v1917
    %v1919 = vrot.slane %v1910, %v1918
    %v1922 = vmul.f32 %v1915, %v1907
    %v1923 = vmul.f32 %v1919, %v1908
    %v1924 = vadd.f32 %v1876, %v1922
    %v1925 = vadd.f32 %v1877, %v1923
    %s1926 = sld [smem:[#allocation6 + $0x1d]]
    %s1927 = sld [smem:[#allocation6 + $0x4e]]
    %v1928 = vstv %s1926
    %v1929 = vmul.f32 %v502, %v1928
    %v1930 = vmul.f32 %v503, %v1928
    %v1931 = vmul.f32 %v504, %v1928
    %v1932 = vmul.f32 %v505, %v1928
    %v1933 = vstv %s1927
    %v1934 = vmul.f32 %v514, %v1933
    %v1935 = vmul.f32 %v523, %v1933
    %v1936 = vmul.f32 %v532, %v1933
    %v1937 = vmul.f32 %v541, %v1933
    %v1938 = vadd.f32 %v1929, %v1934
    %v1939 = vadd.f32 %v1930, %v1935
    %v1940 = vadd.f32 %v1931, %v1936
    %v1941 = vadd.f32 %v1932, %v1937
    %v1946 = vsel %vm188, %v1940, %v1938
    %v1947 = vsel %vm188, %v1941, %v1939
    %1950 = vrot.lane.b32.xlu0 %v1946, 114
    %v1951 = vpop.permute.xlu0 %1950
    %1952 = vrot.lane.b32.xlu0 %v1947, 114
    %v1953 = vpop.permute.xlu0 %1952
    %vm1954 = vcmp.lt.s32.totalorder %v143, 114
    %v1955 = vsel %vm1954, %v1951, %v1953
    %v1956 = vsel %vm1954, %v1953, %v1951
    %s1957 = scalar_lea.vmem [#allocation7], 53
    %v1958 = vld [vmem:[%s1957] ss:$8 sm:$0x3]
    %v1960 = vlaneseq
    %v1961 = vshrl.u32 %v1960, 7
    %v1962 = vsub.s32 0, %v1961
    %v1963 = vrot.slane %v1958, %v1962
    %v1964 = vlaneseq
    %v1965 = vshrl.u32 %v1964, 7
    %v1966 = vsub.s32 1, %v1965
    %v1967 = vrot.slane %v1958, %v1966
    %v1970 = vmul.f32 %v1963, %v1955
    %v1971 = vmul.f32 %v1967, %v1956
    %v1972 = vadd.f32 %v1924, %v1970
    %v1973 = vadd.f32 %v1925, %v1971
    %s1974 = sld [smem:[#allocation6 + $0x1e]]
    %s1975 = sld [smem:[#allocation6 + $0x4f]]
    %v1976 = vstv %s1974
    %v1977 = vmul.f32 %v502, %v1976
    %v1978 = vmul.f32 %v503, %v1976
    %v1979 = vmul.f32 %v504, %v1976
    %v1980 = vmul.f32 %v505, %v1976
    %v1981 = vstv %s1975
    %v1982 = vmul.f32 %v514, %v1981
    %v1983 = vmul.f32 %v523, %v1981
    %v1984 = vmul.f32 %v532, %v1981
    %v1985 = vmul.f32 %v541, %v1981
    %v1986 = vadd.f32 %v1977, %v1982
    %v1987 = vadd.f32 %v1978, %v1983
    %v1988 = vadd.f32 %v1979, %v1984
    %v1989 = vadd.f32 %v1980, %v1985
    %v1994 = vsel %vm188, %v1988, %v1986
    %v1995 = vsel %vm188, %v1989, %v1987
    %1998 = vrot.lane.b32.xlu0 %v1994, 113
    %v1999 = vpop.permute.xlu0 %1998
    %2000 = vrot.lane.b32.xlu0 %v1995, 113
    %v2001 = vpop.permute.xlu0 %2000
    %vm2002 = vcmp.lt.s32.totalorder %v143, 113
    %v2003 = vsel %vm2002, %v1999, %v2001
    %v2004 = vsel %vm2002, %v2001, %v1999
    %s2005 = scalar_lea.vmem [#allocation7], 54
    %v2006 = vld [vmem:[%s2005] ss:$8 sm:$0x3]
    %v2008 = vlaneseq
    %v2009 = vshrl.u32 %v2008, 7
    %v2010 = vsub.s32 0, %v2009
    %v2011 = vrot.slane %v2006, %v2010
    %v2012 = vlaneseq
    %v2013 = vshrl.u32 %v2012, 7
    %v2014 = vsub.s32 1, %v2013
    %v2015 = vrot.slane %v2006, %v2014
    %v2018 = vmul.f32 %v2011, %v2003
    %v2019 = vmul.f32 %v2015, %v2004
    %v2020 = vadd.f32 %v1972, %v2018
    %v2021 = vadd.f32 %v1973, %v2019
    %s2022 = sld [smem:[#allocation6 + $0x1f]]
    %s2023 = sld [smem:[#allocation6 + $0x50]]
    %v2024 = vstv %s2022
    %v2025 = vmul.f32 %v502, %v2024
    %v2026 = vmul.f32 %v503, %v2024
    %v2027 = vmul.f32 %v504, %v2024
    %v2028 = vmul.f32 %v505, %v2024
    %v2029 = vstv %s2023
    %v2030 = vmul.f32 %v514, %v2029
    %v2031 = vmul.f32 %v523, %v2029
    %v2032 = vmul.f32 %v532, %v2029
    %v2033 = vmul.f32 %v541, %v2029
    %v2034 = vadd.f32 %v2025, %v2030
    %v2035 = vadd.f32 %v2026, %v2031
    %v2036 = vadd.f32 %v2027, %v2032
    %v2037 = vadd.f32 %v2028, %v2033
    %v2042 = vsel %vm188, %v2036, %v2034
    %v2043 = vsel %vm188, %v2037, %v2035
    %2046 = vrot.lane.b32.xlu0 %v2042, 112
    %v2047 = vpop.permute.xlu0 %2046
    %2048 = vrot.lane.b32.xlu0 %v2043, 112
    %v2049 = vpop.permute.xlu0 %2048
    %vm2050 = vcmp.lt.s32.totalorder %v143, 112
    %v2051 = vsel %vm2050, %v2047, %v2049
    %v2052 = vsel %vm2050, %v2049, %v2047
    %s2053 = scalar_lea.vmem [#allocation7], 55
    %v2054 = vld [vmem:[%s2053] ss:$8 sm:$0x3]
    %v2056 = vlaneseq
    %v2057 = vshrl.u32 %v2056, 7
    %v2058 = vsub.s32 0, %v2057
    %v2059 = vrot.slane %v2054, %v2058
    %v2060 = vlaneseq
    %v2061 = vshrl.u32 %v2060, 7
    %v2062 = vsub.s32 1, %v2061
    %v2063 = vrot.slane %v2054, %v2062
    %v2066 = vmul.f32 %v2059, %v2051
    %v2067 = vmul.f32 %v2063, %v2052
    %v2068 = vadd.f32 %v2020, %v2066
    %v2069 = vadd.f32 %v2021, %v2067
    %s2070 = sld [smem:[#allocation6 + $0x20]]
    %s2071 = sld [smem:[#allocation6 + $0x51]]
    %v2072 = vstv %s2070
    %v2073 = vmul.f32 %v502, %v2072
    %v2074 = vmul.f32 %v503, %v2072
    %v2075 = vmul.f32 %v504, %v2072
    %v2076 = vmul.f32 %v505, %v2072
    %v2077 = vstv %s2071
    %v2078 = vmul.f32 %v514, %v2077
    %v2079 = vmul.f32 %v523, %v2077
    %v2080 = vmul.f32 %v532, %v2077
    %v2081 = vmul.f32 %v541, %v2077
    %v2082 = vadd.f32 %v2073, %v2078
    %v2083 = vadd.f32 %v2074, %v2079
    %v2084 = vadd.f32 %v2075, %v2080
    %v2085 = vadd.f32 %v2076, %v2081
    %v2090 = vsel %vm188, %v2084, %v2082
    %v2091 = vsel %vm188, %v2085, %v2083
    %2094 = vrot.lane.b32.xlu0 %v2090, 111
    %v2095 = vpop.permute.xlu0 %2094
    %2096 = vrot.lane.b32.xlu0 %v2091, 111
    %v2097 = vpop.permute.xlu0 %2096
    %vm2098 = vcmp.lt.s32.totalorder %v143, 111
    %v2099 = vsel %vm2098, %v2095, %v2097
    %v2100 = vsel %vm2098, %v2097, %v2095
    %s2101 = scalar_lea.vmem [#allocation7], 64
    %v2102 = vld [vmem:[%s2101] ss:$8 sm:$0x3]
    %v2104 = vlaneseq
    %v2105 = vshrl.u32 %v2104, 7
    %v2106 = vsub.s32 0, %v2105
    %v2107 = vrot.slane %v2102, %v2106
    %v2108 = vlaneseq
    %v2109 = vshrl.u32 %v2108, 7
    %v2110 = vsub.s32 1, %v2109
    %v2111 = vrot.slane %v2102, %v2110
    %v2114 = vmul.f32 %v2107, %v2099
    %v2115 = vmul.f32 %v2111, %v2100
    %v2116 = vadd.f32 %v2068, %v2114
    %v2117 = vadd.f32 %v2069, %v2115
    %s2118 = sld [smem:[#allocation6 + $0x21]]
    %s2119 = sld [smem:[#allocation6 + $0x52]]
    %v2120 = vstv %s2118
    %v2121 = vmul.f32 %v502, %v2120
    %v2122 = vmul.f32 %v503, %v2120
    %v2123 = vmul.f32 %v504, %v2120
    %v2124 = vmul.f32 %v505, %v2120
    %v2125 = vstv %s2119
    %v2126 = vmul.f32 %v514, %v2125
    %v2127 = vmul.f32 %v523, %v2125
    %v2128 = vmul.f32 %v532, %v2125
    %v2129 = vmul.f32 %v541, %v2125
    %v2130 = vadd.f32 %v2121, %v2126
    %v2131 = vadd.f32 %v2122, %v2127
    %v2132 = vadd.f32 %v2123, %v2128
    %v2133 = vadd.f32 %v2124, %v2129
    %v2138 = vsel %vm188, %v2132, %v2130
    %v2139 = vsel %vm188, %v2133, %v2131
    %2142 = vrot.lane.b32.xlu0 %v2138, 110
    %v2143 = vpop.permute.xlu0 %2142
    %2144 = vrot.lane.b32.xlu0 %v2139, 110
    %v2145 = vpop.permute.xlu0 %2144
    %vm2146 = vcmp.lt.s32.totalorder %v143, 110
    %v2147 = vsel %vm2146, %v2143, %v2145
    %v2148 = vsel %vm2146, %v2145, %v2143
    %s2149 = scalar_lea.vmem [#allocation7], 65
    %v2150 = vld [vmem:[%s2149] ss:$8 sm:$0x3]
    %v2152 = vlaneseq
    %v2153 = vshrl.u32 %v2152, 7
    %v2154 = vsub.s32 0, %v2153
    %v2155 = vrot.slane %v2150, %v2154
    %v2156 = vlaneseq
    %v2157 = vshrl.u32 %v2156, 7
    %v2158 = vsub.s32 1, %v2157
    %v2159 = vrot.slane %v2150, %v2158
    %v2162 = vmul.f32 %v2155, %v2147
    %v2163 = vmul.f32 %v2159, %v2148
    %v2164 = vadd.f32 %v2116, %v2162
    %v2165 = vadd.f32 %v2117, %v2163
    %s2166 = sld [smem:[#allocation6 + $0x22]]
    %s2167 = sld [smem:[#allocation6 + $0x53]]
    %v2168 = vstv %s2166
    %v2169 = vmul.f32 %v502, %v2168
    %v2170 = vmul.f32 %v503, %v2168
    %v2171 = vmul.f32 %v504, %v2168
    %v2172 = vmul.f32 %v505, %v2168
    %v2173 = vstv %s2167
    %v2174 = vmul.f32 %v514, %v2173
    %v2175 = vmul.f32 %v523, %v2173
    %v2176 = vmul.f32 %v532, %v2173
    %v2177 = vmul.f32 %v541, %v2173
    %v2178 = vadd.f32 %v2169, %v2174
    %v2179 = vadd.f32 %v2170, %v2175
    %v2180 = vadd.f32 %v2171, %v2176
    %v2181 = vadd.f32 %v2172, %v2177
    %v2186 = vsel %vm188, %v2180, %v2178
    %v2187 = vsel %vm188, %v2181, %v2179
    %2190 = vrot.lane.b32.xlu0 %v2186, 109
    %v2191 = vpop.permute.xlu0 %2190
    %2192 = vrot.lane.b32.xlu0 %v2187, 109
    %v2193 = vpop.permute.xlu0 %2192
    %vm2194 = vcmp.lt.s32.totalorder %v143, 109
    %v2195 = vsel %vm2194, %v2191, %v2193
    %v2196 = vsel %vm2194, %v2193, %v2191
    %s2197 = scalar_lea.vmem [#allocation7], 66
    %v2198 = vld [vmem:[%s2197] ss:$8 sm:$0x3]
    %v2200 = vlaneseq
    %v2201 = vshrl.u32 %v2200, 7
    %v2202 = vsub.s32 0, %v2201
    %v2203 = vrot.slane %v2198, %v2202
    %v2204 = vlaneseq
    %v2205 = vshrl.u32 %v2204, 7
    %v2206 = vsub.s32 1, %v2205
    %v2207 = vrot.slane %v2198, %v2206
    %v2210 = vmul.f32 %v2203, %v2195
    %v2211 = vmul.f32 %v2207, %v2196
    %v2212 = vadd.f32 %v2164, %v2210
    %v2213 = vadd.f32 %v2165, %v2211
    %s2214 = sld [smem:[#allocation6 + $0x23]]
    %s2215 = sld [smem:[#allocation6 + $0x54]]
    %v2216 = vstv %s2214
    %v2217 = vmul.f32 %v502, %v2216
    %v2218 = vmul.f32 %v503, %v2216
    %v2219 = vmul.f32 %v504, %v2216
    %v2220 = vmul.f32 %v505, %v2216
    %v2221 = vstv %s2215
    %v2222 = vmul.f32 %v514, %v2221
    %v2223 = vmul.f32 %v523, %v2221
    %v2224 = vmul.f32 %v532, %v2221
    %v2225 = vmul.f32 %v541, %v2221
    %v2226 = vadd.f32 %v2217, %v2222
    %v2227 = vadd.f32 %v2218, %v2223
    %v2228 = vadd.f32 %v2219, %v2224
    %v2229 = vadd.f32 %v2220, %v2225
    %v2234 = vsel %vm188, %v2228, %v2226
    %v2235 = vsel %vm188, %v2229, %v2227
    %2238 = vrot.lane.b32.xlu0 %v2234, 99
    %v2239 = vpop.permute.xlu0 %2238
    %2240 = vrot.lane.b32.xlu0 %v2235, 99
    %v2241 = vpop.permute.xlu0 %2240
    %vm2242 = vcmp.lt.s32.totalorder %v143, 99
    %v2243 = vsel %vm2242, %v2239, %v2241
    %v2244 = vsel %vm2242, %v2241, %v2239
    %s2245 = scalar_lea.vmem [#allocation7], 67
    %v2246 = vld [vmem:[%s2245] ss:$8 sm:$0x3]
    %v2248 = vlaneseq
    %v2249 = vshrl.u32 %v2248, 7
    %v2250 = vsub.s32 0, %v2249
    %v2251 = vrot.slane %v2246, %v2250
    %v2252 = vlaneseq
    %v2253 = vshrl.u32 %v2252, 7
    %v2254 = vsub.s32 1, %v2253
    %v2255 = vrot.slane %v2246, %v2254
    %v2258 = vmul.f32 %v2251, %v2243
    %v2259 = vmul.f32 %v2255, %v2244
    %v2260 = vadd.f32 %v2212, %v2258
    %v2261 = vadd.f32 %v2213, %v2259
    %s2262 = sld [smem:[#allocation6 + $0x24]]
    %s2263 = sld [smem:[#allocation6 + $0x55]]
    %v2264 = vstv %s2262
    %v2265 = vmul.f32 %v502, %v2264
    %v2266 = vmul.f32 %v503, %v2264
    %v2267 = vmul.f32 %v504, %v2264
    %v2268 = vmul.f32 %v505, %v2264
    %v2269 = vstv %s2263
    %v2270 = vmul.f32 %v514, %v2269
    %v2271 = vmul.f32 %v523, %v2269
    %v2272 = vmul.f32 %v532, %v2269
    %v2273 = vmul.f32 %v541, %v2269
    %v2274 = vadd.f32 %v2265, %v2270
    %v2275 = vadd.f32 %v2266, %v2271
    %v2276 = vadd.f32 %v2267, %v2272
    %v2277 = vadd.f32 %v2268, %v2273
    %v2282 = vsel %vm188, %v2276, %v2274
    %v2283 = vsel %vm188, %v2277, %v2275
    %2286 = vrot.lane.b32.xlu0 %v2282, 98
    %v2287 = vpop.permute.xlu0 %2286
    %2288 = vrot.lane.b32.xlu0 %v2283, 98
    %v2289 = vpop.permute.xlu0 %2288
    %vm2290 = vcmp.lt.s32.totalorder %v143, 98
    %v2291 = vsel %vm2290, %v2287, %v2289
    %v2292 = vsel %vm2290, %v2289, %v2287
    %s2293 = scalar_lea.vmem [#allocation7], 68
    %v2294 = vld [vmem:[%s2293] ss:$8 sm:$0x3]
    %v2296 = vlaneseq
    %v2297 = vshrl.u32 %v2296, 7
    %v2298 = vsub.s32 0, %v2297
    %v2299 = vrot.slane %v2294, %v2298
    %v2300 = vlaneseq
    %v2301 = vshrl.u32 %v2300, 7
    %v2302 = vsub.s32 1, %v2301
    %v2303 = vrot.slane %v2294, %v2302
    %v2306 = vmul.f32 %v2299, %v2291
    %v2307 = vmul.f32 %v2303, %v2292
    %v2308 = vadd.f32 %v2260, %v2306
    %v2309 = vadd.f32 %v2261, %v2307
    %s2310 = sld [smem:[#allocation6 + $0x25]]
    %s2311 = sld [smem:[#allocation6 + $0x56]]
    %v2312 = vstv %s2310
    %v2313 = vmul.f32 %v502, %v2312
    %v2314 = vmul.f32 %v503, %v2312
    %v2315 = vmul.f32 %v504, %v2312
    %v2316 = vmul.f32 %v505, %v2312
    %v2317 = vstv %s2311
    %v2318 = vmul.f32 %v514, %v2317
    %v2319 = vmul.f32 %v523, %v2317
    %v2320 = vmul.f32 %v532, %v2317
    %v2321 = vmul.f32 %v541, %v2317
    %v2322 = vadd.f32 %v2313, %v2318
    %v2323 = vadd.f32 %v2314, %v2319
    %v2324 = vadd.f32 %v2315, %v2320
    %v2325 = vadd.f32 %v2316, %v2321
    %v2330 = vsel %vm188, %v2324, %v2322
    %v2331 = vsel %vm188, %v2325, %v2323
    %2334 = vrot.lane.b32.xlu0 %v2330, 97
    %v2335 = vpop.permute.xlu0 %2334
    %2336 = vrot.lane.b32.xlu0 %v2331, 97
    %v2337 = vpop.permute.xlu0 %2336
    %vm2338 = vcmp.lt.s32.totalorder %v143, 97
    %v2339 = vsel %vm2338, %v2335, %v2337
    %v2340 = vsel %vm2338, %v2337, %v2335
    %s2341 = scalar_lea.vmem [#allocation7], 69
    %v2342 = vld [vmem:[%s2341] ss:$8 sm:$0x3]
    %v2344 = vlaneseq
    %v2345 = vshrl.u32 %v2344, 7
    %v2346 = vsub.s32 0, %v2345
    %v2347 = vrot.slane %v2342, %v2346
    %v2348 = vlaneseq
    %v2349 = vshrl.u32 %v2348, 7
    %v2350 = vsub.s32 1, %v2349
    %v2351 = vrot.slane %v2342, %v2350
    %v2354 = vmul.f32 %v2347, %v2339
    %v2355 = vmul.f32 %v2351, %v2340
    %v2356 = vadd.f32 %v2308, %v2354
    %v2357 = vadd.f32 %v2309, %v2355
    %s2358 = sld [smem:[#allocation6 + $0x26]]
    %s2359 = sld [smem:[#allocation6 + $0x57]]
    %v2360 = vstv %s2358
    %v2361 = vmul.f32 %v502, %v2360
    %v2362 = vmul.f32 %v503, %v2360
    %v2363 = vmul.f32 %v504, %v2360
    %v2364 = vmul.f32 %v505, %v2360
    %v2365 = vstv %s2359
    %v2366 = vmul.f32 %v514, %v2365
    %v2367 = vmul.f32 %v523, %v2365
    %v2368 = vmul.f32 %v532, %v2365
    %v2369 = vmul.f32 %v541, %v2365
    %v2370 = vadd.f32 %v2361, %v2366
    %v2371 = vadd.f32 %v2362, %v2367
    %v2372 = vadd.f32 %v2363, %v2368
    %v2373 = vadd.f32 %v2364, %v2369
    %v2378 = vsel %vm188, %v2372, %v2370
    %v2379 = vsel %vm188, %v2373, %v2371
    %2382 = vrot.lane.b32.xlu0 %v2378, 96
    %v2383 = vpop.permute.xlu0 %2382
    %2384 = vrot.lane.b32.xlu0 %v2379, 96
    %v2385 = vpop.permute.xlu0 %2384
    %vm2386 = vcmp.lt.s32.totalorder %v143, 96
    %v2387 = vsel %vm2386, %v2383, %v2385
    %v2388 = vsel %vm2386, %v2385, %v2383
    %s2389 = scalar_lea.vmem [#allocation7], 70
    %v2390 = vld [vmem:[%s2389] ss:$8 sm:$0x3]
    %v2392 = vlaneseq
    %v2393 = vshrl.u32 %v2392, 7
    %v2394 = vsub.s32 0, %v2393
    %v2395 = vrot.slane %v2390, %v2394
    %v2396 = vlaneseq
    %v2397 = vshrl.u32 %v2396, 7
    %v2398 = vsub.s32 1, %v2397
    %v2399 = vrot.slane %v2390, %v2398
    %v2402 = vmul.f32 %v2395, %v2387
    %v2403 = vmul.f32 %v2399, %v2388
    %v2404 = vadd.f32 %v2356, %v2402
    %v2405 = vadd.f32 %v2357, %v2403
    %s2406 = sld [smem:[#allocation6 + $0x27]]
    %s2407 = sld [smem:[#allocation6 + $0x58]]
    %v2408 = vstv %s2406
    %v2409 = vmul.f32 %v502, %v2408
    %v2410 = vmul.f32 %v503, %v2408
    %v2411 = vmul.f32 %v504, %v2408
    %v2412 = vmul.f32 %v505, %v2408
    %v2413 = vstv %s2407
    %v2414 = vmul.f32 %v514, %v2413
    %v2415 = vmul.f32 %v523, %v2413
    %v2416 = vmul.f32 %v532, %v2413
    %v2417 = vmul.f32 %v541, %v2413
    %v2418 = vadd.f32 %v2409, %v2414
    %v2419 = vadd.f32 %v2410, %v2415
    %v2420 = vadd.f32 %v2411, %v2416
    %v2421 = vadd.f32 %v2412, %v2417
    %v2426 = vsel %vm188, %v2420, %v2418
    %v2427 = vsel %vm188, %v2421, %v2419
    %2430 = vrot.lane.b32.xlu0 %v2426, 95
    %v2431 = vpop.permute.xlu0 %2430
    %2432 = vrot.lane.b32.xlu0 %v2427, 95
    %v2433 = vpop.permute.xlu0 %2432
    %vm2434 = vcmp.lt.s32.totalorder %v143, 95
    %v2435 = vsel %vm2434, %v2431, %v2433
    %v2436 = vsel %vm2434, %v2433, %v2431
    %s2437 = scalar_lea.vmem [#allocation7], 71
    %v2438 = vld [vmem:[%s2437] ss:$8 sm:$0x3]
    %v2440 = vlaneseq
    %v2441 = vshrl.u32 %v2440, 7
    %v2442 = vsub.s32 0, %v2441
    %v2443 = vrot.slane %v2438, %v2442
    %v2444 = vlaneseq
    %v2445 = vshrl.u32 %v2444, 7
    %v2446 = vsub.s32 1, %v2445
    %v2447 = vrot.slane %v2438, %v2446
    %v2450 = vmul.f32 %v2443, %v2435
    %v2451 = vmul.f32 %v2447, %v2436
    %v2452 = vadd.f32 %v2404, %v2450
    %v2453 = vadd.f32 %v2405, %v2451
    %s2454 = sld [smem:[#allocation6 + $0x28]]
    %s2455 = sld [smem:[#allocation6 + $0x59]]
    %v2456 = vstv %s2454
    %v2457 = vmul.f32 %v502, %v2456
    %v2458 = vmul.f32 %v503, %v2456
    %v2459 = vmul.f32 %v504, %v2456
    %v2460 = vmul.f32 %v505, %v2456
    %v2461 = vstv %s2455
    %v2462 = vmul.f32 %v514, %v2461
    %v2463 = vmul.f32 %v523, %v2461
    %v2464 = vmul.f32 %v532, %v2461
    %v2465 = vmul.f32 %v541, %v2461
    %v2466 = vadd.f32 %v2457, %v2462
    %v2467 = vadd.f32 %v2458, %v2463
    %v2468 = vadd.f32 %v2459, %v2464
    %v2469 = vadd.f32 %v2460, %v2465
    %v2474 = vsel %vm188, %v2468, %v2466
    %v2475 = vsel %vm188, %v2469, %v2467
    %2478 = vrot.lane.b32.xlu0 %v2474, 94
    %v2479 = vpop.permute.xlu0 %2478
    %2480 = vrot.lane.b32.xlu0 %v2475, 94
    %v2481 = vpop.permute.xlu0 %2480
    %vm2482 = vcmp.lt.s32.totalorder %v143, 94
    %v2483 = vsel %vm2482, %v2479, %v2481
    %v2484 = vsel %vm2482, %v2481, %v2479
    %s2485 = scalar_lea.vmem [#allocation7], 80
    %v2486 = vld [vmem:[%s2485] ss:$8 sm:$0x3]
    %v2488 = vlaneseq
    %v2489 = vshrl.u32 %v2488, 7
    %v2490 = vsub.s32 0, %v2489
    %v2491 = vrot.slane %v2486, %v2490
    %v2492 = vlaneseq
    %v2493 = vshrl.u32 %v2492, 7
    %v2494 = vsub.s32 1, %v2493
    %v2495 = vrot.slane %v2486, %v2494
    %v2498 = vmul.f32 %v2491, %v2483
    %v2499 = vmul.f32 %v2495, %v2484
    %v2500 = vadd.f32 %v2452, %v2498
    %v2501 = vadd.f32 %v2453, %v2499
    %s2502 = sld [smem:[#allocation6 + $0x29]]
    %s2503 = sld [smem:[#allocation6 + $0x5a]]
    %v2504 = vstv %s2502
    %v2505 = vmul.f32 %v502, %v2504
    %v2506 = vmul.f32 %v503, %v2504
    %v2507 = vmul.f32 %v504, %v2504
    %v2508 = vmul.f32 %v505, %v2504
    %v2509 = vstv %s2503
    %v2510 = vmul.f32 %v514, %v2509
    %v2511 = vmul.f32 %v523, %v2509
    %v2512 = vmul.f32 %v532, %v2509
    %v2513 = vmul.f32 %v541, %v2509
    %v2514 = vadd.f32 %v2505, %v2510
    %v2515 = vadd.f32 %v2506, %v2511
    %v2516 = vadd.f32 %v2507, %v2512
    %v2517 = vadd.f32 %v2508, %v2513
    %v2522 = vsel %vm188, %v2516, %v2514
    %v2523 = vsel %vm188, %v2517, %v2515
    %2526 = vrot.lane.b32.xlu0 %v2522, 93
    %v2527 = vpop.permute.xlu0 %2526
    %2528 = vrot.lane.b32.xlu0 %v2523, 93
    %v2529 = vpop.permute.xlu0 %2528
    %vm2530 = vcmp.lt.s32.totalorder %v143, 93
    %v2531 = vsel %vm2530, %v2527, %v2529
    %v2532 = vsel %vm2530, %v2529, %v2527
    %s2533 = scalar_lea.vmem [#allocation7], 81
    %v2534 = vld [vmem:[%s2533] ss:$8 sm:$0x3]
    %v2536 = vlaneseq
    %v2537 = vshrl.u32 %v2536, 7
    %v2538 = vsub.s32 0, %v2537
    %v2539 = vrot.slane %v2534, %v2538
    %v2540 = vlaneseq
    %v2541 = vshrl.u32 %v2540, 7
    %v2542 = vsub.s32 1, %v2541
    %v2543 = vrot.slane %v2534, %v2542
    %v2546 = vmul.f32 %v2539, %v2531
    %v2547 = vmul.f32 %v2543, %v2532
    %v2548 = vadd.f32 %v2500, %v2546
    %v2549 = vadd.f32 %v2501, %v2547
    %s2550 = sld [smem:[#allocation6 + $0x2a]]
    %s2551 = sld [smem:[#allocation6 + $0x5b]]
    %v2552 = vstv %s2550
    %v2553 = vmul.f32 %v502, %v2552
    %v2554 = vmul.f32 %v503, %v2552
    %v2555 = vmul.f32 %v504, %v2552
    %v2556 = vmul.f32 %v505, %v2552
    %v2557 = vstv %s2551
    %v2558 = vmul.f32 %v514, %v2557
    %v2559 = vmul.f32 %v523, %v2557
    %v2560 = vmul.f32 %v532, %v2557
    %v2561 = vmul.f32 %v541, %v2557
    %v2562 = vadd.f32 %v2553, %v2558
    %v2563 = vadd.f32 %v2554, %v2559
    %v2564 = vadd.f32 %v2555, %v2560
    %v2565 = vadd.f32 %v2556, %v2561
    %v2570 = vsel %vm188, %v2564, %v2562
    %v2571 = vsel %vm188, %v2565, %v2563
    %2574 = vrot.lane.b32.xlu0 %v2570, 83
    %v2575 = vpop.permute.xlu0 %2574
    %2576 = vrot.lane.b32.xlu0 %v2571, 83
    %v2577 = vpop.permute.xlu0 %2576
    %vm2578 = vcmp.lt.s32.totalorder %v143, 83
    %v2579 = vsel %vm2578, %v2575, %v2577
    %v2580 = vsel %vm2578, %v2577, %v2575
    %s2581 = scalar_lea.vmem [#allocation7], 82
    %v2582 = vld [vmem:[%s2581] ss:$8 sm:$0x3]
    %v2584 = vlaneseq
    %v2585 = vshrl.u32 %v2584, 7
    %v2586 = vsub.s32 0, %v2585
    %v2587 = vrot.slane %v2582, %v2586
    %v2588 = vlaneseq
    %v2589 = vshrl.u32 %v2588, 7
    %v2590 = vsub.s32 1, %v2589
    %v2591 = vrot.slane %v2582, %v2590
    %v2594 = vmul.f32 %v2587, %v2579
    %v2595 = vmul.f32 %v2591, %v2580
    %v2596 = vadd.f32 %v2548, %v2594
    %v2597 = vadd.f32 %v2549, %v2595
    %s2598 = sld [smem:[#allocation6 + $0x2b]]
    %s2599 = sld [smem:[#allocation6 + $0x5c]]
    %v2600 = vstv %s2598
    %v2601 = vmul.f32 %v502, %v2600
    %v2602 = vmul.f32 %v503, %v2600
    %v2603 = vmul.f32 %v504, %v2600
    %v2604 = vmul.f32 %v505, %v2600
    %v2605 = vstv %s2599
    %v2606 = vmul.f32 %v514, %v2605
    %v2607 = vmul.f32 %v523, %v2605
    %v2608 = vmul.f32 %v532, %v2605
    %v2609 = vmul.f32 %v541, %v2605
    %v2610 = vadd.f32 %v2601, %v2606
    %v2611 = vadd.f32 %v2602, %v2607
    %v2612 = vadd.f32 %v2603, %v2608
    %v2613 = vadd.f32 %v2604, %v2609
    %v2618 = vsel %vm188, %v2612, %v2610
    %v2619 = vsel %vm188, %v2613, %v2611
    %2622 = vrot.lane.b32.xlu0 %v2618, 82
    %v2623 = vpop.permute.xlu0 %2622
    %2624 = vrot.lane.b32.xlu0 %v2619, 82
    %v2625 = vpop.permute.xlu0 %2624
    %vm2626 = vcmp.lt.s32.totalorder %v143, 82
    %v2627 = vsel %vm2626, %v2623, %v2625
    %v2628 = vsel %vm2626, %v2625, %v2623
    %s2629 = scalar_lea.vmem [#allocation7], 83
    %v2630 = vld [vmem:[%s2629] ss:$8 sm:$0x3]
    %v2632 = vlaneseq
    %v2633 = vshrl.u32 %v2632, 7
    %v2634 = vsub.s32 0, %v2633
    %v2635 = vrot.slane %v2630, %v2634
    %v2636 = vlaneseq
    %v2637 = vshrl.u32 %v2636, 7
    %v2638 = vsub.s32 1, %v2637
    %v2639 = vrot.slane %v2630, %v2638
    %v2642 = vmul.f32 %v2635, %v2627
    %v2643 = vmul.f32 %v2639, %v2628
    %v2644 = vadd.f32 %v2596, %v2642
    %v2645 = vadd.f32 %v2597, %v2643
    %s2646 = sld [smem:[#allocation6 + $0x2c]]
    %s2647 = sld [smem:[#allocation6 + $0x5d]]
    %v2648 = vstv %s2646
    %v2649 = vmul.f32 %v502, %v2648
    %v2650 = vmul.f32 %v503, %v2648
    %v2651 = vmul.f32 %v504, %v2648
    %v2652 = vmul.f32 %v505, %v2648
    %v2653 = vstv %s2647
    %v2654 = vmul.f32 %v514, %v2653
    %v2655 = vmul.f32 %v523, %v2653
    %v2656 = vmul.f32 %v532, %v2653
    %v2657 = vmul.f32 %v541, %v2653
    %v2658 = vadd.f32 %v2649, %v2654
    %v2659 = vadd.f32 %v2650, %v2655
    %v2660 = vadd.f32 %v2651, %v2656
    %v2661 = vadd.f32 %v2652, %v2657
    %v2666 = vsel %vm188, %v2660, %v2658
    %v2667 = vsel %vm188, %v2661, %v2659
    %2670 = vrot.lane.b32.xlu0 %v2666, 81
    %v2671 = vpop.permute.xlu0 %2670
    %2672 = vrot.lane.b32.xlu0 %v2667, 81
    %v2673 = vpop.permute.xlu0 %2672
    %vm2674 = vcmp.lt.s32.totalorder %v143, 81
    %v2675 = vsel %vm2674, %v2671, %v2673
    %v2676 = vsel %vm2674, %v2673, %v2671
    %s2677 = scalar_lea.vmem [#allocation7], 84
    %v2678 = vld [vmem:[%s2677] ss:$8 sm:$0x3]
    %v2680 = vlaneseq
    %v2681 = vshrl.u32 %v2680, 7
    %v2682 = vsub.s32 0, %v2681
    %v2683 = vrot.slane %v2678, %v2682
    %v2684 = vlaneseq
    %v2685 = vshrl.u32 %v2684, 7
    %v2686 = vsub.s32 1, %v2685
    %v2687 = vrot.slane %v2678, %v2686
    %v2690 = vmul.f32 %v2683, %v2675
    %v2691 = vmul.f32 %v2687, %v2676
    %v2692 = vadd.f32 %v2644, %v2690
    %v2693 = vadd.f32 %v2645, %v2691
    %s2694 = sld [smem:[#allocation6 + $0x2d]]
    %s2695 = sld [smem:[#allocation6 + $0x5e]]
    %v2696 = vstv %s2694
    %v2697 = vmul.f32 %v502, %v2696
    %v2698 = vmul.f32 %v503, %v2696
    %v2699 = vmul.f32 %v504, %v2696
    %v2700 = vmul.f32 %v505, %v2696
    %v2701 = vstv %s2695
    %v2702 = vmul.f32 %v514, %v2701
    %v2703 = vmul.f32 %v523, %v2701
    %v2704 = vmul.f32 %v532, %v2701
    %v2705 = vmul.f32 %v541, %v2701
    %v2706 = vadd.f32 %v2697, %v2702
    %v2707 = vadd.f32 %v2698, %v2703
    %v2708 = vadd.f32 %v2699, %v2704
    %v2709 = vadd.f32 %v2700, %v2705
    %v2714 = vsel %vm188, %v2708, %v2706
    %v2715 = vsel %vm188, %v2709, %v2707
    %2718 = vrot.lane.b32.xlu0 %v2714, 80
    %v2719 = vpop.permute.xlu0 %2718
    %2720 = vrot.lane.b32.xlu0 %v2715, 80
    %v2721 = vpop.permute.xlu0 %2720
    %vm2722 = vcmp.lt.s32.totalorder %v143, 80
    %v2723 = vsel %vm2722, %v2719, %v2721
    %v2724 = vsel %vm2722, %v2721, %v2719
    %s2725 = scalar_lea.vmem [#allocation7], 85
    %v2726 = vld [vmem:[%s2725] ss:$8 sm:$0x3]
    %v2728 = vlaneseq
    %v2729 = vshrl.u32 %v2728, 7
    %v2730 = vsub.s32 0, %v2729
    %v2731 = vrot.slane %v2726, %v2730
    %v2732 = vlaneseq
    %v2733 = vshrl.u32 %v2732, 7
    %v2734 = vsub.s32 1, %v2733
    %v2735 = vrot.slane %v2726, %v2734
    %v2738 = vmul.f32 %v2731, %v2723
    %v2739 = vmul.f32 %v2735, %v2724
    %v2740 = vadd.f32 %v2692, %v2738
    %v2741 = vadd.f32 %v2693, %v2739
    %s2742 = sld [smem:[#allocation6 + $0x2e]]
    %s2743 = sld [smem:[#allocation6 + $0x5f]]
    %v2744 = vstv %s2742
    %v2745 = vmul.f32 %v502, %v2744
    %v2746 = vmul.f32 %v503, %v2744
    %v2747 = vmul.f32 %v504, %v2744
    %v2748 = vmul.f32 %v505, %v2744
    %v2749 = vstv %s2743
    %v2750 = vmul.f32 %v514, %v2749
    %v2751 = vmul.f32 %v523, %v2749
    %v2752 = vmul.f32 %v532, %v2749
    %v2753 = vmul.f32 %v541, %v2749
    %v2754 = vadd.f32 %v2745, %v2750
    %v2755 = vadd.f32 %v2746, %v2751
    %v2756 = vadd.f32 %v2747, %v2752
    %v2757 = vadd.f32 %v2748, %v2753
    %v2762 = vsel %vm188, %v2756, %v2754
    %v2763 = vsel %vm188, %v2757, %v2755
    %2766 = vrot.lane.b32.xlu0 %v2762, 79
    %v2767 = vpop.permute.xlu0 %2766
    %2768 = vrot.lane.b32.xlu0 %v2763, 79
    %v2769 = vpop.permute.xlu0 %2768
    %vm2770 = vcmp.lt.s32.totalorder %v143, 79
    %v2771 = vsel %vm2770, %v2767, %v2769
    %v2772 = vsel %vm2770, %v2769, %v2767
    %s2773 = scalar_lea.vmem [#allocation7], 86
    %v2774 = vld [vmem:[%s2773] ss:$8 sm:$0x3]
    %v2776 = vlaneseq
    %v2777 = vshrl.u32 %v2776, 7
    %v2778 = vsub.s32 0, %v2777
    %v2779 = vrot.slane %v2774, %v2778
    %v2780 = vlaneseq
    %v2781 = vshrl.u32 %v2780, 7
    %v2782 = vsub.s32 1, %v2781
    %v2783 = vrot.slane %v2774, %v2782
    %v2786 = vmul.f32 %v2779, %v2771
    %v2787 = vmul.f32 %v2783, %v2772
    %v2788 = vadd.f32 %v2740, %v2786
    %v2789 = vadd.f32 %v2741, %v2787
    %s2790 = sld [smem:[#allocation6 + $0x2f]]
    %s2791 = sld [smem:[#allocation6 + $0x60]]
    %v2792 = vstv %s2790
    %v2793 = vmul.f32 %v502, %v2792
    %v2794 = vmul.f32 %v503, %v2792
    %v2795 = vmul.f32 %v504, %v2792
    %v2796 = vmul.f32 %v505, %v2792
    %v2797 = vstv %s2791
    %v2798 = vmul.f32 %v514, %v2797
    %v2799 = vmul.f32 %v523, %v2797
    %v2800 = vmul.f32 %v532, %v2797
    %v2801 = vmul.f32 %v541, %v2797
    %v2802 = vadd.f32 %v2793, %v2798
    %v2803 = vadd.f32 %v2794, %v2799
    %v2804 = vadd.f32 %v2795, %v2800
    %v2805 = vadd.f32 %v2796, %v2801
    %v2810 = vsel %vm188, %v2804, %v2802
    %v2811 = vsel %vm188, %v2805, %v2803
    %2814 = vrot.lane.b32.xlu0 %v2810, 78
    %v2815 = vpop.permute.xlu0 %2814
    %2816 = vrot.lane.b32.xlu0 %v2811, 78
    %v2817 = vpop.permute.xlu0 %2816
    %vm2818 = vcmp.lt.s32.totalorder %v143, 78
    %v2819 = vsel %vm2818, %v2815, %v2817
    %v2820 = vsel %vm2818, %v2817, %v2815
    %s2821 = scalar_lea.vmem [#allocation7], 87
    %v2822 = vld [vmem:[%s2821] ss:$8 sm:$0x3]
    %v2824 = vlaneseq
    %v2825 = vshrl.u32 %v2824, 7
    %v2826 = vsub.s32 0, %v2825
    %v2827 = vrot.slane %v2822, %v2826
    %v2828 = vlaneseq
    %v2829 = vshrl.u32 %v2828, 7
    %v2830 = vsub.s32 1, %v2829
    %v2831 = vrot.slane %v2822, %v2830
    %v2834 = vmul.f32 %v2827, %v2819
    %v2835 = vmul.f32 %v2831, %v2820
    %v2836 = vadd.f32 %v2788, %v2834
    %v2837 = vadd.f32 %v2789, %v2835
    %s2838 = sld [smem:[#allocation6 + $0x30]]
    %s2839 = sld [smem:[#allocation6 + $0x61]]
    %v2840 = vstv %s2838
    %v2841 = vmul.f32 %v502, %v2840
    %v2842 = vmul.f32 %v503, %v2840
    %v2843 = vmul.f32 %v504, %v2840
    %v2844 = vmul.f32 %v505, %v2840
    %v2845 = vstv %s2839
    %v2846 = vmul.f32 %v514, %v2845
    %v2847 = vmul.f32 %v523, %v2845
    %v2848 = vmul.f32 %v532, %v2845
    %v2849 = vmul.f32 %v541, %v2845
    %v2850 = vadd.f32 %v2841, %v2846
    %v2851 = vadd.f32 %v2842, %v2847
    %v2852 = vadd.f32 %v2843, %v2848
    %v2853 = vadd.f32 %v2844, %v2849
    %v2858 = vsel %vm188, %v2852, %v2850
    %v2859 = vsel %vm188, %v2853, %v2851
    %2862 = vrot.lane.b32.xlu0 %v2858, 77
    %v2863 = vpop.permute.xlu0 %2862
    %2864 = vrot.lane.b32.xlu0 %v2859, 77
    %v2865 = vpop.permute.xlu0 %2864
    %vm2866 = vcmp.lt.s32.totalorder %v143, 77
    %v2867 = vsel %vm2866, %v2863, %v2865
    %v2868 = vsel %vm2866, %v2865, %v2863
    %s2869 = scalar_lea.vmem [#allocation7], 96
    %v2870 = vld [vmem:[%s2869] ss:$8 sm:$0x3]
    %v2872 = vlaneseq
    %v2873 = vshrl.u32 %v2872, 7
    %v2874 = vsub.s32 0, %v2873
    %v2875 = vrot.slane %v2870, %v2874
    %v2876 = vlaneseq
    %v2877 = vshrl.u32 %v2876, 7
    %v2878 = vsub.s32 1, %v2877
    %v2879 = vrot.slane %v2870, %v2878
    %v2882 = vmul.f32 %v2875, %v2867
    %v2883 = vmul.f32 %v2879, %v2868
    %v2884 = vadd.f32 %v2836, %v2882
    %v2885 = vadd.f32 %v2837, %v2883
    %v2886 = vand.u32 2147483647, %v2884
    %v2887 = vand.u32 2147483647, %v2885
    %v2888 = vsub.f32 0.0, %v2886
    %v2889 = vsub.f32 0.0, %v2887
    %v2890 = vmul.f32 %v2888, 1.442695
    %v2891 = vpow.pop %v2890
    %v2892 = vmul.f32 %v2889, 1.442695
    %v2893 = vpow.pop %v2892
    %v2894 = vadd.f32 %v2891, 1.0
    %v2895 = vadd.f32 %v2893, 1.0
    %v2896 = vrcp.pop %v2894
    %v2897 = vrcp.pop %v2895
    %vm2898 = vcmp.ge.f32.partialorder %v2884, 0.0
    %vm2899 = vcmp.ge.f32.partialorder %v2885, 0.0
    %v2900 = vsub.f32 1.0, %v2896
    %v2901 = vsub.f32 1.0, %v2897
    %v2902 = vsel %vm2898, %v2896, %v2900
    %v2903 = vsel %vm2899, %v2897, %v2901
    %v2906 = vcombine.low %v2902, %v2903
    %v2908 = vunpack.c.l.s4 1966171168
    %v2909 = vunpack.c.0.s8 %v2908
    %v2910 = vlaneseq
    %v2911 = vshrl.u32 %v2910, 7
    %v2912 = vsub.s32 %v2909, %v2911
    %v2913 = vrot.slane %v2906, %v2912
    %v2914 = vcombine.high %v2913, %v2913
    %v2916 = vunpack.c.l.s4 1966171168
    %v2917 = vunpack.c.0.s8 %v2916
    %v2918 = vlaneseq
    %v2919 = vshrl.u32 %v2918, 7
    %v2920 = vsub.s32 %v2917, %v2919
    %v2921 = vrot.slane %v2913, %v2920
    %v2923 = vunpack.c.l.s4 1966171168
    %v2924 = vunpack.c.0.s8 %v2923
    %v2925 = vlaneseq
    %v2926 = vshrl.u32 %v2925, 7
    %v2927 = vsub.s32 %v2924, %v2926
    %v2928 = vrot.slane %v2914, %v2927
    %v2929 = vlaneseq
    %v2930 = vshrl.u32 %v2929, 7
    %v2931 = vsub.s32 0, %v2930
    %v2932 = vrot.slane %v2921, %v2931
    %v2933 = vlaneseq
    %v2934 = vshrl.u32 %v2933, 7
    %v2935 = vsub.s32 1, %v2934
    %v2936 = vrot.slane %v2921, %v2935
    %v2937 = vlaneseq
    %v2938 = vshrl.u32 %v2937, 7
    %v2939 = vsub.s32 0, %v2938
    %v2940 = vrot.slane %v2928, %v2939
    %v2941 = vlaneseq
    %v2942 = vshrl.u32 %v2941, 7
    %v2943 = vsub.s32 1, %v2942
    %v2944 = vrot.slane %v2928, %v2943
    %v2949 = vmul.f32 %v450, %v2932
    %v2950 = vmul.f32 %v451, %v2936
    %v2951 = vmul.f32 %v452, %v2932
    %v2952 = vmul.f32 %v453, %v2936
    %v2953 = vmul.f32 %v454, %v2932
    %v2954 = vmul.f32 %v455, %v2936
    %v2955 = vmul.f32 %v456, %v2932
    %v2956 = vmul.f32 %v457, %v2936
    %v2957 = vmul.f32 %v458, %v2940
    %v2958 = vmul.f32 %v459, %v2944
    %v2959 = vmul.f32 %v460, %v2940
    %v2960 = vmul.f32 %v461, %v2944
    %v2961 = vmul.f32 %v462, %v2940
    %v2962 = vmul.f32 %v463, %v2944
    %v2963 = vmul.f32 %v464, %v2940
    %v2964 = vmul.f32 %v465, %v2944
    %2965 = vst [vmem:[#allocation9] sm:$0xff] %v2949
    %2966 = vst [vmem:[#allocation9 + $0x8] sm:$0xff] %v2950
    %2967 = vst [vmem:[#allocation9 + $0x10] sm:$0xff] %v2951
    %2968 = vst [vmem:[#allocation9 + $0x18] sm:$0xff] %v2952
    %2969 = vst [vmem:[#allocation9 + $0x20] sm:$0xff] %v2953
    %2970 = vst [vmem:[#allocation9 + $0x28] sm:$0xff] %v2954
    %2971 = vst [vmem:[#allocation9 + $0x30] sm:$0xff] %v2955
    %2972 = vst [vmem:[#allocation9 + $0x38] sm:$0xff] %v2956
    %2973 = vst [vmem:[#allocation9 + $0x40] sm:$0xff] %v2957
    %2974 = vst [vmem:[#allocation9 + $0x48] sm:$0xff] %v2958
    %2975 = vst [vmem:[#allocation9 + $0x50] sm:$0xff] %v2959
    %2976 = vst [vmem:[#allocation9 + $0x58] sm:$0xff] %v2960
    %2977 = vst [vmem:[#allocation9 + $0x60] sm:$0xff] %v2961
    %2978 = vst [vmem:[#allocation9 + $0x68] sm:$0xff] %v2962
    %2979 = vst [vmem:[#allocation9 + $0x70] sm:$0xff] %v2963
    %2980 = vst [vmem:[#allocation9 + $0x78] sm:$0xff] %v2964
    // Predicated region
    $region34: #{tpu_custom_call.1} parent=1 // pred_check
      _
    $region35: #{tpu_custom_call.1} parent=1 // pred_check_branch
      %2982 = sbr.rel (0) target = $region37
    $region36: #{tpu_custom_call.1} parent=1 // pred_region
      %s2984 = ssub.s32 2048, 2048
      %2985 = vsyncadd [#allocation4], %s2984
      %s2986 = sshll.u32 [#allocation9], 4
      %s2987 = int_to_ptr.vmem [resolvable:$true] %s2986
      %2992 = dma.vmem_to_hbm [thread:$0]  %s2987, 2048, %s5, [#allocation4], 256, 256, 16
    $region37: #{tpu_custom_call.1} parent=1 // pred_fallthru
      _
    // Predicated region
    $region38: #{tpu_custom_call.1} parent=1 // pred_check
      _
    $region39: #{tpu_custom_call.1} parent=1 // pred_check_branch
      %2994 = sbr.rel (0) target = $region41
    $region40: #{tpu_custom_call.1} parent=1 // pred_region
      %2995 = dma.done [#allocation4], 2048
    $region41: #{tpu_custom_call.1} parent=1 // pred_fallthru
      _
    %2996 = vsyncpa [#allocation3], 1
    %2997 = vsyncpa [#allocation8], 1
    %2998 = vsyncpa [#allocation4], 1
    %2999 = vsyncpa [#allocation5], 1

</llo_original>
